<compile_context>
chip_gen: v6e
topology: v6e:2x2x1
jax: 0.10.0
libtpu: 0.0.40
codegen_flags: <defaults>
</compile_context>

<pallas_src>
import functools

import numpy as np
import jax
import jax.numpy as jnp
from jax.experimental import pallas as pl
from jax.experimental.pallas import tpu as pltpu

# ----------------- configuration (mirrors `opt` + TSception.__init__) --------
BATCH = 2
NUM_CHANNEL = 4        # opt.num_channel  (EEG electrodes  -> conv "H")
NUM_DIM = 256          # opt.num_dim      (time samples    -> conv "W")
NUM_T = 8              # opt.num_T
NUM_S = 8              # opt.num_S
HIDDEN = 32            # opt.hidden_size
NUM_CLASS = 3          # opt.num_class
SAMPLING_RATE = 128
BN_EPS = 1e-5
POOL_T = 32            # AvgPool kernel/stride inside the T-ceptions
POOL_S = 16            # AvgPool kernel/stride inside the S-ceptions

K1 = int(0.5 * SAMPLING_RATE)      # 64
K2 = int(0.25 * SAMPLING_RATE)     # 32
K3 = int(0.125 * SAMPLING_RATE)    # 16

P1 = (NUM_DIM - K1 + 1) // POOL_T  # 6   pooled width of Tception1
P2 = (NUM_DIM - K2 + 1) // POOL_T  # 7
P3 = (NUM_DIM - K3 + 1) // POOL_T  # 7
PTOT = P1 + P2 + P3                # 20  time width after the T-stage concat
WS = PTOT // POOL_S                # 1   time width after the S-stage pooling
assert WS == 1, "kernel assumes the S-stage pool reduces time to one column"

HH = int(NUM_CHANNEL * 0.5)        # 2   Sception2 kernel/stride height
NR2 = (NUM_CHANNEL - HH) // HH + 1 # 2   rows produced by Sception2
NH = 1 + NR2                       # 3   heights after concat along dim=2
FEAT = NUM_S * NH * WS             # 24  fc1 fan-in


# ----------------------------- the Pallas kernel -----------------------------
def tsception_kernel(
    # stride-32 unfolded input, one per Tception branch: (K_j + 31, N * P_j)
    q1_ref, q2_ref, q3_ref,
    # shift-expanded conv weights (T*32, K_j + 31) and biases (T*32, 1)
    we1_ref, we2_ref, we3_ref,
    be1_ref, be2_ref, be3_ref,
    # BN_t affine params (T, 1)
    gamma_t_ref, beta_t_ref,
    # Sception weights (S, H*T) / (S, HH*T) and biases (S, 1)
    ws1_ref, ws2_ref, bs1_ref, bs2_ref,
    # BN_s affine params (S, 1)
    gamma_s_ref, beta_s_ref,
    # fc1 (HD, NH*S) + (HD, 1), fc2 (C, HD) + (C, 1)
    w1_ref, b1_ref, w2_ref, b2_ref,
    # output: log-softmax logits, (C, B) -- batch kept on the lane axis
    out_ref,
    *, batch, height, hh, num_t, num_s, p1, p2, p3):
  n_rows = batch * height            # flattened (batch, EEG-channel) count
  ptot = p1 + p2 + p3

  # ---- Tception_j: conv(1, K_j) -> ReLU -> AvgPool(1, 32), one dot each -----
  # Output rows are (t, r) with r the in-window offset, so the pool is a
  # sublane-group mean; lanes are (n, p) = (batch*channel, pooled time).
  def t_branch(q_ref, we_ref, be_ref, pwidth):
    conv = jnp.dot(we_ref[...], q_ref[...],
                   preferred_element_type=jnp.float32)     # (T*32, n_rows*pwidth)
    conv = jnp.maximum(conv + be_ref[...], 0.0)
    conv = conv.reshape(num_t, POOL_T, n_rows * pwidth)    # tile-preserving split
    return jnp.mean(conv, axis=1)                          # (T, n_rows*pwidth)

  o1 = t_branch(q1_ref, we1_ref, be1_ref, p1)
  o2 = t_branch(q2_ref, we2_ref, be2_ref, p2)
  o3 = t_branch(q3_ref, we3_ref, be3_ref, p3)

  # ---- BatchNorm2d(num_T): training-mode batch stats, folded over branches --
  cnt_t = float(n_rows * ptot)
  mean_t = (jnp.sum(o1, axis=-1, keepdims=True) +
            jnp.sum(o2, axis=-1, keepdims=True) +
            jnp.sum(o3, axis=-1, keepdims=True)) / cnt_t
  c1, c2, c3 = o1 - mean_t, o2 - mean_t, o3 - mean_t
  var_t = (jnp.sum(c1 * c1, axis=-1, keepdims=True) +
           jnp.sum(c2 * c2, axis=-1, keepdims=True) +
           jnp.sum(c3 * c3, axis=-1, keepdims=True)) / cnt_t
  scale_t = jax.lax.rsqrt(var_t + BN_EPS) * gamma_t_ref[...]
  bn1 = c1 * scale_t + beta_t_ref[...]
  bn2 = c2 * scale_t + beta_t_ref[...]
  bn3 = c3 * scale_t + beta_t_ref[...]

  # ---- assemble M: rows = (h, t), lanes = (b, p_global) ---------------------
  branch = ((bn1, p1), (bn2, p2), (bn3, p3))

  def height_rows(h):
    pieces = []
    for b in range(batch):
      n = b * height + h
      for bn, pw in branch:                       # branch concat order = torch
        pieces.append(bn[:, n * pw:(n + 1) * pw])
    return jnp.concatenate(pieces, axis=-1)       # (T, batch*ptot)

  m_mat = jnp.concatenate([height_rows(h) for h in range(height)], axis=0)

  # ---- Sceptions: single dots (contraction H*T / HH*T) + ReLU + AvgPool(1,16)
  def s_pool(z):
    # keeps the first 16 of the ptot time columns of every batch segment
    cols = [jnp.mean(z[:, b * ptot:b * ptot + POOL_S], axis=-1, keepdims=True)
            for b in range(batch)]
    return jnp.concatenate(cols, axis=-1)         # (S, batch)

  z1 = jnp.maximum(jnp.dot(ws1_ref[...], m_mat,
                           preferred_element_type=jnp.float32) + bs1_ref[...],
                   0.0)
  slabs = [s_pool(z1)]
  for r in range(height // hh):                   # Sception2 output rows
    blk = m_mat[r * hh * num_t:(r + 1) * hh * num_t, :]
    z2 = jnp.maximum(jnp.dot(ws2_ref[...], blk,
                             preferred_element_type=jnp.float32) + bs2_ref[...],
                     0.0)
    slabs.append(s_pool(z2))

  # ---- BatchNorm2d(num_S): training-mode batch stats ------------------------
  cnt_s = float(batch * len(slabs))
  ssum = jnp.zeros((num_s, 1), jnp.float32)
  for sl in slabs:
    ssum = ssum + jnp.sum(sl, axis=-1, keepdims=True)
  mean_s = ssum / cnt_s
  cent = [sl - mean_s for sl in slabs]
  vsum = jnp.zeros((num_s, 1), jnp.float32)
  for c in cent:
    vsum = vsum + jnp.sum(c * c, axis=-1, keepdims=True)
  scale_s = jax.lax.rsqrt(vsum / cnt_s + BN_EPS) * gamma_s_ref[...]
  normed = [c * scale_s + beta_s_ref[...] for c in cent]

  # ---- fc1 (+ReLU, dropout = identity) and fc2 + LogSoftmax -----------------
  # TODO(synk): stochastic training-mode dropout masking is not implemented.
  feat = jnp.concatenate(normed, axis=0)          # (NH*S, batch), rows = row*S+s
  hid = jnp.maximum(jnp.dot(w1_ref[...], feat,
                            preferred_element_type=jnp.float32) + b1_ref[...],
                    0.0)                          # (HD, batch)
  logits = jnp.dot(w2_ref[...], hid,
                   preferred_element_type=jnp.float32) + b2_ref[...]  # (C, batch)
  mx = jnp.max(logits, axis=0, keepdims=True)
  zc = logits - mx
  lse = jnp.log(jnp.sum(jnp.exp(zc), axis=0, keepdims=True))
  out_ref[...] = (zc - lse).astype(out_ref.dtype)


# ----------------------------- wrapper glue -----------------------------------
def _unfold_stride32(x2, kernel_width, p_out):
  """Stride-32 im2col: q[k, n*p_out + p] = x2[n, p*32 + k] for k < K + 31."""
  n = x2.shape[0]
  kp = kernel_width + POOL_T - 1
  idx = jnp.arange(p_out)[:, None] * POOL_T + jnp.arange(kp)[None, :]  # (p,kp)
  q = x2[:, idx]                                                       # (n,p,kp)
  return jnp.transpose(q, (2, 0, 1)).reshape(kp, n * p_out)


def _expand_t_weight(wt, bt):
  """Fold the 32 in-window shifts into the conv weight rows.

  we[t*32 + r, k'] = wt[t, k' - r] (zero outside [0, K)); be[t*32 + r] = bt[t].
  """
  t, k = wt.shape
  kp = k + POOL_T - 1
  sh = jnp.arange(kp)[None, :] - jnp.arange(POOL_T)[:, None]           # (32,kp)
  gathered = wt[:, jnp.clip(sh, 0, k - 1)]                             # (T,32,kp)
  we = jnp.where((sh >= 0) & (sh < k), gathered, 0.0).reshape(t * POOL_T, kp)
  be = jnp.repeat(bt.reshape(t), POOL_T).reshape(t * POOL_T, 1)
  return we, be


def tsception_forward(x, p):
  """x: (B, 1, NUM_CHANNEL, NUM_DIM) float32 (NCHW, like the PyTorch module)."""
  b = x.shape[0]
  x2 = x.reshape(b * NUM_CHANNEL, NUM_DIM).astype(jnp.float32)

  q1 = _unfold_stride32(x2, K1, P1)
  q2 = _unfold_stride32(x2, K2, P2)
  q3 = _unfold_stride32(x2, K3, P3)
  we1, be1 = _expand_t_weight(p["wT1"].reshape(NUM_T, K1), p["bT1"])
  we2, be2 = _expand_t_weight(p["wT2"].reshape(NUM_T, K2), p["bT2"])
  we3, be3 = _expand_t_weight(p["wT3"].reshape(NUM_T, K3), p["bT3"])

  # Sception weights flattened so the contraction dim is (h, t) / (hh, t).
  ws1 = jnp.transpose(p["wS1"].reshape(NUM_S, NUM_T, NUM_CHANNEL),
                      (0, 2, 1)).reshape(NUM_S, NUM_CHANNEL * NUM_T)
  ws2 = jnp.transpose(p["wS2"].reshape(NUM_S, NUM_T, HH),
                      (0, 2, 1)).reshape(NUM_S, HH * NUM_T)

  # fc1 weight columns reordered from torch flatten order (s, row, w) to the
  # kernel's feature order (row, w, s); fc2 weight (C, HD) is used as-is.
  w1 = jnp.transpose(p["W1"].reshape(HIDDEN, NUM_S, NH, WS),
                     (0, 2, 3, 1)).reshape(HIDDEN, NH * WS * NUM_S)

  inputs = (
      q1, q2, q3,
      we1, we2, we3,
      be1, be2, be3,
      p["gamma_t"].reshape(NUM_T, 1), p["beta_t"].reshape(NUM_T, 1),
      ws1, ws2,
      p["bS1"].reshape(NUM_S, 1), p["bS2"].reshape(NUM_S, 1),
      p["gamma_s"].reshape(NUM_S, 1), p["beta_s"].reshape(NUM_S, 1),
      w1, p["b1"].reshape(HIDDEN, 1),
      p["W2"], p["b2"].reshape(NUM_CLASS, 1),
  )

  kernel = functools.partial(
      tsception_kernel,
      batch=b, height=NUM_CHANNEL, hh=HH,
      num_t=NUM_T, num_s=NUM_S, p1=P1, p2=P2, p3=P3)

  out_cb = pl.pallas_call(
      kernel,
      out_shape=jax.ShapeDtypeStruct((NUM_CLASS, b), jnp.float32),
      in_specs=[pl.BlockSpec(memory_space=pltpu.MemorySpace.VMEM)] * len(inputs),
      out_specs=pl.BlockSpec(memory_space=pltpu.MemorySpace.VMEM),
  )(*inputs)
  # Batch lives on the lane axis inside the kernel; flip the tiny (C, B) block
  # back to the module's (batch, num_class) layout here (pure glue).
  return jnp.transpose(out_cb)


# ----------------------------- deterministic params --------------------------
def init_params(key):
  ks = jax.random.split(key, 14)

  def norm(k, shape, scale):
    return scale * jax.random.normal(k, shape, dtype=jnp.float32)

  p = {}
  p["wT1"] = norm(ks[0], (NUM_T, 1, 1, K1), 1.0 / np.sqrt(K1))
  p["bT1"] = norm(ks[1], (NUM_T,), 0.1)
  p["wT2"] = norm(ks[2], (NUM_T, 1, 1, K2), 1.0 / np.sqrt(K2))
  p["bT2"] = norm(ks[3], (NUM_T,), 0.1)
  p["wT3"] = norm(ks[4], (NUM_T, 1, 1, K3), 1.0 / np.sqrt(K3))
  p["bT3"] = norm(ks[5], (NUM_T,), 0.1)
  p["wS1"] = norm(ks[6], (NUM_S, NUM_T, NUM_CHANNEL, 1),
                  1.0 / np.sqrt(NUM_T * NUM_CHANNEL))
  p["bS1"] = norm(ks[7], (NUM_S,), 0.1)
  p["wS2"] = norm(ks[8], (NUM_S, NUM_T, HH, 1), 1.0 / np.sqrt(NUM_T * HH))
  p["bS2"] = norm(ks[9], (NUM_S,), 0.1)
  p["gamma_t"] = jnp.ones((NUM_T,), jnp.float32)
  p["beta_t"] = jnp.zeros((NUM_T,), jnp.float32)
  p["gamma_s"] = jnp.ones((NUM_S,), jnp.float32)
  p["beta_s"] = jnp.zeros((NUM_S,), jnp.float32)
  p["W1"] = norm(ks[10], (HIDDEN, FEAT), 1.0 / np.sqrt(FEAT))
  p["b1"] = norm(ks[11], (HIDDEN,), 0.1)
  p["W2"] = norm(ks[12], (NUM_CLASS, HIDDEN), 1.0 / np.sqrt(HIDDEN))
  p["b2"] = norm(ks[13], (NUM_CLASS,), 0.1)
  return p


# ----------------------------------- main -------------------------------------
if __name__ == "__main__":
  key = jax.random.PRNGKey(0)
  kx, kparam = jax.random.split(key)
  x = jax.random.normal(kx, (BATCH, 1, NUM_CHANNEL, NUM_DIM), dtype=jnp.float32)
  params = init_params(kparam)

  out = tsception_forward(x, params)
  out = jax.block_until_ready(out)

  assert out.shape == (BATCH, NUM_CLASS)
  assert bool(jnp.all(jnp.isfinite(out)))
  # log-softmax rows must exponentiate to probability distributions
  assert bool(jnp.allclose(jnp.sum(jnp.exp(out), axis=1), 1.0, atol=1e-4))
  print("KERNEL_OK")
</pallas_src>

<mosaic_0001>
module attributes {stable_mosaic.version = 11 : i64} {
  func.func @tsception_kernel(%arg0: memref<95x48xf32, #tpu.memory_space<vmem>>, %arg1: memref<63x56xf32, #tpu.memory_space<vmem>>, %arg2: memref<47x56xf32, #tpu.memory_space<vmem>>, %arg3: memref<256x95xf32, #tpu.memory_space<vmem>>, %arg4: memref<256x63xf32, #tpu.memory_space<vmem>>, %arg5: memref<256x47xf32, #tpu.memory_space<vmem>>, %arg6: memref<256x1xf32, #tpu.memory_space<vmem>>, %arg7: memref<256x1xf32, #tpu.memory_space<vmem>>, %arg8: memref<256x1xf32, #tpu.memory_space<vmem>>, %arg9: memref<8x1xf32, #tpu.memory_space<vmem>>, %arg10: memref<8x1xf32, #tpu.memory_space<vmem>>, %arg11: memref<8x32xf32, #tpu.memory_space<vmem>>, %arg12: memref<8x16xf32, #tpu.memory_space<vmem>>, %arg13: memref<8x1xf32, #tpu.memory_space<vmem>>, %arg14: memref<8x1xf32, #tpu.memory_space<vmem>>, %arg15: memref<8x1xf32, #tpu.memory_space<vmem>>, %arg16: memref<8x1xf32, #tpu.memory_space<vmem>>, %arg17: memref<32x24xf32, #tpu.memory_space<vmem>>, %arg18: memref<32x1xf32, #tpu.memory_space<vmem>>, %arg19: memref<3x32xf32, #tpu.memory_space<vmem>>, %arg20: memref<3x1xf32, #tpu.memory_space<vmem>>, %arg21: memref<3x2xf32, #tpu.memory_space<vmem>>) attributes {dimension_semantics = [], scalar_prefetch = 0 : i64, scratch_operands = 0 : i64, tpu.core_type = #tpu.core_type<tc>} {
    %c0 = arith.constant 0 : index
    %c0_0 = arith.constant 0 : index
    %0 = vector.load %arg3[%c0, %c0_0] : memref<256x95xf32, #tpu.memory_space<vmem>>, vector<256x95xf32>
    %c0_1 = arith.constant 0 : index
    %c0_2 = arith.constant 0 : index
    %1 = vector.load %arg0[%c0_1, %c0_2] : memref<95x48xf32, #tpu.memory_space<vmem>>, vector<95x48xf32>
    %cst = arith.constant dense<0.000000e+00> : vector<256x48xf32>
    %2 = tpu.matmul %0, %1, %cst {dimension_numbers = #tpu.dot_dimension_numbers<[1], [0], [0], [1], [0, 0, 1, 1], [], []>} : vector<256x95xf32>, vector<95x48xf32>, vector<256x48xf32> -> vector<256x48xf32>
    %c0_3 = arith.constant 0 : index
    %c0_4 = arith.constant 0 : index
    %3 = vector.load %arg6[%c0_3, %c0_4] : memref<256x1xf32, #tpu.memory_space<vmem>>, vector<256x1xf32>
    %4 = vector.broadcast %3 : vector<256x1xf32> to vector<256x48xf32>
    %5 = arith.addf %2, %4 : vector<256x48xf32>
    %cst_5 = arith.constant 0.000000e+00 : f32
    %6 = vector.broadcast %cst_5 : f32 to vector<256x48xf32>
    %7 = arith.maximumf %5, %6 : vector<256x48xf32>
    %8 = vector.shape_cast %7 : vector<256x48xf32> to vector<8x32x48xf32>
    %cst_6 = arith.constant dense<0.000000e+00> : vector<8x48xf32>
    %9 = vector.multi_reduction <add>, %8, %cst_6 [1] : vector<8x32x48xf32> to vector<8x48xf32>
    %cst_7 = arith.constant 3.200000e+01 : f32
    %10 = vector.broadcast %cst_7 : f32 to vector<8x48xf32>
    %11 = arith.divf %9, %10 : vector<8x48xf32>
    %c0_8 = arith.constant 0 : index
    %c0_9 = arith.constant 0 : index
    %12 = vector.load %arg4[%c0_8, %c0_9] : memref<256x63xf32, #tpu.memory_space<vmem>>, vector<256x63xf32>
    %c0_10 = arith.constant 0 : index
    %c0_11 = arith.constant 0 : index
    %13 = vector.load %arg1[%c0_10, %c0_11] : memref<63x56xf32, #tpu.memory_space<vmem>>, vector<63x56xf32>
    %cst_12 = arith.constant dense<0.000000e+00> : vector<256x56xf32>
    %14 = tpu.matmul %12, %13, %cst_12 {dimension_numbers = #tpu.dot_dimension_numbers<[1], [0], [0], [1], [0, 0, 1, 1], [], []>} : vector<256x63xf32>, vector<63x56xf32>, vector<256x56xf32> -> vector<256x56xf32>
    %c0_13 = arith.constant 0 : index
    %c0_14 = arith.constant 0 : index
    %15 = vector.load %arg7[%c0_13, %c0_14] : memref<256x1xf32, #tpu.memory_space<vmem>>, vector<256x1xf32>
    %16 = vector.broadcast %15 : vector<256x1xf32> to vector<256x56xf32>
    %17 = arith.addf %14, %16 : vector<256x56xf32>
    %cst_15 = arith.constant 0.000000e+00 : f32
    %18 = vector.broadcast %cst_15 : f32 to vector<256x56xf32>
    %19 = arith.maximumf %17, %18 : vector<256x56xf32>
    %20 = vector.shape_cast %19 : vector<256x56xf32> to vector<8x32x56xf32>
    %cst_16 = arith.constant dense<0.000000e+00> : vector<8x56xf32>
    %21 = vector.multi_reduction <add>, %20, %cst_16 [1] : vector<8x32x56xf32> to vector<8x56xf32>
    %cst_17 = arith.constant 3.200000e+01 : f32
    %22 = vector.broadcast %cst_17 : f32 to vector<8x56xf32>
    %23 = arith.divf %21, %22 : vector<8x56xf32>
    %c0_18 = arith.constant 0 : index
    %c0_19 = arith.constant 0 : index
    %24 = vector.load %arg5[%c0_18, %c0_19] : memref<256x47xf32, #tpu.memory_space<vmem>>, vector<256x47xf32>
    %c0_20 = arith.constant 0 : index
    %c0_21 = arith.constant 0 : index
    %25 = vector.load %arg2[%c0_20, %c0_21] : memref<47x56xf32, #tpu.memory_space<vmem>>, vector<47x56xf32>
    %cst_22 = arith.constant dense<0.000000e+00> : vector<256x56xf32>
    %26 = tpu.matmul %24, %25, %cst_22 {dimension_numbers = #tpu.dot_dimension_numbers<[1], [0], [0], [1], [0, 0, 1, 1], [], []>} : vector<256x47xf32>, vector<47x56xf32>, vector<256x56xf32> -> vector<256x56xf32>
    %c0_23 = arith.constant 0 : index
    %c0_24 = arith.constant 0 : index
    %27 = vector.load %arg8[%c0_23, %c0_24] : memref<256x1xf32, #tpu.memory_space<vmem>>, vector<256x1xf32>
    %28 = vector.broadcast %27 : vector<256x1xf32> to vector<256x56xf32>
    %29 = arith.addf %26, %28 : vector<256x56xf32>
    %cst_25 = arith.constant 0.000000e+00 : f32
    %30 = vector.broadcast %cst_25 : f32 to vector<256x56xf32>
    %31 = arith.maximumf %29, %30 : vector<256x56xf32>
    %32 = vector.shape_cast %31 : vector<256x56xf32> to vector<8x32x56xf32>
    %cst_26 = arith.constant dense<0.000000e+00> : vector<8x56xf32>
    %33 = vector.multi_reduction <add>, %32, %cst_26 [1] : vector<8x32x56xf32> to vector<8x56xf32>
    %cst_27 = arith.constant 3.200000e+01 : f32
    %34 = vector.broadcast %cst_27 : f32 to vector<8x56xf32>
    %35 = arith.divf %33, %34 : vector<8x56xf32>
    %cst_28 = arith.constant dense<0.000000e+00> : vector<8xf32>
    %36 = vector.multi_reduction <add>, %11, %cst_28 [1] : vector<8x48xf32> to vector<8xf32>
    %37 = vector.shape_cast %36 : vector<8xf32> to vector<8x1xf32>
    %cst_29 = arith.constant dense<0.000000e+00> : vector<8xf32>
    %38 = vector.multi_reduction <add>, %23, %cst_29 [1] : vector<8x56xf32> to vector<8xf32>
    %39 = vector.shape_cast %38 : vector<8xf32> to vector<8x1xf32>
    %40 = arith.addf %37, %39 : vector<8x1xf32>
    %cst_30 = arith.constant dense<0.000000e+00> : vector<8xf32>
    %41 = vector.multi_reduction <add>, %35, %cst_30 [1] : vector<8x56xf32> to vector<8xf32>
    %42 = vector.shape_cast %41 : vector<8xf32> to vector<8x1xf32>
    %43 = arith.addf %40, %42 : vector<8x1xf32>
    %cst_31 = arith.constant 1.600000e+02 : f32
    %44 = vector.broadcast %cst_31 : f32 to vector<8x1xf32>
    %45 = arith.divf %43, %44 : vector<8x1xf32>
    %46 = vector.broadcast %45 : vector<8x1xf32> to vector<8x48xf32>
    %47 = arith.subf %11, %46 : vector<8x48xf32>
    %48 = vector.broadcast %45 : vector<8x1xf32> to vector<8x56xf32>
    %49 = arith.subf %23, %48 : vector<8x56xf32>
    %50 = vector.broadcast %45 : vector<8x1xf32> to vector<8x56xf32>
    %51 = arith.subf %35, %50 : vector<8x56xf32>
    %52 = arith.mulf %47, %47 : vector<8x48xf32>
    %cst_32 = arith.constant dense<0.000000e+00> : vector<8xf32>
    %53 = vector.multi_reduction <add>, %52, %cst_32 [1] : vector<8x48xf32> to vector<8xf32>
    %54 = vector.shape_cast %53 : vector<8xf32> to vector<8x1xf32>
    %55 = arith.mulf %49, %49 : vector<8x56xf32>
    %cst_33 = arith.constant dense<0.000000e+00> : vector<8xf32>
    %56 = vector.multi_reduction <add>, %55, %cst_33 [1] : vector<8x56xf32> to vector<8xf32>
    %57 = vector.shape_cast %56 : vector<8xf32> to vector<8x1xf32>
    %58 = arith.addf %54, %57 : vector<8x1xf32>
    %59 = arith.mulf %51, %51 : vector<8x56xf32>
    %cst_34 = arith.constant dense<0.000000e+00> : vector<8xf32>
    %60 = vector.multi_reduction <add>, %59, %cst_34 [1] : vector<8x56xf32> to vector<8xf32>
    %61 = vector.shape_cast %60 : vector<8xf32> to vector<8x1xf32>
    %62 = arith.addf %58, %61 : vector<8x1xf32>
    %cst_35 = arith.constant 1.600000e+02 : f32
    %63 = vector.broadcast %cst_35 : f32 to vector<8x1xf32>
    %64 = arith.divf %62, %63 : vector<8x1xf32>
    %cst_36 = arith.constant 9.99999974E-6 : f32
    %65 = vector.broadcast %cst_36 : f32 to vector<8x1xf32>
    %66 = arith.addf %64, %65 : vector<8x1xf32>
    %67 = math.rsqrt %66 : vector<8x1xf32>
    %c0_37 = arith.constant 0 : index
    %c0_38 = arith.constant 0 : index
    %68 = vector.load %arg9[%c0_37, %c0_38] : memref<8x1xf32, #tpu.memory_space<vmem>>, vector<8x1xf32>
    %69 = arith.mulf %67, %68 : vector<8x1xf32>
    %70 = vector.broadcast %69 : vector<8x1xf32> to vector<8x48xf32>
    %71 = arith.mulf %47, %70 : vector<8x48xf32>
    %c0_39 = arith.constant 0 : index
    %c0_40 = arith.constant 0 : index
    %72 = vector.load %arg10[%c0_39, %c0_40] : memref<8x1xf32, #tpu.memory_space<vmem>>, vector<8x1xf32>
    %73 = vector.broadcast %72 : vector<8x1xf32> to vector<8x48xf32>
    %74 = arith.addf %71, %73 : vector<8x48xf32>
    %75 = vector.broadcast %69 : vector<8x1xf32> to vector<8x56xf32>
    %76 = arith.mulf %49, %75 : vector<8x56xf32>
    %c0_41 = arith.constant 0 : index
    %c0_42 = arith.constant 0 : index
    %77 = vector.load %arg10[%c0_41, %c0_42] : memref<8x1xf32, #tpu.memory_space<vmem>>, vector<8x1xf32>
    %78 = vector.broadcast %77 : vector<8x1xf32> to vector<8x56xf32>
    %79 = arith.addf %76, %78 : vector<8x56xf32>
    %80 = vector.broadcast %69 : vector<8x1xf32> to vector<8x56xf32>
    %81 = arith.mulf %51, %80 : vector<8x56xf32>
    %c0_43 = arith.constant 0 : index
    %c0_44 = arith.constant 0 : index
    %82 = vector.load %arg10[%c0_43, %c0_44] : memref<8x1xf32, #tpu.memory_space<vmem>>, vector<8x1xf32>
    %83 = vector.broadcast %82 : vector<8x1xf32> to vector<8x56xf32>
    %84 = arith.addf %81, %83 : vector<8x56xf32>
    %85 = vector.extract_strided_slice %74 {offsets = [0, 0], sizes = [8, 6], strides = [1, 1]} : vector<8x48xf32> to vector<8x6xf32>
    %86 = vector.extract_strided_slice %79 {offsets = [0, 0], sizes = [8, 7], strides = [1, 1]} : vector<8x56xf32> to vector<8x7xf32>
    %87 = vector.extract_strided_slice %84 {offsets = [0, 0], sizes = [8, 7], strides = [1, 1]} : vector<8x56xf32> to vector<8x7xf32>
    %88 = vector.extract_strided_slice %74 {offsets = [0, 24], sizes = [8, 6], strides = [1, 1]} : vector<8x48xf32> to vector<8x6xf32>
    %89 = vector.extract_strided_slice %79 {offsets = [0, 28], sizes = [8, 7], strides = [1, 1]} : vector<8x56xf32> to vector<8x7xf32>
    %90 = vector.extract_strided_slice %84 {offsets = [0, 28], sizes = [8, 7], strides = [1, 1]} : vector<8x56xf32> to vector<8x7xf32>
    %91 = tpu.concatenate %85, %86, %87, %88, %89, %90 in 1 : vector<8x6xf32>, vector<8x7xf32>, vector<8x7xf32>, vector<8x6xf32>, vector<8x7xf32>, vector<8x7xf32> -> vector<8x40xf32>
    %92 = vector.extract_strided_slice %74 {offsets = [0, 6], sizes = [8, 6], strides = [1, 1]} : vector<8x48xf32> to vector<8x6xf32>
    %93 = vector.extract_strided_slice %79 {offsets = [0, 7], sizes = [8, 7], strides = [1, 1]} : vector<8x56xf32> to vector<8x7xf32>
    %94 = vector.extract_strided_slice %84 {offsets = [0, 7], sizes = [8, 7], strides = [1, 1]} : vector<8x56xf32> to vector<8x7xf32>
    %95 = vector.extract_strided_slice %74 {offsets = [0, 30], sizes = [8, 6], strides = [1, 1]} : vector<8x48xf32> to vector<8x6xf32>
    %96 = vector.extract_strided_slice %79 {offsets = [0, 35], sizes = [8, 7], strides = [1, 1]} : vector<8x56xf32> to vector<8x7xf32>
    %97 = vector.extract_strided_slice %84 {offsets = [0, 35], sizes = [8, 7], strides = [1, 1]} : vector<8x56xf32> to vector<8x7xf32>
    %98 = tpu.concatenate %92, %93, %94, %95, %96, %97 in 1 : vector<8x6xf32>, vector<8x7xf32>, vector<8x7xf32>, vector<8x6xf32>, vector<8x7xf32>, vector<8x7xf32> -> vector<8x40xf32>
    %99 = vector.extract_strided_slice %74 {offsets = [0, 12], sizes = [8, 6], strides = [1, 1]} : vector<8x48xf32> to vector<8x6xf32>
    %100 = vector.extract_strided_slice %79 {offsets = [0, 14], sizes = [8, 7], strides = [1, 1]} : vector<8x56xf32> to vector<8x7xf32>
    %101 = vector.extract_strided_slice %84 {offsets = [0, 14], sizes = [8, 7], strides = [1, 1]} : vector<8x56xf32> to vector<8x7xf32>
    %102 = vector.extract_strided_slice %74 {offsets = [0, 36], sizes = [8, 6], strides = [1, 1]} : vector<8x48xf32> to vector<8x6xf32>
    %103 = vector.extract_strided_slice %79 {offsets = [0, 42], sizes = [8, 7], strides = [1, 1]} : vector<8x56xf32> to vector<8x7xf32>
    %104 = vector.extract_strided_slice %84 {offsets = [0, 42], sizes = [8, 7], strides = [1, 1]} : vector<8x56xf32> to vector<8x7xf32>
    %105 = tpu.concatenate %99, %100, %101, %102, %103, %104 in 1 : vector<8x6xf32>, vector<8x7xf32>, vector<8x7xf32>, vector<8x6xf32>, vector<8x7xf32>, vector<8x7xf32> -> vector<8x40xf32>
    %106 = vector.extract_strided_slice %74 {offsets = [0, 18], sizes = [8, 6], strides = [1, 1]} : vector<8x48xf32> to vector<8x6xf32>
    %107 = vector.extract_strided_slice %79 {offsets = [0, 21], sizes = [8, 7], strides = [1, 1]} : vector<8x56xf32> to vector<8x7xf32>
    %108 = vector.extract_strided_slice %84 {offsets = [0, 21], sizes = [8, 7], strides = [1, 1]} : vector<8x56xf32> to vector<8x7xf32>
    %109 = vector.extract_strided_slice %74 {offsets = [0, 42], sizes = [8, 6], strides = [1, 1]} : vector<8x48xf32> to vector<8x6xf32>
    %110 = vector.extract_strided_slice %79 {offsets = [0, 49], sizes = [8, 7], strides = [1, 1]} : vector<8x56xf32> to vector<8x7xf32>
    %111 = vector.extract_strided_slice %84 {offsets = [0, 49], sizes = [8, 7], strides = [1, 1]} : vector<8x56xf32> to vector<8x7xf32>
    %112 = tpu.concatenate %106, %107, %108, %109, %110, %111 in 1 : vector<8x6xf32>, vector<8x7xf32>, vector<8x7xf32>, vector<8x6xf32>, vector<8x7xf32>, vector<8x7xf32> -> vector<8x40xf32>
    %113 = tpu.concatenate %91, %98, %105, %112 in 0 : vector<8x40xf32>, vector<8x40xf32>, vector<8x40xf32>, vector<8x40xf32> -> vector<32x40xf32>
    %c0_45 = arith.constant 0 : index
    %c0_46 = arith.constant 0 : index
    %114 = vector.load %arg11[%c0_45, %c0_46] : memref<8x32xf32, #tpu.memory_space<vmem>>, vector<8x32xf32>
    %cst_47 = arith.constant dense<0.000000e+00> : vector<8x40xf32>
    %115 = tpu.matmul %114, %113, %cst_47 {dimension_numbers = #tpu.dot_dimension_numbers<[1], [0], [0], [1], [0, 0, 1, 1], [], []>} : vector<8x32xf32>, vector<32x40xf32>, vector<8x40xf32> -> vector<8x40xf32>
    %c0_48 = arith.constant 0 : index
    %c0_49 = arith.constant 0 : index
    %116 = vector.load %arg13[%c0_48, %c0_49] : memref<8x1xf32, #tpu.memory_space<vmem>>, vector<8x1xf32>
    %117 = vector.broadcast %116 : vector<8x1xf32> to vector<8x40xf32>
    %118 = arith.addf %115, %117 : vector<8x40xf32>
    %cst_50 = arith.constant 0.000000e+00 : f32
    %119 = vector.broadcast %cst_50 : f32 to vector<8x40xf32>
    %120 = arith.maximumf %118, %119 : vector<8x40xf32>
    %121 = vector.extract_strided_slice %120 {offsets = [0, 0], sizes = [8, 16], strides = [1, 1]} : vector<8x40xf32> to vector<8x16xf32>
    %cst_51 = arith.constant dense<0.000000e+00> : vector<8xf32>
    %122 = vector.multi_reduction <add>, %121, %cst_51 [1] : vector<8x16xf32> to vector<8xf32>
    %123 = vector.shape_cast %122 : vector<8xf32> to vector<8x1xf32>
    %cst_52 = arith.constant 1.600000e+01 : f32
    %124 = vector.broadcast %cst_52 : f32 to vector<8x1xf32>
    %125 = arith.divf %123, %124 : vector<8x1xf32>
    %126 = vector.extract_strided_slice %120 {offsets = [0, 20], sizes = [8, 16], strides = [1, 1]} : vector<8x40xf32> to vector<8x16xf32>
    %cst_53 = arith.constant dense<0.000000e+00> : vector<8xf32>
    %127 = vector.multi_reduction <add>, %126, %cst_53 [1] : vector<8x16xf32> to vector<8xf32>
    %128 = vector.shape_cast %127 : vector<8xf32> to vector<8x1xf32>
    %cst_54 = arith.constant 1.600000e+01 : f32
    %129 = vector.broadcast %cst_54 : f32 to vector<8x1xf32>
    %130 = arith.divf %128, %129 : vector<8x1xf32>
    %131 = tpu.concatenate %125, %130 in 1 : vector<8x1xf32>, vector<8x1xf32> -> vector<8x2xf32>
    %132 = vector.extract_strided_slice %113 {offsets = [0, 0], sizes = [16, 40], strides = [1, 1]} : vector<32x40xf32> to vector<16x40xf32>
    %c0_55 = arith.constant 0 : index
    %c0_56 = arith.constant 0 : index
    %133 = vector.load %arg12[%c0_55, %c0_56] : memref<8x16xf32, #tpu.memory_space<vmem>>, vector<8x16xf32>
    %cst_57 = arith.constant dense<0.000000e+00> : vector<8x40xf32>
    %134 = tpu.matmul %133, %132, %cst_57 {dimension_numbers = #tpu.dot_dimension_numbers<[1], [0], [0], [1], [0, 0, 1, 1], [], []>} : vector<8x16xf32>, vector<16x40xf32>, vector<8x40xf32> -> vector<8x40xf32>
    %c0_58 = arith.constant 0 : index
    %c0_59 = arith.constant 0 : index
    %135 = vector.load %arg14[%c0_58, %c0_59] : memref<8x1xf32, #tpu.memory_space<vmem>>, vector<8x1xf32>
    %136 = vector.broadcast %135 : vector<8x1xf32> to vector<8x40xf32>
    %137 = arith.addf %134, %136 : vector<8x40xf32>
    %cst_60 = arith.constant 0.000000e+00 : f32
    %138 = vector.broadcast %cst_60 : f32 to vector<8x40xf32>
    %139 = arith.maximumf %137, %138 : vector<8x40xf32>
    %140 = vector.extract_strided_slice %139 {offsets = [0, 0], sizes = [8, 16], strides = [1, 1]} : vector<8x40xf32> to vector<8x16xf32>
    %cst_61 = arith.constant dense<0.000000e+00> : vector<8xf32>
    %141 = vector.multi_reduction <add>, %140, %cst_61 [1] : vector<8x16xf32> to vector<8xf32>
    %142 = vector.shape_cast %141 : vector<8xf32> to vector<8x1xf32>
    %cst_62 = arith.constant 1.600000e+01 : f32
    %143 = vector.broadcast %cst_62 : f32 to vector<8x1xf32>
    %144 = arith.divf %142, %143 : vector<8x1xf32>
    %145 = vector.extract_strided_slice %139 {offsets = [0, 20], sizes = [8, 16], strides = [1, 1]} : vector<8x40xf32> to vector<8x16xf32>
    %cst_63 = arith.constant dense<0.000000e+00> : vector<8xf32>
    %146 = vector.multi_reduction <add>, %145, %cst_63 [1] : vector<8x16xf32> to vector<8xf32>
    %147 = vector.shape_cast %146 : vector<8xf32> to vector<8x1xf32>
    %cst_64 = arith.constant 1.600000e+01 : f32
    %148 = vector.broadcast %cst_64 : f32 to vector<8x1xf32>
    %149 = arith.divf %147, %148 : vector<8x1xf32>
    %150 = tpu.concatenate %144, %149 in 1 : vector<8x1xf32>, vector<8x1xf32> -> vector<8x2xf32>
    %151 = vector.extract_strided_slice %113 {offsets = [16, 0], sizes = [16, 40], strides = [1, 1]} : vector<32x40xf32> to vector<16x40xf32>
    %c0_65 = arith.constant 0 : index
    %c0_66 = arith.constant 0 : index
    %152 = vector.load %arg12[%c0_65, %c0_66] : memref<8x16xf32, #tpu.memory_space<vmem>>, vector<8x16xf32>
    %cst_67 = arith.constant dense<0.000000e+00> : vector<8x40xf32>
    %153 = tpu.matmul %152, %151, %cst_67 {dimension_numbers = #tpu.dot_dimension_numbers<[1], [0], [0], [1], [0, 0, 1, 1], [], []>} : vector<8x16xf32>, vector<16x40xf32>, vector<8x40xf32> -> vector<8x40xf32>
    %c0_68 = arith.constant 0 : index
    %c0_69 = arith.constant 0 : index
    %154 = vector.load %arg14[%c0_68, %c0_69] : memref<8x1xf32, #tpu.memory_space<vmem>>, vector<8x1xf32>
    %155 = vector.broadcast %154 : vector<8x1xf32> to vector<8x40xf32>
    %156 = arith.addf %153, %155 : vector<8x40xf32>
    %cst_70 = arith.constant 0.000000e+00 : f32
    %157 = vector.broadcast %cst_70 : f32 to vector<8x40xf32>
    %158 = arith.maximumf %156, %157 : vector<8x40xf32>
    %159 = vector.extract_strided_slice %158 {offsets = [0, 0], sizes = [8, 16], strides = [1, 1]} : vector<8x40xf32> to vector<8x16xf32>
    %cst_71 = arith.constant dense<0.000000e+00> : vector<8xf32>
    %160 = vector.multi_reduction <add>, %159, %cst_71 [1] : vector<8x16xf32> to vector<8xf32>
    %161 = vector.shape_cast %160 : vector<8xf32> to vector<8x1xf32>
    %cst_72 = arith.constant 1.600000e+01 : f32
    %162 = vector.broadcast %cst_72 : f32 to vector<8x1xf32>
    %163 = arith.divf %161, %162 : vector<8x1xf32>
    %164 = vector.extract_strided_slice %158 {offsets = [0, 20], sizes = [8, 16], strides = [1, 1]} : vector<8x40xf32> to vector<8x16xf32>
    %cst_73 = arith.constant dense<0.000000e+00> : vector<8xf32>
    %165 = vector.multi_reduction <add>, %164, %cst_73 [1] : vector<8x16xf32> to vector<8xf32>
    %166 = vector.shape_cast %165 : vector<8xf32> to vector<8x1xf32>
    %cst_74 = arith.constant 1.600000e+01 : f32
    %167 = vector.broadcast %cst_74 : f32 to vector<8x1xf32>
    %168 = arith.divf %166, %167 : vector<8x1xf32>
    %169 = tpu.concatenate %163, %168 in 1 : vector<8x1xf32>, vector<8x1xf32> -> vector<8x2xf32>
    %cst_75 = arith.constant 0.000000e+00 : f32
    %170 = vector.broadcast %cst_75 : f32 to vector<8x1xf32>
    %cst_76 = arith.constant dense<0.000000e+00> : vector<8xf32>
    %171 = vector.multi_reduction <add>, %131, %cst_76 [1] : vector<8x2xf32> to vector<8xf32>
    %172 = vector.shape_cast %171 : vector<8xf32> to vector<8x1xf32>
    %173 = arith.addf %170, %172 : vector<8x1xf32>
    %cst_77 = arith.constant dense<0.000000e+00> : vector<8xf32>
    %174 = vector.multi_reduction <add>, %150, %cst_77 [1] : vector<8x2xf32> to vector<8xf32>
    %175 = vector.shape_cast %174 : vector<8xf32> to vector<8x1xf32>
    %176 = arith.addf %173, %175 : vector<8x1xf32>
    %cst_78 = arith.constant dense<0.000000e+00> : vector<8xf32>
    %177 = vector.multi_reduction <add>, %169, %cst_78 [1] : vector<8x2xf32> to vector<8xf32>
    %178 = vector.shape_cast %177 : vector<8xf32> to vector<8x1xf32>
    %179 = arith.addf %176, %178 : vector<8x1xf32>
    %cst_79 = arith.constant 6.000000e+00 : f32
    %180 = vector.broadcast %cst_79 : f32 to vector<8x1xf32>
    %181 = arith.divf %179, %180 : vector<8x1xf32>
    %182 = vector.broadcast %181 : vector<8x1xf32> to vector<8x2xf32>
    %183 = arith.subf %131, %182 : vector<8x2xf32>
    %184 = vector.broadcast %181 : vector<8x1xf32> to vector<8x2xf32>
    %185 = arith.subf %150, %184 : vector<8x2xf32>
    %186 = vector.broadcast %181 : vector<8x1xf32> to vector<8x2xf32>
    %187 = arith.subf %169, %186 : vector<8x2xf32>
    %cst_80 = arith.constant 0.000000e+00 : f32
    %188 = vector.broadcast %cst_80 : f32 to vector<8x1xf32>
    %189 = arith.mulf %183, %183 : vector<8x2xf32>
    %cst_81 = arith.constant dense<0.000000e+00> : vector<8xf32>
    %190 = vector.multi_reduction <add>, %189, %cst_81 [1] : vector<8x2xf32> to vector<8xf32>
    %191 = vector.shape_cast %190 : vector<8xf32> to vector<8x1xf32>
    %192 = arith.addf %188, %191 : vector<8x1xf32>
    %193 = arith.mulf %185, %185 : vector<8x2xf32>
    %cst_82 = arith.constant dense<0.000000e+00> : vector<8xf32>
    %194 = vector.multi_reduction <add>, %193, %cst_82 [1] : vector<8x2xf32> to vector<8xf32>
    %195 = vector.shape_cast %194 : vector<8xf32> to vector<8x1xf32>
    %196 = arith.addf %192, %195 : vector<8x1xf32>
    %197 = arith.mulf %187, %187 : vector<8x2xf32>
    %cst_83 = arith.constant dense<0.000000e+00> : vector<8xf32>
    %198 = vector.multi_reduction <add>, %197, %cst_83 [1] : vector<8x2xf32> to vector<8xf32>
    %199 = vector.shape_cast %198 : vector<8xf32> to vector<8x1xf32>
    %200 = arith.addf %196, %199 : vector<8x1xf32>
    %cst_84 = arith.constant 6.000000e+00 : f32
    %201 = vector.broadcast %cst_84 : f32 to vector<8x1xf32>
    %202 = arith.divf %200, %201 : vector<8x1xf32>
    %cst_85 = arith.constant 9.99999974E-6 : f32
    %203 = vector.broadcast %cst_85 : f32 to vector<8x1xf32>
    %204 = arith.addf %202, %203 : vector<8x1xf32>
    %205 = math.rsqrt %204 : vector<8x1xf32>
    %c0_86 = arith.constant 0 : index
    %c0_87 = arith.constant 0 : index
    %206 = vector.load %arg15[%c0_86, %c0_87] : memref<8x1xf32, #tpu.memory_space<vmem>>, vector<8x1xf32>
    %207 = arith.mulf %205, %206 : vector<8x1xf32>
    %208 = vector.broadcast %207 : vector<8x1xf32> to vector<8x2xf32>
    %209 = arith.mulf %183, %208 : vector<8x2xf32>
    %c0_88 = arith.constant 0 : index
    %c0_89 = arith.constant 0 : index
    %210 = vector.load %arg16[%c0_88, %c0_89] : memref<8x1xf32, #tpu.memory_space<vmem>>, vector<8x1xf32>
    %211 = vector.broadcast %210 : vector<8x1xf32> to vector<8x2xf32>
    %212 = arith.addf %209, %211 : vector<8x2xf32>
    %213 = vector.broadcast %207 : vector<8x1xf32> to vector<8x2xf32>
    %214 = arith.mulf %185, %213 : vector<8x2xf32>
    %c0_90 = arith.constant 0 : index
    %c0_91 = arith.constant 0 : index
    %215 = vector.load %arg16[%c0_90, %c0_91] : memref<8x1xf32, #tpu.memory_space<vmem>>, vector<8x1xf32>
    %216 = vector.broadcast %215 : vector<8x1xf32> to vector<8x2xf32>
    %217 = arith.addf %214, %216 : vector<8x2xf32>
    %218 = vector.broadcast %207 : vector<8x1xf32> to vector<8x2xf32>
    %219 = arith.mulf %187, %218 : vector<8x2xf32>
    %c0_92 = arith.constant 0 : index
    %c0_93 = arith.constant 0 : index
    %220 = vector.load %arg16[%c0_92, %c0_93] : memref<8x1xf32, #tpu.memory_space<vmem>>, vector<8x1xf32>
    %221 = vector.broadcast %220 : vector<8x1xf32> to vector<8x2xf32>
    %222 = arith.addf %219, %221 : vector<8x2xf32>
    %223 = tpu.concatenate %212, %217, %222 in 0 : vector<8x2xf32>, vector<8x2xf32>, vector<8x2xf32> -> vector<24x2xf32>
    %c0_94 = arith.constant 0 : index
    %c0_95 = arith.constant 0 : index
    %224 = vector.load %arg17[%c0_94, %c0_95] : memref<32x24xf32, #tpu.memory_space<vmem>>, vector<32x24xf32>
    %cst_96 = arith.constant dense<0.000000e+00> : vector<32x2xf32>
    %225 = tpu.matmul %224, %223, %cst_96 {dimension_numbers = #tpu.dot_dimension_numbers<[1], [0], [0], [1], [0, 0, 1, 1], [], []>} : vector<32x24xf32>, vector<24x2xf32>, vector<32x2xf32> -> vector<32x2xf32>
    %c0_97 = arith.constant 0 : index
    %c0_98 = arith.constant 0 : index
    %226 = vector.load %arg18[%c0_97, %c0_98] : memref<32x1xf32, #tpu.memory_space<vmem>>, vector<32x1xf32>
    %227 = vector.broadcast %226 : vector<32x1xf32> to vector<32x2xf32>
    %228 = arith.addf %225, %227 : vector<32x2xf32>
    %cst_99 = arith.constant 0.000000e+00 : f32
    %229 = vector.broadcast %cst_99 : f32 to vector<32x2xf32>
    %230 = arith.maximumf %228, %229 : vector<32x2xf32>
    %c0_100 = arith.constant 0 : index
    %c0_101 = arith.constant 0 : index
    %231 = vector.load %arg19[%c0_100, %c0_101] : memref<3x32xf32, #tpu.memory_space<vmem>>, vector<3x32xf32>
    %cst_102 = arith.constant dense<0.000000e+00> : vector<3x2xf32>
    %232 = tpu.matmul %231, %230, %cst_102 {dimension_numbers = #tpu.dot_dimension_numbers<[1], [0], [0], [1], [0, 0, 1, 1], [], []>} : vector<3x32xf32>, vector<32x2xf32>, vector<3x2xf32> -> vector<3x2xf32>
    %c0_103 = arith.constant 0 : index
    %c0_104 = arith.constant 0 : index
    %233 = vector.load %arg20[%c0_103, %c0_104] : memref<3x1xf32, #tpu.memory_space<vmem>>, vector<3x1xf32>
    %234 = vector.broadcast %233 : vector<3x1xf32> to vector<3x2xf32>
    %235 = arith.addf %232, %234 : vector<3x2xf32>
    %cst_105 = arith.constant dense<0xFF800000> : vector<2xf32>
    %236 = vector.multi_reduction <maximumf>, %235, %cst_105 [0] : vector<3x2xf32> to vector<2xf32>
    %237 = vector.shape_cast %236 : vector<2xf32> to vector<1x2xf32>
    %238 = vector.broadcast %237 : vector<1x2xf32> to vector<3x2xf32>
    %239 = arith.subf %235, %238 : vector<3x2xf32>
    %240 = math.exp %239 : vector<3x2xf32>
    %cst_106 = arith.constant dense<0.000000e+00> : vector<2xf32>
    %241 = vector.multi_reduction <add>, %240, %cst_106 [0] : vector<3x2xf32> to vector<2xf32>
    %242 = vector.shape_cast %241 : vector<2xf32> to vector<1x2xf32>
    %243 = math.log %242 : vector<1x2xf32>
    %244 = vector.broadcast %243 : vector<1x2xf32> to vector<3x2xf32>
    %245 = arith.subf %239, %244 : vector<3x2xf32>
    %c0_107 = arith.constant 0 : index
    %c0_108 = arith.constant 0 : index
    %246 = vector.load %arg21[%c0_107, %c0_108] : memref<3x2xf32, #tpu.memory_space<vmem>>, vector<3x2xf32>
    tpu.vector_store %arg21[%c0_107, %c0_108], %245 {strides = array<i32>} : memref<3x2xf32, #tpu.memory_space<vmem>>, vector<3x2xf32>,
    return
  }
}

</mosaic_0001>

<llo_original>
// kernel: tpu_custom_call.1
$region0: #{tpu_custom_call.1}
  #allocation0 [shape = 'u32[]', space=smem, size = 0x4, offset = 0x4, fixed_abs, tag = 'smem constant byte address 0x4 - core index']
  #allocation1 [shape = 'u32[144,128]{1,0:T(1,128)}', space=vmem, size = 0x12000, scoped, tag = 'internal scratch']
  %s0 = inlined_call_operand.vmem [shape: f32[95,48], index: 0, kind: input, shape index: {}]
  %s1 = inlined_call_operand.vmem [shape: f32[63,56], index: 1, kind: input, shape index: {}]
  %s2 = inlined_call_operand.vmem [shape: f32[47,56], index: 2, kind: input, shape index: {}]
  %s3 = inlined_call_operand.vmem [shape: f32[256,95], index: 3, kind: input, shape index: {}]
  %s4 = inlined_call_operand.vmem [shape: f32[256,63], index: 4, kind: input, shape index: {}]
  %s5 = inlined_call_operand.vmem [shape: f32[256,47], index: 5, kind: input, shape index: {}]
  %s6 = inlined_call_operand.vmem [shape: f32[256,1], index: 6, kind: input, shape index: {}]
  %s7 = inlined_call_operand.vmem [shape: f32[256,1], index: 7, kind: input, shape index: {}]
  %s8 = inlined_call_operand.vmem [shape: f32[256,1], index: 8, kind: input, shape index: {}]
  %s9 = inlined_call_operand.vmem [shape: f32[8,1], index: 9, kind: input, shape index: {}]
  %s10 = inlined_call_operand.vmem [shape: f32[8,1], index: 10, kind: input, shape index: {}]
  %s11 = inlined_call_operand.vmem [shape: f32[8,32], index: 11, kind: input, shape index: {}]
  %s12 = inlined_call_operand.vmem [shape: f32[8,16], index: 12, kind: input, shape index: {}]
  %s13 = inlined_call_operand.vmem [shape: f32[8,1], index: 13, kind: input, shape index: {}]
  %s14 = inlined_call_operand.vmem [shape: f32[8,1], index: 14, kind: input, shape index: {}]
  %s15 = inlined_call_operand.vmem [shape: f32[8,1], index: 15, kind: input, shape index: {}]
  %s16 = inlined_call_operand.vmem [shape: f32[8,1], index: 16, kind: input, shape index: {}]
  %s17 = inlined_call_operand.vmem [shape: f32[32,24], index: 17, kind: input, shape index: {}]
  %s18 = inlined_call_operand.vmem [shape: f32[32,1], index: 18, kind: input, shape index: {}]
  %s19 = inlined_call_operand.vmem [shape: f32[3,32], index: 19, kind: input, shape index: {}]
  %s20 = inlined_call_operand.vmem [shape: f32[3,1], index: 20, kind: input, shape index: {}]
  %s21 = inlined_call_operand.vmem [shape: f32[3,2], index: 21, kind: output, shape index: {}]
  %s22 = sld [smem:[#allocation0]]
  $region94: #{tpu_custom_call.1} parent=0
    _
  %s24 = ssub.s32 1, %s22
  %s25 = scalar_select 0, %s24, %s22
  // Predicated region
  $region2: #{tpu_custom_call.1} parent=0 // pred_check
    _
  $region3: #{tpu_custom_call.1} parent=0 // pred_check_branch
    %27 = sbr.rel (0) target = $region5
  $region4: #{tpu_custom_call.1} parent=0 // pred_region
    _
  $region5: #{tpu_custom_call.1} parent=0 // pred_fallthru
    _
  // Predicated region
  $region6: #{tpu_custom_call.1} parent=0 // pred_check
    _
  $region7: #{tpu_custom_call.1} parent=0 // pred_check_branch
    %29 = sbr.rel (0) target = $region9
  $region8: #{tpu_custom_call.1} parent=0 // pred_region
    _
  $region9: #{tpu_custom_call.1} parent=0 // pred_fallthru
    _
  // Predicated region
  $region10: #{tpu_custom_call.1} parent=0 // pred_check
    _
  $region11: #{tpu_custom_call.1} parent=0 // pred_check_branch
    %31 = sbr.rel (0) target = $region13
  $region12: #{tpu_custom_call.1} parent=0 // pred_region
    _
  $region13: #{tpu_custom_call.1} parent=0 // pred_fallthru
    _
  // Predicated region
  $region14: #{tpu_custom_call.1} parent=0 // pred_check
    _
  $region15: #{tpu_custom_call.1} parent=0 // pred_check_branch
    %33 = sbr.rel (0) target = $region17
  $region16: #{tpu_custom_call.1} parent=0 // pred_region
    _
  $region17: #{tpu_custom_call.1} parent=0 // pred_fallthru
    _
  // Predicated region
  $region18: #{tpu_custom_call.1} parent=0 // pred_check
    _
  $region19: #{tpu_custom_call.1} parent=0 // pred_check_branch
    %35 = sbr.rel (0) target = $region21
  $region20: #{tpu_custom_call.1} parent=0 // pred_region
    _
  $region21: #{tpu_custom_call.1} parent=0 // pred_fallthru
    _
  // Predicated region
  $region22: #{tpu_custom_call.1} parent=0 // pred_check
    _
  $region23: #{tpu_custom_call.1} parent=0 // pred_check_branch
    %37 = sbr.rel (0) target = $region25
  $region24: #{tpu_custom_call.1} parent=0 // pred_region
    _
  $region25: #{tpu_custom_call.1} parent=0 // pred_fallthru
    _
  // Predicated region
  $region26: #{tpu_custom_call.1} parent=0 // pred_check
    _
  $region27: #{tpu_custom_call.1} parent=0 // pred_check_branch
    %39 = sbr.rel (0) target = $region29
  $region28: #{tpu_custom_call.1} parent=0 // pred_region
    _
  $region29: #{tpu_custom_call.1} parent=0 // pred_fallthru
    _
  // Predicated region
  $region30: #{tpu_custom_call.1} parent=0 // pred_check
    _
  $region31: #{tpu_custom_call.1} parent=0 // pred_check_branch
    %41 = sbr.rel (0) target = $region33
  $region32: #{tpu_custom_call.1} parent=0 // pred_region
    _
  $region33: #{tpu_custom_call.1} parent=0 // pred_fallthru
    _
  // Predicated region
  $region34: #{tpu_custom_call.1} parent=0 // pred_check
    _
  $region35: #{tpu_custom_call.1} parent=0 // pred_check_branch
    %43 = sbr.rel (0) target = $region37
  $region36: #{tpu_custom_call.1} parent=0 // pred_region
    _
  $region37: #{tpu_custom_call.1} parent=0 // pred_fallthru
    _
  // Predicated region
  $region38: #{tpu_custom_call.1} parent=0 // pred_check
    _
  $region39: #{tpu_custom_call.1} parent=0 // pred_check_branch
    %45 = sbr.rel (0) target = $region41
  $region40: #{tpu_custom_call.1} parent=0 // pred_region
    _
  $region41: #{tpu_custom_call.1} parent=0 // pred_fallthru
    _
  // Predicated region
  $region42: #{tpu_custom_call.1} parent=0 // pred_check
    _
  $region43: #{tpu_custom_call.1} parent=0 // pred_check_branch
    %47 = sbr.rel (0) target = $region45
  $region44: #{tpu_custom_call.1} parent=0 // pred_region
    _
  $region45: #{tpu_custom_call.1} parent=0 // pred_fallthru
    _
  // Predicated region
  $region46: #{tpu_custom_call.1} parent=0 // pred_check
    _
  $region47: #{tpu_custom_call.1} parent=0 // pred_check_branch
    %49 = sbr.rel (0) target = $region49
  $region48: #{tpu_custom_call.1} parent=0 // pred_region
    _
  $region49: #{tpu_custom_call.1} parent=0 // pred_fallthru
    _
  // Predicated region
  $region50: #{tpu_custom_call.1} parent=0 // pred_check
    _
  $region51: #{tpu_custom_call.1} parent=0 // pred_check_branch
    %51 = sbr.rel (0) target = $region53
  $region52: #{tpu_custom_call.1} parent=0 // pred_region
    _
  $region53: #{tpu_custom_call.1} parent=0 // pred_fallthru
    _
  // Predicated region
  $region54: #{tpu_custom_call.1} parent=0 // pred_check
    _
  $region55: #{tpu_custom_call.1} parent=0 // pred_check_branch
    %53 = sbr.rel (0) target = $region57
  $region56: #{tpu_custom_call.1} parent=0 // pred_region
    _
  $region57: #{tpu_custom_call.1} parent=0 // pred_fallthru
    _
  // Predicated region
  $region58: #{tpu_custom_call.1} parent=0 // pred_check
    _
  $region59: #{tpu_custom_call.1} parent=0 // pred_check_branch
    %55 = sbr.rel (0) target = $region61
  $region60: #{tpu_custom_call.1} parent=0 // pred_region
    _
  $region61: #{tpu_custom_call.1} parent=0 // pred_fallthru
    _
  // Predicated region
  $region62: #{tpu_custom_call.1} parent=0 // pred_check
    _
  $region63: #{tpu_custom_call.1} parent=0 // pred_check_branch
    %57 = sbr.rel (0) target = $region65
  $region64: #{tpu_custom_call.1} parent=0 // pred_region
    _
  $region65: #{tpu_custom_call.1} parent=0 // pred_fallthru
    _
  // Predicated region
  $region66: #{tpu_custom_call.1} parent=0 // pred_check
    _
  $region67: #{tpu_custom_call.1} parent=0 // pred_check_branch
    %59 = sbr.rel (0) target = $region69
  $region68: #{tpu_custom_call.1} parent=0 // pred_region
    _
  $region69: #{tpu_custom_call.1} parent=0 // pred_fallthru
    _
  // Predicated region
  $region70: #{tpu_custom_call.1} parent=0 // pred_check
    _
  $region71: #{tpu_custom_call.1} parent=0 // pred_check_branch
    %61 = sbr.rel (0) target = $region73
  $region72: #{tpu_custom_call.1} parent=0 // pred_region
    _
  $region73: #{tpu_custom_call.1} parent=0 // pred_fallthru
    _
  // Predicated region
  $region74: #{tpu_custom_call.1} parent=0 // pred_check
    _
  $region75: #{tpu_custom_call.1} parent=0 // pred_check_branch
    %63 = sbr.rel (0) target = $region77
  $region76: #{tpu_custom_call.1} parent=0 // pred_region
    _
  $region77: #{tpu_custom_call.1} parent=0 // pred_fallthru
    _
  // Predicated region
  $region78: #{tpu_custom_call.1} parent=0 // pred_check
    _
  $region79: #{tpu_custom_call.1} parent=0 // pred_check_branch
    %65 = sbr.rel (0) target = $region81
  $region80: #{tpu_custom_call.1} parent=0 // pred_region
    _
  $region81: #{tpu_custom_call.1} parent=0 // pred_fallthru
    _
  // Predicated region
  $region82: #{tpu_custom_call.1} parent=0 // pred_check
    _
  $region83: #{tpu_custom_call.1} parent=0 // pred_check_branch
    %67 = sbr.rel (0) target = $region85
  $region84: #{tpu_custom_call.1} parent=0 // pred_region
    _
  $region85: #{tpu_custom_call.1} parent=0 // pred_fallthru
    _
  %v68 = vld [vmem:[%s3] sm:$0xff]
  %v69 = vld [vmem:[%s3 + $0x8] sm:$0xff]
  %v70 = vld [vmem:[%s3 + $0x10] sm:$0xff]
  %v71 = vld [vmem:[%s3 + $0x18] sm:$0xff]
  %v72 = vld [vmem:[%s3 + $0x20] sm:$0xff]
  %v73 = vld [vmem:[%s3 + $0x28] sm:$0xff]
  %v74 = vld [vmem:[%s3 + $0x30] sm:$0xff]
  %v75 = vld [vmem:[%s3 + $0x38] sm:$0xff]
  %v76 = vld [vmem:[%s3 + $0x40] sm:$0xff]
  %v77 = vld [vmem:[%s3 + $0x48] sm:$0xff]
  %v78 = vld [vmem:[%s3 + $0x50] sm:$0xff]
  %v79 = vld [vmem:[%s3 + $0x58] sm:$0xff]
  %v80 = vld [vmem:[%s3 + $0x60] sm:$0xff]
  %v81 = vld [vmem:[%s3 + $0x68] sm:$0xff]
  %v82 = vld [vmem:[%s3 + $0x70] sm:$0xff]
  %v83 = vld [vmem:[%s3 + $0x78] sm:$0xff]
  %v84 = vld [vmem:[%s3 + $0x80] sm:$0xff]
  %v85 = vld [vmem:[%s3 + $0x88] sm:$0xff]
  %v86 = vld [vmem:[%s3 + $0x90] sm:$0xff]
  %v87 = vld [vmem:[%s3 + $0x98] sm:$0xff]
  %v88 = vld [vmem:[%s3 + $0xa0] sm:$0xff]
  %v89 = vld [vmem:[%s3 + $0xa8] sm:$0xff]
  %v90 = vld [vmem:[%s3 + $0xb0] sm:$0xff]
  %v91 = vld [vmem:[%s3 + $0xb8] sm:$0xff]
  %v92 = vld [vmem:[%s3 + $0xc0] sm:$0xff]
  %v93 = vld [vmem:[%s3 + $0xc8] sm:$0xff]
  %v94 = vld [vmem:[%s3 + $0xd0] sm:$0xff]
  %v95 = vld [vmem:[%s3 + $0xd8] sm:$0xff]
  %v96 = vld [vmem:[%s3 + $0xe0] sm:$0xff]
  %v97 = vld [vmem:[%s3 + $0xe8] sm:$0xff]
  %v98 = vld [vmem:[%s3 + $0xf0] sm:$0xff]
  %v99 = vld [vmem:[%s3 + $0xf8] sm:$0xff]
  %v100 = vld [vmem:[%s0] sm:$0xff]
  %v101 = vld [vmem:[%s0 + $0x8] sm:$0xff]
  %v102 = vld [vmem:[%s0 + $0x10] sm:$0xff]
  %v103 = vld [vmem:[%s0 + $0x18] sm:$0xff]
  %v104 = vld [vmem:[%s0 + $0x20] sm:$0xff]
  %v105 = vld [vmem:[%s0 + $0x28] sm:$0xff]
  %v106 = vld [vmem:[%s0 + $0x30] sm:$0xff]
  %v107 = vld [vmem:[%s0 + $0x38] sm:$0xff]
  %v108 = vld [vmem:[%s0 + $0x40] sm:$0xff]
  %v109 = vld [vmem:[%s0 + $0x48] sm:$0xff]
  %v110 = vld [vmem:[%s0 + $0x50] sm:$0xff]
  %v111 = vld [vmem:[%s0 + $0x58] sm:$0x7f]
  %v112 = vld [vmem:[%s6] sm:$0xff]
  %v113 = vld [vmem:[%s6 + $0x8] sm:$0xff]
  %v114 = vld [vmem:[%s6 + $0x10] sm:$0xff]
  %v115 = vld [vmem:[%s6 + $0x18] sm:$0xff]
  %v116 = vld [vmem:[%s6 + $0x20] sm:$0xff]
  %v117 = vld [vmem:[%s6 + $0x28] sm:$0xff]
  %v118 = vld [vmem:[%s6 + $0x30] sm:$0xff]
  %v119 = vld [vmem:[%s6 + $0x38] sm:$0xff]
  %v120 = vld [vmem:[%s6 + $0x40] sm:$0xff]
  %v121 = vld [vmem:[%s6 + $0x48] sm:$0xff]
  %v122 = vld [vmem:[%s6 + $0x50] sm:$0xff]
  %v123 = vld [vmem:[%s6 + $0x58] sm:$0xff]
  %v124 = vld [vmem:[%s6 + $0x60] sm:$0xff]
  %v125 = vld [vmem:[%s6 + $0x68] sm:$0xff]
  %v126 = vld [vmem:[%s6 + $0x70] sm:$0xff]
  %v127 = vld [vmem:[%s6 + $0x78] sm:$0xff]
  %v128 = vld [vmem:[%s6 + $0x80] sm:$0xff]
  %v129 = vld [vmem:[%s6 + $0x88] sm:$0xff]
  %v130 = vld [vmem:[%s6 + $0x90] sm:$0xff]
  %v131 = vld [vmem:[%s6 + $0x98] sm:$0xff]
  %v132 = vld [vmem:[%s6 + $0xa0] sm:$0xff]
  %v133 = vld [vmem:[%s6 + $0xa8] sm:$0xff]
  %v134 = vld [vmem:[%s6 + $0xb0] sm:$0xff]
  %v135 = vld [vmem:[%s6 + $0xb8] sm:$0xff]
  %v136 = vld [vmem:[%s6 + $0xc0] sm:$0xff]
  %v137 = vld [vmem:[%s6 + $0xc8] sm:$0xff]
  %v138 = vld [vmem:[%s6 + $0xd0] sm:$0xff]
  %v139 = vld [vmem:[%s6 + $0xd8] sm:$0xff]
  %v140 = vld [vmem:[%s6 + $0xe0] sm:$0xff]
  %v141 = vld [vmem:[%s6 + $0xe8] sm:$0xff]
  %v142 = vld [vmem:[%s6 + $0xf0] sm:$0xff]
  %v143 = vld [vmem:[%s6 + $0xf8] sm:$0xff]
  %145 = vset.pattern.permute.xlu0 0
  %146 = vperm.xlu0 %145, %v112
  %v147 = vpop.permute.xlu0 %146
  %150 = vset.pattern.permute.xlu0 0
  %151 = vperm.xlu0 %150, %v113
  %v152 = vpop.permute.xlu0 %151
  %155 = vset.pattern.permute.xlu0 0
  %156 = vperm.xlu0 %155, %v114
  %v157 = vpop.permute.xlu0 %156
  %160 = vset.pattern.permute.xlu0 0
  %161 = vperm.xlu0 %160, %v115
  %v162 = vpop.permute.xlu0 %161
  %165 = vset.pattern.permute.xlu0 0
  %166 = vperm.xlu0 %165, %v116
  %v167 = vpop.permute.xlu0 %166
  %170 = vset.pattern.permute.xlu0 0
  %171 = vperm.xlu0 %170, %v117
  %v172 = vpop.permute.xlu0 %171
  %175 = vset.pattern.permute.xlu0 0
  %176 = vperm.xlu0 %175, %v118
  %v177 = vpop.permute.xlu0 %176
  %180 = vset.pattern.permute.xlu0 0
  %181 = vperm.xlu0 %180, %v119
  %v182 = vpop.permute.xlu0 %181
  %185 = vset.pattern.permute.xlu0 0
  %186 = vperm.xlu0 %185, %v120
  %v187 = vpop.permute.xlu0 %186
  %190 = vset.pattern.permute.xlu0 0
  %191 = vperm.xlu0 %190, %v121
  %v192 = vpop.permute.xlu0 %191
  %195 = vset.pattern.permute.xlu0 0
  %196 = vperm.xlu0 %195, %v122
  %v197 = vpop.permute.xlu0 %196
  %200 = vset.pattern.permute.xlu0 0
  %201 = vperm.xlu0 %200, %v123
  %v202 = vpop.permute.xlu0 %201
  %205 = vset.pattern.permute.xlu0 0
  %206 = vperm.xlu0 %205, %v124
  %v207 = vpop.permute.xlu0 %206
  %210 = vset.pattern.permute.xlu0 0
  %211 = vperm.xlu0 %210, %v125
  %v212 = vpop.permute.xlu0 %211
  %215 = vset.pattern.permute.xlu0 0
  %216 = vperm.xlu0 %215, %v126
  %v217 = vpop.permute.xlu0 %216
  %220 = vset.pattern.permute.xlu0 0
  %221 = vperm.xlu0 %220, %v127
  %v222 = vpop.permute.xlu0 %221
  %225 = vset.pattern.permute.xlu0 0
  %226 = vperm.xlu0 %225, %v128
  %v227 = vpop.permute.xlu0 %226
  %230 = vset.pattern.permute.xlu0 0
  %231 = vperm.xlu0 %230, %v129
  %v232 = vpop.permute.xlu0 %231
  %235 = vset.pattern.permute.xlu0 0
  %236 = vperm.xlu0 %235, %v130
  %v237 = vpop.permute.xlu0 %236
  %240 = vset.pattern.permute.xlu0 0
  %241 = vperm.xlu0 %240, %v131
  %v242 = vpop.permute.xlu0 %241
  %245 = vset.pattern.permute.xlu0 0
  %246 = vperm.xlu0 %245, %v132
  %v247 = vpop.permute.xlu0 %246
  %250 = vset.pattern.permute.xlu0 0
  %251 = vperm.xlu0 %250, %v133
  %v252 = vpop.permute.xlu0 %251
  %255 = vset.pattern.permute.xlu0 0
  %256 = vperm.xlu0 %255, %v134
  %v257 = vpop.permute.xlu0 %256
  %260 = vset.pattern.permute.xlu0 0
  %261 = vperm.xlu0 %260, %v135
  %v262 = vpop.permute.xlu0 %261
  %265 = vset.pattern.permute.xlu0 0
  %266 = vperm.xlu0 %265, %v136
  %v267 = vpop.permute.xlu0 %266
  %270 = vset.pattern.permute.xlu0 0
  %271 = vperm.xlu0 %270, %v137
  %v272 = vpop.permute.xlu0 %271
  %275 = vset.pattern.permute.xlu0 0
  %276 = vperm.xlu0 %275, %v138
  %v277 = vpop.permute.xlu0 %276
  %280 = vset.pattern.permute.xlu0 0
  %281 = vperm.xlu0 %280, %v139
  %v282 = vpop.permute.xlu0 %281
  %285 = vset.pattern.permute.xlu0 0
  %286 = vperm.xlu0 %285, %v140
  %v287 = vpop.permute.xlu0 %286
  %290 = vset.pattern.permute.xlu0 0
  %291 = vperm.xlu0 %290, %v141
  %v292 = vpop.permute.xlu0 %291
  %295 = vset.pattern.permute.xlu0 0
  %296 = vperm.xlu0 %295, %v142
  %v297 = vpop.permute.xlu0 %296
  %300 = vset.pattern.permute.xlu0 0
  %301 = vperm.xlu0 %300, %v143
  %v302 = vpop.permute.xlu0 %301
  %vm304 = vcmask 777216
  %v306 = vsel %vm304, %v68, 0
  %v309 = vsel %vm304, %v69, 0
  %v312 = vsel %vm304, %v70, 0
  %v315 = vsel %vm304, %v71, 0
  %v318 = vsel %vm304, %v72, 0
  %v321 = vsel %vm304, %v73, 0
  %v324 = vsel %vm304, %v74, 0
  %v327 = vsel %vm304, %v75, 0
  %v330 = vsel %vm304, %v76, 0
  %v333 = vsel %vm304, %v77, 0
  %v336 = vsel %vm304, %v78, 0
  %v339 = vsel %vm304, %v79, 0
  %v342 = vsel %vm304, %v80, 0
  %v345 = vsel %vm304, %v81, 0
  %v348 = vsel %vm304, %v82, 0
  %v351 = vsel %vm304, %v83, 0
  %v354 = vsel %vm304, %v84, 0
  %v357 = vsel %vm304, %v85, 0
  %v360 = vsel %vm304, %v86, 0
  %v363 = vsel %vm304, %v87, 0
  %v366 = vsel %vm304, %v88, 0
  %v369 = vsel %vm304, %v89, 0
  %v372 = vsel %vm304, %v90, 0
  %v375 = vsel %vm304, %v91, 0
  %v378 = vsel %vm304, %v92, 0
  %v381 = vsel %vm304, %v93, 0
  %v384 = vsel %vm304, %v94, 0
  %v387 = vsel %vm304, %v95, 0
  %v390 = vsel %vm304, %v96, 0
  %v393 = vsel %vm304, %v97, 0
  %v396 = vsel %vm304, %v98, 0
  %v399 = vsel %vm304, %v99, 0
  %vm401 = vcmask 1046528
  %v403 = vsel %vm401, %v111, 0
  %405 = vmatprep.subr.mxu0 0.0
  %406 = vmatpush1.msra.mxu0 0.0
  %407 = vmatprep.subr.mxu0 0.0
  %408 = vmatpush1.msra.mxu0 0.0
  %409 = vmatprep.subr.mxu0 0.0
  %410 = vmatpush1.msra.mxu0 0.0
  %411 = vmatprep.subr.mxu0 0.0
  %412 = vmatpush1.msra.mxu0 0.0
  %413 = vmatprep.subr.mxu0 0.0
  %414 = vmatpush1.msra.mxu0 %v403
  %415 = vmatprep.subr.mxu0 0.0
  %416 = vmatpush1.msra.mxu0 %v110
  %417 = vmatprep.subr.mxu0 0.0
  %418 = vmatpush1.msra.mxu0 %v109
  %419 = vmatprep.subr.mxu0 0.0
  %420 = vmatpush1.msra.mxu0 %v108
  %421 = vmatprep.subr.mxu0 0.0
  %422 = vmatpush1.msra.mxu0 %v107
  %423 = vmatprep.subr.mxu0 0.0
  %424 = vmatpush1.msra.mxu0 %v106
  %425 = vmatprep.subr.mxu0 0.0
  %426 = vmatpush1.msra.mxu0 %v105
  %427 = vmatprep.subr.mxu0 0.0
  %428 = vmatpush1.msra.mxu0 %v104
  %429 = vmatprep.subr.mxu0 0.0
  %430 = vmatpush1.msra.mxu0 %v103
  %431 = vmatprep.subr.mxu0 0.0
  %432 = vmatpush1.msra.mxu0 %v102
  %433 = vmatprep.subr.mxu0 0.0
  %434 = vmatpush1.msra.mxu0 %v101
  %435 = vmatprep.subr.mxu0 0.0
  %436 = vmatpush1.msra.mxu0 %v100
  %437 = vmatprep.subr.mxu0 0.0
  %438 = vmatpush2.msra.mxu0 0.0
  %439 = vmatprep.subr.mxu0 0.0
  %440 = vmatpush2.msra.mxu0 0.0
  %441 = vmatprep.subr.mxu0 0.0
  %442 = vmatpush2.msra.mxu0 0.0
  %443 = vmatprep.subr.mxu0 0.0
  %444 = vmatpush2.msra.mxu0 0.0
  %445 = vmatprep.subr.mxu0 0.0
  %446 = vmatpush2.msra.mxu0 0.0
  %447 = vmatprep.subr.mxu0 0.0
  %448 = vmatpush2.msra.mxu0 0.0
  %449 = vmatprep.subr.mxu0 0.0
  %450 = vmatpush2.msra.mxu0 0.0
  %451 = vmatprep.subr.mxu0 0.0
  %452 = vmatpush2.msra.mxu0 0.0
  %453 = vmatprep.subr.mxu0 0.0
  %454 = vmatpush2.msra.mxu0 0.0
  %455 = vmatprep.subr.mxu0 0.0
  %456 = vmatpush2.msra.mxu0 0.0
  %457 = vmatprep.subr.mxu0 0.0
  %458 = vmatpush2.msra.mxu0 0.0
  %459 = vmatprep.subr.mxu0 0.0
  %460 = vmatpush2.msra.mxu0 0.0
  %461 = vmatprep.subr.mxu0 0.0
  %462 = vmatpush2.msra.mxu0 0.0
  %463 = vmatprep.subr.mxu0 0.0
  %464 = vmatpush2.msra.mxu0 0.0
  %465 = vmatprep.subr.mxu0 0.0
  %466 = vmatpush2.msra.mxu0 0.0
  %467 = vmatprep.subr.mxu0 0.0
  %468 = vmatpush2.msra.mxu0 0.0
  %469 = vmatprep.mubr.f32.mxu0 0.0
  %470 = vmatmul.mubr.f32.gmra.mxu0 %v306
  %v471 = vpop.f32.mrf.mxu0
  %v472 = vadd.f32 %v147, %v471
  %v473 = vpop.f32.mrf.mxu0
  %474 = vmatprep.mubr.f32.mxu0 0.0
  %475 = vmatmul.mubr.f32.gmra.mxu0 %v309
  %v476 = vpop.f32.mrf.mxu0
  %v477 = vadd.f32 %v152, %v476
  %v478 = vpop.f32.mrf.mxu0
  %479 = vmatprep.mubr.f32.mxu0 0.0
  %480 = vmatmul.mubr.f32.gmra.mxu0 %v312
  %v481 = vpop.f32.mrf.mxu0
  %v482 = vadd.f32 %v157, %v481
  %v483 = vpop.f32.mrf.mxu0
  %484 = vmatprep.mubr.f32.mxu0 0.0
  %485 = vmatmul.mubr.f32.gmra.mxu0 %v315
  %v486 = vpop.f32.mrf.mxu0
  %v487 = vadd.f32 %v162, %v486
  %v488 = vpop.f32.mrf.mxu0
  %489 = vmatprep.mubr.f32.mxu0 0.0
  %490 = vmatmul.mubr.f32.gmra.mxu0 %v318
  %v491 = vpop.f32.mrf.mxu0
  %v492 = vadd.f32 %v167, %v491
  %v493 = vpop.f32.mrf.mxu0
  %494 = vmatprep.mubr.f32.mxu0 0.0
  %495 = vmatmul.mubr.f32.gmra.mxu0 %v321
  %v496 = vpop.f32.mrf.mxu0
  %v497 = vadd.f32 %v172, %v496
  %v498 = vpop.f32.mrf.mxu0
  %499 = vmatprep.mubr.f32.mxu0 0.0
  %500 = vmatmul.mubr.f32.gmra.mxu0 %v324
  %v501 = vpop.f32.mrf.mxu0
  %v502 = vadd.f32 %v177, %v501
  %v503 = vpop.f32.mrf.mxu0
  %504 = vmatprep.mubr.f32.mxu0 0.0
  %505 = vmatmul.mubr.f32.gmra.mxu0 %v327
  %v506 = vpop.f32.mrf.mxu0
  %v507 = vadd.f32 %v182, %v506
  %v508 = vpop.f32.mrf.mxu0
  %509 = vmatprep.mubr.f32.mxu0 0.0
  %510 = vmatmul.mubr.f32.gmra.mxu0 %v330
  %v511 = vpop.f32.mrf.mxu0
  %v512 = vadd.f32 %v187, %v511
  %v513 = vpop.f32.mrf.mxu0
  %514 = vmatprep.mubr.f32.mxu0 0.0
  %515 = vmatmul.mubr.f32.gmra.mxu0 %v333
  %v516 = vpop.f32.mrf.mxu0
  %v517 = vadd.f32 %v192, %v516
  %v518 = vpop.f32.mrf.mxu0
  %519 = vmatprep.mubr.f32.mxu0 0.0
  %520 = vmatmul.mubr.f32.gmra.mxu0 %v336
  %v521 = vpop.f32.mrf.mxu0
  %v522 = vadd.f32 %v197, %v521
  %v523 = vpop.f32.mrf.mxu0
  %524 = vmatprep.mubr.f32.mxu0 0.0
  %525 = vmatmul.mubr.f32.gmra.mxu0 %v339
  %v526 = vpop.f32.mrf.mxu0
  %v527 = vadd.f32 %v202, %v526
  %v528 = vpop.f32.mrf.mxu0
  %529 = vmatprep.mubr.f32.mxu0 0.0
  %530 = vmatmul.mubr.f32.gmra.mxu0 %v342
  %v531 = vpop.f32.mrf.mxu0
  %v532 = vadd.f32 %v207, %v531
  %v533 = vpop.f32.mrf.mxu0
  %534 = vmatprep.mubr.f32.mxu0 0.0
  %535 = vmatmul.mubr.f32.gmra.mxu0 %v345
  %v536 = vpop.f32.mrf.mxu0
  %v537 = vadd.f32 %v212, %v536
  %v538 = vpop.f32.mrf.mxu0
  %539 = vmatprep.mubr.f32.mxu0 0.0
  %540 = vmatmul.mubr.f32.gmra.mxu0 %v348
  %v541 = vpop.f32.mrf.mxu0
  %v542 = vadd.f32 %v217, %v541
  %v543 = vpop.f32.mrf.mxu0
  %544 = vmatprep.mubr.f32.mxu0 0.0
  %545 = vmatmul.mubr.f32.gmra.mxu0 %v351
  %v546 = vpop.f32.mrf.mxu0
  %v547 = vadd.f32 %v222, %v546
  %v548 = vpop.f32.mrf.mxu0
  %549 = vmatprep.mubr.f32.mxu0 0.0
  %550 = vmatmul.mubr.f32.gmra.mxu0 %v354
  %v551 = vpop.f32.mrf.mxu0
  %v552 = vadd.f32 %v227, %v551
  %v553 = vpop.f32.mrf.mxu0
  %554 = vmatprep.mubr.f32.mxu0 0.0
  %555 = vmatmul.mubr.f32.gmra.mxu0 %v357
  %v556 = vpop.f32.mrf.mxu0
  %v557 = vadd.f32 %v232, %v556
  %v558 = vpop.f32.mrf.mxu0
  %559 = vmatprep.mubr.f32.mxu0 0.0
  %560 = vmatmul.mubr.f32.gmra.mxu0 %v360
  %v561 = vpop.f32.mrf.mxu0
  %v562 = vadd.f32 %v237, %v561
  %v563 = vpop.f32.mrf.mxu0
  %564 = vmatprep.mubr.f32.mxu0 0.0
  %565 = vmatmul.mubr.f32.gmra.mxu0 %v363
  %v566 = vpop.f32.mrf.mxu0
  %v567 = vadd.f32 %v242, %v566
  %v568 = vpop.f32.mrf.mxu0
  %569 = vmatprep.mubr.f32.mxu0 0.0
  %570 = vmatmul.mubr.f32.gmra.mxu0 %v366
  %v571 = vpop.f32.mrf.mxu0
  %v572 = vadd.f32 %v247, %v571
  %v573 = vpop.f32.mrf.mxu0
  %574 = vmatprep.mubr.f32.mxu0 0.0
  %575 = vmatmul.mubr.f32.gmra.mxu0 %v369
  %v576 = vpop.f32.mrf.mxu0
  %v577 = vadd.f32 %v252, %v576
  %v578 = vpop.f32.mrf.mxu0
  %579 = vmatprep.mubr.f32.mxu0 0.0
  %580 = vmatmul.mubr.f32.gmra.mxu0 %v372
  %v581 = vpop.f32.mrf.mxu0
  %v582 = vadd.f32 %v257, %v581
  %v583 = vpop.f32.mrf.mxu0
  %584 = vmatprep.mubr.f32.mxu0 0.0
  %585 = vmatmul.mubr.f32.gmra.mxu0 %v375
  %v586 = vpop.f32.mrf.mxu0
  %v587 = vadd.f32 %v262, %v586
  %v588 = vpop.f32.mrf.mxu0
  %589 = vmatprep.mubr.f32.mxu0 0.0
  %590 = vmatmul.mubr.f32.gmra.mxu0 %v378
  %v591 = vpop.f32.mrf.mxu0
  %v592 = vadd.f32 %v267, %v591
  %v593 = vpop.f32.mrf.mxu0
  %594 = vmatprep.mubr.f32.mxu0 0.0
  %595 = vmatmul.mubr.f32.gmra.mxu0 %v381
  %v596 = vpop.f32.mrf.mxu0
  %v597 = vadd.f32 %v272, %v596
  %v598 = vpop.f32.mrf.mxu0
  %599 = vmatprep.mubr.f32.mxu0 0.0
  %600 = vmatmul.mubr.f32.gmra.mxu0 %v384
  %v601 = vpop.f32.mrf.mxu0
  %v602 = vadd.f32 %v277, %v601
  %v603 = vpop.f32.mrf.mxu0
  %604 = vmatprep.mubr.f32.mxu0 0.0
  %605 = vmatmul.mubr.f32.gmra.mxu0 %v387
  %v606 = vpop.f32.mrf.mxu0
  %v607 = vadd.f32 %v282, %v606
  %v608 = vpop.f32.mrf.mxu0
  %609 = vmatprep.mubr.f32.mxu0 0.0
  %610 = vmatmul.mubr.f32.gmra.mxu0 %v390
  %v611 = vpop.f32.mrf.mxu0
  %v612 = vadd.f32 %v287, %v611
  %v613 = vpop.f32.mrf.mxu0
  %614 = vmatprep.mubr.f32.mxu0 0.0
  %615 = vmatmul.mubr.f32.gmra.mxu0 %v393
  %v616 = vpop.f32.mrf.mxu0
  %v617 = vadd.f32 %v292, %v616
  %v618 = vpop.f32.mrf.mxu0
  %619 = vmatprep.mubr.f32.mxu0 0.0
  %620 = vmatmul.mubr.f32.gmra.mxu0 %v396
  %v621 = vpop.f32.mrf.mxu0
  %v622 = vadd.f32 %v297, %v621
  %v623 = vpop.f32.mrf.mxu0
  %624 = vmatprep.mubr.f32.mxu0 0.0
  %625 = vmatmul.mubr.f32.gmra.mxu0 %v399
  %v626 = vpop.f32.mrf.mxu0
  %v627 = vadd.f32 %v302, %v626
  %v628 = vpop.f32.mrf.mxu0
  %629 = vdwg.mxu0
  %v630 = vmax.f32 %v472, 0.0
  %v631 = vmax.f32 %v477, 0.0
  %v632 = vmax.f32 %v482, 0.0
  %v633 = vmax.f32 %v487, 0.0
  %v634 = vmax.f32 %v492, 0.0
  %v635 = vmax.f32 %v497, 0.0
  %v636 = vmax.f32 %v502, 0.0
  %v637 = vmax.f32 %v507, 0.0
  %v638 = vmax.f32 %v512, 0.0
  %v639 = vmax.f32 %v517, 0.0
  %v640 = vmax.f32 %v522, 0.0
  %v641 = vmax.f32 %v527, 0.0
  %v642 = vmax.f32 %v532, 0.0
  %v643 = vmax.f32 %v537, 0.0
  %v644 = vmax.f32 %v542, 0.0
  %v645 = vmax.f32 %v547, 0.0
  %v646 = vmax.f32 %v552, 0.0
  %v647 = vmax.f32 %v557, 0.0
  %v648 = vmax.f32 %v562, 0.0
  %v649 = vmax.f32 %v567, 0.0
  %v650 = vmax.f32 %v572, 0.0
  %v651 = vmax.f32 %v577, 0.0
  %v652 = vmax.f32 %v582, 0.0
  %v653 = vmax.f32 %v587, 0.0
  %v654 = vmax.f32 %v592, 0.0
  %v655 = vmax.f32 %v597, 0.0
  %v656 = vmax.f32 %v602, 0.0
  %v657 = vmax.f32 %v607, 0.0
  %v658 = vmax.f32 %v612, 0.0
  %v659 = vmax.f32 %v617, 0.0
  %v660 = vmax.f32 %v622, 0.0
  %v661 = vmax.f32 %v627, 0.0
  %vm662 = vcmask 392192
  %v663 = vsel %vm662, %v630, 0.0
  %v664 = vsel %vm662, %v631, 0.0
  %v665 = vadd.f32 %v663, %v664
  %v666 = vsel %vm662, %v632, 0.0
  %v667 = vadd.f32 %v665, %v666
  %v668 = vsel %vm662, %v633, 0.0
  %v669 = vadd.f32 %v667, %v668
  %v670 = vrot.slane %v669, 4
  %v671 = vadd.f32 %v669, %v670
  %v672 = vrot.slane %v671, 2
  %v673 = vadd.f32 %v671, %v672
  %v674 = vrot.slane %v673, 1
  %v675 = vadd.f32 %v673, %v674
  %v676 = vsel %vm662, %v634, 0.0
  %v677 = vsel %vm662, %v635, 0.0
  %v678 = vadd.f32 %v676, %v677
  %v679 = vsel %vm662, %v636, 0.0
  %v680 = vadd.f32 %v678, %v679
  %v681 = vsel %vm662, %v637, 0.0
  %v682 = vadd.f32 %v680, %v681
  %v683 = vrot.slane %v682, 4
  %v684 = vadd.f32 %v682, %v683
  %v685 = vrot.slane %v684, 2
  %v686 = vadd.f32 %v684, %v685
  %v687 = vrot.slane %v686, 1
  %v688 = vadd.f32 %v686, %v687
  %v689 = vsel %vm662, %v638, 0.0
  %v690 = vsel %vm662, %v639, 0.0
  %v691 = vadd.f32 %v689, %v690
  %v692 = vsel %vm662, %v640, 0.0
  %v693 = vadd.f32 %v691, %v692
  %v694 = vsel %vm662, %v641, 0.0
  %v695 = vadd.f32 %v693, %v694
  %v696 = vrot.slane %v695, 4
  %v697 = vadd.f32 %v695, %v696
  %v698 = vrot.slane %v697, 2
  %v699 = vadd.f32 %v697, %v698
  %v700 = vrot.slane %v699, 1
  %v701 = vadd.f32 %v699, %v700
  %v702 = vsel %vm662, %v642, 0.0
  %v703 = vsel %vm662, %v643, 0.0
  %v704 = vadd.f32 %v702, %v703
  %v705 = vsel %vm662, %v644, 0.0
  %v706 = vadd.f32 %v704, %v705
  %v707 = vsel %vm662, %v645, 0.0
  %v708 = vadd.f32 %v706, %v707
  %v709 = vrot.slane %v708, 4
  %v710 = vadd.f32 %v708, %v709
  %v711 = vrot.slane %v710, 2
  %v712 = vadd.f32 %v710, %v711
  %v713 = vrot.slane %v712, 1
  %v714 = vadd.f32 %v712, %v713
  %v715 = vsel %vm662, %v646, 0.0
  %v716 = vsel %vm662, %v647, 0.0
  %v717 = vadd.f32 %v715, %v716
  %v718 = vsel %vm662, %v648, 0.0
  %v719 = vadd.f32 %v717, %v718
  %v720 = vsel %vm662, %v649, 0.0
  %v721 = vadd.f32 %v719, %v720
  %v722 = vrot.slane %v721, 4
  %v723 = vadd.f32 %v721, %v722
  %v724 = vrot.slane %v723, 2
  %v725 = vadd.f32 %v723, %v724
  %v726 = vrot.slane %v725, 1
  %v727 = vadd.f32 %v725, %v726
  %v728 = vsel %vm662, %v650, 0.0
  %v729 = vsel %vm662, %v651, 0.0
  %v730 = vadd.f32 %v728, %v729
  %v731 = vsel %vm662, %v652, 0.0
  %v732 = vadd.f32 %v730, %v731
  %v733 = vsel %vm662, %v653, 0.0
  %v734 = vadd.f32 %v732, %v733
  %v735 = vrot.slane %v734, 4
  %v736 = vadd.f32 %v734, %v735
  %v737 = vrot.slane %v736, 2
  %v738 = vadd.f32 %v736, %v737
  %v739 = vrot.slane %v738, 1
  %v740 = vadd.f32 %v738, %v739
  %v741 = vsel %vm662, %v654, 0.0
  %v742 = vsel %vm662, %v655, 0.0
  %v743 = vadd.f32 %v741, %v742
  %v744 = vsel %vm662, %v656, 0.0
  %v745 = vadd.f32 %v743, %v744
  %v746 = vsel %vm662, %v657, 0.0
  %v747 = vadd.f32 %v745, %v746
  %v748 = vrot.slane %v747, 4
  %v749 = vadd.f32 %v747, %v748
  %v750 = vrot.slane %v749, 2
  %v751 = vadd.f32 %v749, %v750
  %v752 = vrot.slane %v751, 1
  %v753 = vadd.f32 %v751, %v752
  %v754 = vsel %vm662, %v658, 0.0
  %v755 = vsel %vm662, %v659, 0.0
  %v756 = vadd.f32 %v754, %v755
  %v757 = vsel %vm662, %v660, 0.0
  %v758 = vadd.f32 %v756, %v757
  %v759 = vsel %vm662, %v661, 0.0
  %v760 = vadd.f32 %v758, %v759
  %v761 = vrot.slane %v760, 4
  %v762 = vadd.f32 %v760, %v761
  %v763 = vrot.slane %v762, 2
  %v764 = vadd.f32 %v762, %v763
  %v765 = vrot.slane %v764, 1
  %v766 = vadd.f32 %v764, %v765
  %v767 = vrcp.pop 32.0
  %v768 = vmul.f32 %v675, %v767
  %v769 = vmul.f32 %v688, %v767
  %v770 = vmul.f32 %v701, %v767
  %v771 = vmul.f32 %v714, %v767
  %v772 = vmul.f32 %v727, %v767
  %v773 = vmul.f32 %v740, %v767
  %v774 = vmul.f32 %v753, %v767
  %v775 = vmul.f32 %v766, %v767
  %v776 = vld [vmem:[%s4] sm:$0xff]
  %v777 = vld [vmem:[%s4 + $0x8] sm:$0xff]
  %v778 = vld [vmem:[%s4 + $0x10] sm:$0xff]
  %v779 = vld [vmem:[%s4 + $0x18] sm:$0xff]
  %v780 = vld [vmem:[%s4 + $0x20] sm:$0xff]
  %v781 = vld [vmem:[%s4 + $0x28] sm:$0xff]
  %v782 = vld [vmem:[%s4 + $0x30] sm:$0xff]
  %v783 = vld [vmem:[%s4 + $0x38] sm:$0xff]
  %v784 = vld [vmem:[%s4 + $0x40] sm:$0xff]
  %v785 = vld [vmem:[%s4 + $0x48] sm:$0xff]
  %v786 = vld [vmem:[%s4 + $0x50] sm:$0xff]
  %v787 = vld [vmem:[%s4 + $0x58] sm:$0xff]
  %v788 = vld [vmem:[%s4 + $0x60] sm:$0xff]
  %v789 = vld [vmem:[%s4 + $0x68] sm:$0xff]
  %v790 = vld [vmem:[%s4 + $0x70] sm:$0xff]
  %v791 = vld [vmem:[%s4 + $0x78] sm:$0xff]
  %v792 = vld [vmem:[%s4 + $0x80] sm:$0xff]
  %v793 = vld [vmem:[%s4 + $0x88] sm:$0xff]
  %v794 = vld [vmem:[%s4 + $0x90] sm:$0xff]
  %v795 = vld [vmem:[%s4 + $0x98] sm:$0xff]
  %v796 = vld [vmem:[%s4 + $0xa0] sm:$0xff]
  %v797 = vld [vmem:[%s4 + $0xa8] sm:$0xff]
  %v798 = vld [vmem:[%s4 + $0xb0] sm:$0xff]
  %v799 = vld [vmem:[%s4 + $0xb8] sm:$0xff]
  %v800 = vld [vmem:[%s4 + $0xc0] sm:$0xff]
  %v801 = vld [vmem:[%s4 + $0xc8] sm:$0xff]
  %v802 = vld [vmem:[%s4 + $0xd0] sm:$0xff]
  %v803 = vld [vmem:[%s4 + $0xd8] sm:$0xff]
  %v804 = vld [vmem:[%s4 + $0xe0] sm:$0xff]
  %v805 = vld [vmem:[%s4 + $0xe8] sm:$0xff]
  %v806 = vld [vmem:[%s4 + $0xf0] sm:$0xff]
  %v807 = vld [vmem:[%s4 + $0xf8] sm:$0xff]
  %v808 = vld [vmem:[%s1] sm:$0xff]
  %v809 = vld [vmem:[%s1 + $0x8] sm:$0xff]
  %v810 = vld [vmem:[%s1 + $0x10] sm:$0xff]
  %v811 = vld [vmem:[%s1 + $0x18] sm:$0xff]
  %v812 = vld [vmem:[%s1 + $0x20] sm:$0xff]
  %v813 = vld [vmem:[%s1 + $0x28] sm:$0xff]
  %v814 = vld [vmem:[%s1 + $0x30] sm:$0xff]
  %v815 = vld [vmem:[%s1 + $0x38] sm:$0x7f]
  %v816 = vld [vmem:[%s7] sm:$0xff]
  %v817 = vld [vmem:[%s7 + $0x8] sm:$0xff]
  %v818 = vld [vmem:[%s7 + $0x10] sm:$0xff]
  %v819 = vld [vmem:[%s7 + $0x18] sm:$0xff]
  %v820 = vld [vmem:[%s7 + $0x20] sm:$0xff]
  %v821 = vld [vmem:[%s7 + $0x28] sm:$0xff]
  %v822 = vld [vmem:[%s7 + $0x30] sm:$0xff]
  %v823 = vld [vmem:[%s7 + $0x38] sm:$0xff]
  %v824 = vld [vmem:[%s7 + $0x40] sm:$0xff]
  %v825 = vld [vmem:[%s7 + $0x48] sm:$0xff]
  %v826 = vld [vmem:[%s7 + $0x50] sm:$0xff]
  %v827 = vld [vmem:[%s7 + $0x58] sm:$0xff]
  %v828 = vld [vmem:[%s7 + $0x60] sm:$0xff]
  %v829 = vld [vmem:[%s7 + $0x68] sm:$0xff]
  %v830 = vld [vmem:[%s7 + $0x70] sm:$0xff]
  %v831 = vld [vmem:[%s7 + $0x78] sm:$0xff]
  %v832 = vld [vmem:[%s7 + $0x80] sm:$0xff]
  %v833 = vld [vmem:[%s7 + $0x88] sm:$0xff]
  %v834 = vld [vmem:[%s7 + $0x90] sm:$0xff]
  %v835 = vld [vmem:[%s7 + $0x98] sm:$0xff]
  %v836 = vld [vmem:[%s7 + $0xa0] sm:$0xff]
  %v837 = vld [vmem:[%s7 + $0xa8] sm:$0xff]
  %v838 = vld [vmem:[%s7 + $0xb0] sm:$0xff]
  %v839 = vld [vmem:[%s7 + $0xb8] sm:$0xff]
  %v840 = vld [vmem:[%s7 + $0xc0] sm:$0xff]
  %v841 = vld [vmem:[%s7 + $0xc8] sm:$0xff]
  %v842 = vld [vmem:[%s7 + $0xd0] sm:$0xff]
  %v843 = vld [vmem:[%s7 + $0xd8] sm:$0xff]
  %v844 = vld [vmem:[%s7 + $0xe0] sm:$0xff]
  %v845 = vld [vmem:[%s7 + $0xe8] sm:$0xff]
  %v846 = vld [vmem:[%s7 + $0xf0] sm:$0xff]
  %v847 = vld [vmem:[%s7 + $0xf8] sm:$0xff]
  %849 = vset.pattern.permute.xlu0 0
  %850 = vperm.xlu0 %849, %v816
  %v851 = vpop.permute.xlu0 %850
  %854 = vset.pattern.permute.xlu0 0
  %855 = vperm.xlu0 %854, %v817
  %v856 = vpop.permute.xlu0 %855
  %859 = vset.pattern.permute.xlu0 0
  %860 = vperm.xlu0 %859, %v818
  %v861 = vpop.permute.xlu0 %860
  %864 = vset.pattern.permute.xlu0 0
  %865 = vperm.xlu0 %864, %v819
  %v866 = vpop.permute.xlu0 %865
  %869 = vset.pattern.permute.xlu0 0
  %870 = vperm.xlu0 %869, %v820
  %v871 = vpop.permute.xlu0 %870
  %874 = vset.pattern.permute.xlu0 0
  %875 = vperm.xlu0 %874, %v821
  %v876 = vpop.permute.xlu0 %875
  %879 = vset.pattern.permute.xlu0 0
  %880 = vperm.xlu0 %879, %v822
  %v881 = vpop.permute.xlu0 %880
  %884 = vset.pattern.permute.xlu0 0
  %885 = vperm.xlu0 %884, %v823
  %v886 = vpop.permute.xlu0 %885
  %889 = vset.pattern.permute.xlu0 0
  %890 = vperm.xlu0 %889, %v824
  %v891 = vpop.permute.xlu0 %890
  %894 = vset.pattern.permute.xlu0 0
  %895 = vperm.xlu0 %894, %v825
  %v896 = vpop.permute.xlu0 %895
  %899 = vset.pattern.permute.xlu0 0
  %900 = vperm.xlu0 %899, %v826
  %v901 = vpop.permute.xlu0 %900
  %904 = vset.pattern.permute.xlu0 0
  %905 = vperm.xlu0 %904, %v827
  %v906 = vpop.permute.xlu0 %905
  %909 = vset.pattern.permute.xlu0 0
  %910 = vperm.xlu0 %909, %v828
  %v911 = vpop.permute.xlu0 %910
  %914 = vset.pattern.permute.xlu0 0
  %915 = vperm.xlu0 %914, %v829
  %v916 = vpop.permute.xlu0 %915
  %919 = vset.pattern.permute.xlu0 0
  %920 = vperm.xlu0 %919, %v830
  %v921 = vpop.permute.xlu0 %920
  %924 = vset.pattern.permute.xlu0 0
  %925 = vperm.xlu0 %924, %v831
  %v926 = vpop.permute.xlu0 %925
  %929 = vset.pattern.permute.xlu0 0
  %930 = vperm.xlu0 %929, %v832
  %v931 = vpop.permute.xlu0 %930
  %934 = vset.pattern.permute.xlu0 0
  %935 = vperm.xlu0 %934, %v833
  %v936 = vpop.permute.xlu0 %935
  %939 = vset.pattern.permute.xlu0 0
  %940 = vperm.xlu0 %939, %v834
  %v941 = vpop.permute.xlu0 %940
  %944 = vset.pattern.permute.xlu0 0
  %945 = vperm.xlu0 %944, %v835
  %v946 = vpop.permute.xlu0 %945
  %949 = vset.pattern.permute.xlu0 0
  %950 = vperm.xlu0 %949, %v836
  %v951 = vpop.permute.xlu0 %950
  %954 = vset.pattern.permute.xlu0 0
  %955 = vperm.xlu0 %954, %v837
  %v956 = vpop.permute.xlu0 %955
  %959 = vset.pattern.permute.xlu0 0
  %960 = vperm.xlu0 %959, %v838
  %v961 = vpop.permute.xlu0 %960
  %964 = vset.pattern.permute.xlu0 0
  %965 = vperm.xlu0 %964, %v839
  %v966 = vpop.permute.xlu0 %965
  %969 = vset.pattern.permute.xlu0 0
  %970 = vperm.xlu0 %969, %v840
  %v971 = vpop.permute.xlu0 %970
  %974 = vset.pattern.permute.xlu0 0
  %975 = vperm.xlu0 %974, %v841
  %v976 = vpop.permute.xlu0 %975
  %979 = vset.pattern.permute.xlu0 0
  %980 = vperm.xlu0 %979, %v842
  %v981 = vpop.permute.xlu0 %980
  %984 = vset.pattern.permute.xlu0 0
  %985 = vperm.xlu0 %984, %v843
  %v986 = vpop.permute.xlu0 %985
  %989 = vset.pattern.permute.xlu0 0
  %990 = vperm.xlu0 %989, %v844
  %v991 = vpop.permute.xlu0 %990
  %994 = vset.pattern.permute.xlu0 0
  %995 = vperm.xlu0 %994, %v845
  %v996 = vpop.permute.xlu0 %995
  %999 = vset.pattern.permute.xlu0 0
  %1000 = vperm.xlu0 %999, %v846
  %v1001 = vpop.permute.xlu0 %1000
  %1004 = vset.pattern.permute.xlu0 0
  %1005 = vperm.xlu0 %1004, %v847
  %v1006 = vpop.permute.xlu0 %1005
  %vm1008 = vcmask 515072
  %v1010 = vsel %vm1008, %v776, 0
  %v1013 = vsel %vm1008, %v777, 0
  %v1016 = vsel %vm1008, %v778, 0
  %v1019 = vsel %vm1008, %v779, 0
  %v1022 = vsel %vm1008, %v780, 0
  %v1025 = vsel %vm1008, %v781, 0
  %v1028 = vsel %vm1008, %v782, 0
  %v1031 = vsel %vm1008, %v783, 0
  %v1034 = vsel %vm1008, %v784, 0
  %v1037 = vsel %vm1008, %v785, 0
  %v1040 = vsel %vm1008, %v786, 0
  %v1043 = vsel %vm1008, %v787, 0
  %v1046 = vsel %vm1008, %v788, 0
  %v1049 = vsel %vm1008, %v789, 0
  %v1052 = vsel %vm1008, %v790, 0
  %v1055 = vsel %vm1008, %v791, 0
  %v1058 = vsel %vm1008, %v792, 0
  %v1061 = vsel %vm1008, %v793, 0
  %v1064 = vsel %vm1008, %v794, 0
  %v1067 = vsel %vm1008, %v795, 0
  %v1070 = vsel %vm1008, %v796, 0
  %v1073 = vsel %vm1008, %v797, 0
  %v1076 = vsel %vm1008, %v798, 0
  %v1079 = vsel %vm1008, %v799, 0
  %v1082 = vsel %vm1008, %v800, 0
  %v1085 = vsel %vm1008, %v801, 0
  %v1088 = vsel %vm1008, %v802, 0
  %v1091 = vsel %vm1008, %v803, 0
  %v1094 = vsel %vm1008, %v804, 0
  %v1097 = vsel %vm1008, %v805, 0
  %v1100 = vsel %vm1008, %v806, 0
  %v1103 = vsel %vm1008, %v807, 0
  %v1106 = vsel %vm401, %v815, 0
  %1108 = vmatprep.subr.mxu0 0.0
  %1109 = vmatpush1.msra.mxu0 0.0
  %1110 = vmatprep.subr.mxu0 0.0
  %1111 = vmatpush1.msra.mxu0 0.0
  %1112 = vmatprep.subr.mxu0 0.0
  %1113 = vmatpush1.msra.mxu0 0.0
  %1114 = vmatprep.subr.mxu0 0.0
  %1115 = vmatpush1.msra.mxu0 0.0
  %1116 = vmatprep.subr.mxu0 0.0
  %1117 = vmatpush1.msra.mxu0 0.0
  %1118 = vmatprep.subr.mxu0 0.0
  %1119 = vmatpush1.msra.mxu0 0.0
  %1120 = vmatprep.subr.mxu0 0.0
  %1121 = vmatpush1.msra.mxu0 0.0
  %1122 = vmatprep.subr.mxu0 0.0
  %1123 = vmatpush1.msra.mxu0 0.0
  %1124 = vmatprep.subr.mxu0 0.0
  %1125 = vmatpush1.msra.mxu0 %v1106
  %1126 = vmatprep.subr.mxu0 0.0
  %1127 = vmatpush1.msra.mxu0 %v814
  %1128 = vmatprep.subr.mxu0 0.0
  %1129 = vmatpush1.msra.mxu0 %v813
  %1130 = vmatprep.subr.mxu0 0.0
  %1131 = vmatpush1.msra.mxu0 %v812
  %1132 = vmatprep.subr.mxu0 0.0
  %1133 = vmatpush1.msra.mxu0 %v811
  %1134 = vmatprep.subr.mxu0 0.0
  %1135 = vmatpush1.msra.mxu0 %v810
  %1136 = vmatprep.subr.mxu0 0.0
  %1137 = vmatpush1.msra.mxu0 %v809
  %1138 = vmatprep.subr.mxu0 0.0
  %1139 = vmatpush1.msra.mxu0 %v808
  %1140 = vmatprep.subr.mxu0 0.0
  %1141 = vmatpush2.msra.mxu0 0.0
  %1142 = vmatprep.subr.mxu0 0.0
  %1143 = vmatpush2.msra.mxu0 0.0
  %1144 = vmatprep.subr.mxu0 0.0
  %1145 = vmatpush2.msra.mxu0 0.0
  %1146 = vmatprep.subr.mxu0 0.0
  %1147 = vmatpush2.msra.mxu0 0.0
  %1148 = vmatprep.subr.mxu0 0.0
  %1149 = vmatpush2.msra.mxu0 0.0
  %1150 = vmatprep.subr.mxu0 0.0
  %1151 = vmatpush2.msra.mxu0 0.0
  %1152 = vmatprep.subr.mxu0 0.0
  %1153 = vmatpush2.msra.mxu0 0.0
  %1154 = vmatprep.subr.mxu0 0.0
  %1155 = vmatpush2.msra.mxu0 0.0
  %1156 = vmatprep.subr.mxu0 0.0
  %1157 = vmatpush2.msra.mxu0 0.0
  %1158 = vmatprep.subr.mxu0 0.0
  %1159 = vmatpush2.msra.mxu0 0.0
  %1160 = vmatprep.subr.mxu0 0.0
  %1161 = vmatpush2.msra.mxu0 0.0
  %1162 = vmatprep.subr.mxu0 0.0
  %1163 = vmatpush2.msra.mxu0 0.0
  %1164 = vmatprep.subr.mxu0 0.0
  %1165 = vmatpush2.msra.mxu0 0.0
  %1166 = vmatprep.subr.mxu0 0.0
  %1167 = vmatpush2.msra.mxu0 0.0
  %1168 = vmatprep.subr.mxu0 0.0
  %1169 = vmatpush2.msra.mxu0 0.0
  %1170 = vmatprep.subr.mxu0 0.0
  %1171 = vmatpush2.msra.mxu0 0.0
  %1172 = vmatprep.mubr.f32.mxu0 0.0
  %1173 = vmatmul.mubr.f32.gmra.mxu0 %v1010
  %v1174 = vpop.f32.mrf.mxu0
  %v1175 = vadd.f32 %v851, %v1174
  %v1176 = vpop.f32.mrf.mxu0
  %1177 = vmatprep.mubr.f32.mxu0 0.0
  %1178 = vmatmul.mubr.f32.gmra.mxu0 %v1013
  %v1179 = vpop.f32.mrf.mxu0
  %v1180 = vadd.f32 %v856, %v1179
  %v1181 = vpop.f32.mrf.mxu0
  %1182 = vmatprep.mubr.f32.mxu0 0.0
  %1183 = vmatmul.mubr.f32.gmra.mxu0 %v1016
  %v1184 = vpop.f32.mrf.mxu0
  %v1185 = vadd.f32 %v861, %v1184
  %v1186 = vpop.f32.mrf.mxu0
  %1187 = vmatprep.mubr.f32.mxu0 0.0
  %1188 = vmatmul.mubr.f32.gmra.mxu0 %v1019
  %v1189 = vpop.f32.mrf.mxu0
  %v1190 = vadd.f32 %v866, %v1189
  %v1191 = vpop.f32.mrf.mxu0
  %1192 = vmatprep.mubr.f32.mxu0 0.0
  %1193 = vmatmul.mubr.f32.gmra.mxu0 %v1022
  %v1194 = vpop.f32.mrf.mxu0
  %v1195 = vadd.f32 %v871, %v1194
  %v1196 = vpop.f32.mrf.mxu0
  %1197 = vmatprep.mubr.f32.mxu0 0.0
  %1198 = vmatmul.mubr.f32.gmra.mxu0 %v1025
  %v1199 = vpop.f32.mrf.mxu0
  %v1200 = vadd.f32 %v876, %v1199
  %v1201 = vpop.f32.mrf.mxu0
  %1202 = vmatprep.mubr.f32.mxu0 0.0
  %1203 = vmatmul.mubr.f32.gmra.mxu0 %v1028
  %v1204 = vpop.f32.mrf.mxu0
  %v1205 = vadd.f32 %v881, %v1204
  %v1206 = vpop.f32.mrf.mxu0
  %1207 = vmatprep.mubr.f32.mxu0 0.0
  %1208 = vmatmul.mubr.f32.gmra.mxu0 %v1031
  %v1209 = vpop.f32.mrf.mxu0
  %v1210 = vadd.f32 %v886, %v1209
  %v1211 = vpop.f32.mrf.mxu0
  %1212 = vmatprep.mubr.f32.mxu0 0.0
  %1213 = vmatmul.mubr.f32.gmra.mxu0 %v1034
  %v1214 = vpop.f32.mrf.mxu0
  %v1215 = vadd.f32 %v891, %v1214
  %v1216 = vpop.f32.mrf.mxu0
  %1217 = vmatprep.mubr.f32.mxu0 0.0
  %1218 = vmatmul.mubr.f32.gmra.mxu0 %v1037
  %v1219 = vpop.f32.mrf.mxu0
  %v1220 = vadd.f32 %v896, %v1219
  %v1221 = vpop.f32.mrf.mxu0
  %1222 = vmatprep.mubr.f32.mxu0 0.0
  %1223 = vmatmul.mubr.f32.gmra.mxu0 %v1040
  %v1224 = vpop.f32.mrf.mxu0
  %v1225 = vadd.f32 %v901, %v1224
  %v1226 = vpop.f32.mrf.mxu0
  %1227 = vmatprep.mubr.f32.mxu0 0.0
  %1228 = vmatmul.mubr.f32.gmra.mxu0 %v1043
  %v1229 = vpop.f32.mrf.mxu0
  %v1230 = vadd.f32 %v906, %v1229
  %v1231 = vpop.f32.mrf.mxu0
  %1232 = vmatprep.mubr.f32.mxu0 0.0
  %1233 = vmatmul.mubr.f32.gmra.mxu0 %v1046
  %v1234 = vpop.f32.mrf.mxu0
  %v1235 = vadd.f32 %v911, %v1234
  %v1236 = vpop.f32.mrf.mxu0
  %1237 = vmatprep.mubr.f32.mxu0 0.0
  %1238 = vmatmul.mubr.f32.gmra.mxu0 %v1049
  %v1239 = vpop.f32.mrf.mxu0
  %v1240 = vadd.f32 %v916, %v1239
  %v1241 = vpop.f32.mrf.mxu0
  %1242 = vmatprep.mubr.f32.mxu0 0.0
  %1243 = vmatmul.mubr.f32.gmra.mxu0 %v1052
  %v1244 = vpop.f32.mrf.mxu0
  %v1245 = vadd.f32 %v921, %v1244
  %v1246 = vpop.f32.mrf.mxu0
  %1247 = vmatprep.mubr.f32.mxu0 0.0
  %1248 = vmatmul.mubr.f32.gmra.mxu0 %v1055
  %v1249 = vpop.f32.mrf.mxu0
  %v1250 = vadd.f32 %v926, %v1249
  %v1251 = vpop.f32.mrf.mxu0
  %1252 = vmatprep.mubr.f32.mxu0 0.0
  %1253 = vmatmul.mubr.f32.gmra.mxu0 %v1058
  %v1254 = vpop.f32.mrf.mxu0
  %v1255 = vadd.f32 %v931, %v1254
  %v1256 = vpop.f32.mrf.mxu0
  %1257 = vmatprep.mubr.f32.mxu0 0.0
  %1258 = vmatmul.mubr.f32.gmra.mxu0 %v1061
  %v1259 = vpop.f32.mrf.mxu0
  %v1260 = vadd.f32 %v936, %v1259
  %v1261 = vpop.f32.mrf.mxu0
  %1262 = vmatprep.mubr.f32.mxu0 0.0
  %1263 = vmatmul.mubr.f32.gmra.mxu0 %v1064
  %v1264 = vpop.f32.mrf.mxu0
  %v1265 = vadd.f32 %v941, %v1264
  %v1266 = vpop.f32.mrf.mxu0
  %1267 = vmatprep.mubr.f32.mxu0 0.0
  %1268 = vmatmul.mubr.f32.gmra.mxu0 %v1067
  %v1269 = vpop.f32.mrf.mxu0
  %v1270 = vadd.f32 %v946, %v1269
  %v1271 = vpop.f32.mrf.mxu0
  %1272 = vmatprep.mubr.f32.mxu0 0.0
  %1273 = vmatmul.mubr.f32.gmra.mxu0 %v1070
  %v1274 = vpop.f32.mrf.mxu0
  %v1275 = vadd.f32 %v951, %v1274
  %v1276 = vpop.f32.mrf.mxu0
  %1277 = vmatprep.mubr.f32.mxu0 0.0
  %1278 = vmatmul.mubr.f32.gmra.mxu0 %v1073
  %v1279 = vpop.f32.mrf.mxu0
  %v1280 = vadd.f32 %v956, %v1279
  %v1281 = vpop.f32.mrf.mxu0
  %1282 = vmatprep.mubr.f32.mxu0 0.0
  %1283 = vmatmul.mubr.f32.gmra.mxu0 %v1076
  %v1284 = vpop.f32.mrf.mxu0
  %v1285 = vadd.f32 %v961, %v1284
  %v1286 = vpop.f32.mrf.mxu0
  %1287 = vmatprep.mubr.f32.mxu0 0.0
  %1288 = vmatmul.mubr.f32.gmra.mxu0 %v1079
  %v1289 = vpop.f32.mrf.mxu0
  %v1290 = vadd.f32 %v966, %v1289
  %v1291 = vpop.f32.mrf.mxu0
  %1292 = vmatprep.mubr.f32.mxu0 0.0
  %1293 = vmatmul.mubr.f32.gmra.mxu0 %v1082
  %v1294 = vpop.f32.mrf.mxu0
  %v1295 = vadd.f32 %v971, %v1294
  %v1296 = vpop.f32.mrf.mxu0
  %1297 = vmatprep.mubr.f32.mxu0 0.0
  %1298 = vmatmul.mubr.f32.gmra.mxu0 %v1085
  %v1299 = vpop.f32.mrf.mxu0
  %v1300 = vadd.f32 %v976, %v1299
  %v1301 = vpop.f32.mrf.mxu0
  %1302 = vmatprep.mubr.f32.mxu0 0.0
  %1303 = vmatmul.mubr.f32.gmra.mxu0 %v1088
  %v1304 = vpop.f32.mrf.mxu0
  %v1305 = vadd.f32 %v981, %v1304
  %v1306 = vpop.f32.mrf.mxu0
  %1307 = vmatprep.mubr.f32.mxu0 0.0
  %1308 = vmatmul.mubr.f32.gmra.mxu0 %v1091
  %v1309 = vpop.f32.mrf.mxu0
  %v1310 = vadd.f32 %v986, %v1309
  %v1311 = vpop.f32.mrf.mxu0
  %1312 = vmatprep.mubr.f32.mxu0 0.0
  %1313 = vmatmul.mubr.f32.gmra.mxu0 %v1094
  %v1314 = vpop.f32.mrf.mxu0
  %v1315 = vadd.f32 %v991, %v1314
  %v1316 = vpop.f32.mrf.mxu0
  %1317 = vmatprep.mubr.f32.mxu0 0.0
  %1318 = vmatmul.mubr.f32.gmra.mxu0 %v1097
  %v1319 = vpop.f32.mrf.mxu0
  %v1320 = vadd.f32 %v996, %v1319
  %v1321 = vpop.f32.mrf.mxu0
  %1322 = vmatprep.mubr.f32.mxu0 0.0
  %1323 = vmatmul.mubr.f32.gmra.mxu0 %v1100
  %v1324 = vpop.f32.mrf.mxu0
  %v1325 = vadd.f32 %v1001, %v1324
  %v1326 = vpop.f32.mrf.mxu0
  %1327 = vmatprep.mubr.f32.mxu0 0.0
  %1328 = vmatmul.mubr.f32.gmra.mxu0 %v1103
  %v1329 = vpop.f32.mrf.mxu0
  %v1330 = vadd.f32 %v1006, %v1329
  %v1331 = vpop.f32.mrf.mxu0
  %1332 = vdwg.mxu0
  %v1333 = vmax.f32 %v1175, 0.0
  %v1334 = vmax.f32 %v1180, 0.0
  %v1335 = vmax.f32 %v1185, 0.0
  %v1336 = vmax.f32 %v1190, 0.0
  %v1337 = vmax.f32 %v1195, 0.0
  %v1338 = vmax.f32 %v1200, 0.0
  %v1339 = vmax.f32 %v1205, 0.0
  %v1340 = vmax.f32 %v1210, 0.0
  %v1341 = vmax.f32 %v1215, 0.0
  %v1342 = vmax.f32 %v1220, 0.0
  %v1343 = vmax.f32 %v1225, 0.0
  %v1344 = vmax.f32 %v1230, 0.0
  %v1345 = vmax.f32 %v1235, 0.0
  %v1346 = vmax.f32 %v1240, 0.0
  %v1347 = vmax.f32 %v1245, 0.0
  %v1348 = vmax.f32 %v1250, 0.0
  %v1349 = vmax.f32 %v1255, 0.0
  %v1350 = vmax.f32 %v1260, 0.0
  %v1351 = vmax.f32 %v1265, 0.0
  %v1352 = vmax.f32 %v1270, 0.0
  %v1353 = vmax.f32 %v1275, 0.0
  %v1354 = vmax.f32 %v1280, 0.0
  %v1355 = vmax.f32 %v1285, 0.0
  %v1356 = vmax.f32 %v1290, 0.0
  %v1357 = vmax.f32 %v1295, 0.0
  %v1358 = vmax.f32 %v1300, 0.0
  %v1359 = vmax.f32 %v1305, 0.0
  %v1360 = vmax.f32 %v1310, 0.0
  %v1361 = vmax.f32 %v1315, 0.0
  %v1362 = vmax.f32 %v1320, 0.0
  %v1363 = vmax.f32 %v1325, 0.0
  %v1364 = vmax.f32 %v1330, 0.0
  %vm1365 = vcmask 457728
  %v1366 = vsel %vm1365, %v1333, 0.0
  %v1367 = vsel %vm1365, %v1334, 0.0
  %v1368 = vadd.f32 %v1366, %v1367
  %v1369 = vsel %vm1365, %v1335, 0.0
  %v1370 = vadd.f32 %v1368, %v1369
  %v1371 = vsel %vm1365, %v1336, 0.0
  %v1372 = vadd.f32 %v1370, %v1371
  %v1373 = vrot.slane %v1372, 4
  %v1374 = vadd.f32 %v1372, %v1373
  %v1375 = vrot.slane %v1374, 2
  %v1376 = vadd.f32 %v1374, %v1375
  %v1377 = vrot.slane %v1376, 1
  %v1378 = vadd.f32 %v1376, %v1377
  %v1379 = vsel %vm1365, %v1337, 0.0
  %v1380 = vsel %vm1365, %v1338, 0.0
  %v1381 = vadd.f32 %v1379, %v1380
  %v1382 = vsel %vm1365, %v1339, 0.0
  %v1383 = vadd.f32 %v1381, %v1382
  %v1384 = vsel %vm1365, %v1340, 0.0
  %v1385 = vadd.f32 %v1383, %v1384
  %v1386 = vrot.slane %v1385, 4
  %v1387 = vadd.f32 %v1385, %v1386
  %v1388 = vrot.slane %v1387, 2
  %v1389 = vadd.f32 %v1387, %v1388
  %v1390 = vrot.slane %v1389, 1
  %v1391 = vadd.f32 %v1389, %v1390
  %v1392 = vsel %vm1365, %v1341, 0.0
  %v1393 = vsel %vm1365, %v1342, 0.0
  %v1394 = vadd.f32 %v1392, %v1393
  %v1395 = vsel %vm1365, %v1343, 0.0
  %v1396 = vadd.f32 %v1394, %v1395
  %v1397 = vsel %vm1365, %v1344, 0.0
  %v1398 = vadd.f32 %v1396, %v1397
  %v1399 = vrot.slane %v1398, 4
  %v1400 = vadd.f32 %v1398, %v1399
  %v1401 = vrot.slane %v1400, 2
  %v1402 = vadd.f32 %v1400, %v1401
  %v1403 = vrot.slane %v1402, 1
  %v1404 = vadd.f32 %v1402, %v1403
  %v1405 = vsel %vm1365, %v1345, 0.0
  %v1406 = vsel %vm1365, %v1346, 0.0
  %v1407 = vadd.f32 %v1405, %v1406
  %v1408 = vsel %vm1365, %v1347, 0.0
  %v1409 = vadd.f32 %v1407, %v1408
  %v1410 = vsel %vm1365, %v1348, 0.0
  %v1411 = vadd.f32 %v1409, %v1410
  %v1412 = vrot.slane %v1411, 4
  %v1413 = vadd.f32 %v1411, %v1412
  %v1414 = vrot.slane %v1413, 2
  %v1415 = vadd.f32 %v1413, %v1414
  %v1416 = vrot.slane %v1415, 1
  %v1417 = vadd.f32 %v1415, %v1416
  %v1418 = vsel %vm1365, %v1349, 0.0
  %v1419 = vsel %vm1365, %v1350, 0.0
  %v1420 = vadd.f32 %v1418, %v1419
  %v1421 = vsel %vm1365, %v1351, 0.0
  %v1422 = vadd.f32 %v1420, %v1421
  %v1423 = vsel %vm1365, %v1352, 0.0
  %v1424 = vadd.f32 %v1422, %v1423
  %v1425 = vrot.slane %v1424, 4
  %v1426 = vadd.f32 %v1424, %v1425
  %v1427 = vrot.slane %v1426, 2
  %v1428 = vadd.f32 %v1426, %v1427
  %v1429 = vrot.slane %v1428, 1
  %v1430 = vadd.f32 %v1428, %v1429
  %v1431 = vsel %vm1365, %v1353, 0.0
  %v1432 = vsel %vm1365, %v1354, 0.0
  %v1433 = vadd.f32 %v1431, %v1432
  %v1434 = vsel %vm1365, %v1355, 0.0
  %v1435 = vadd.f32 %v1433, %v1434
  %v1436 = vsel %vm1365, %v1356, 0.0
  %v1437 = vadd.f32 %v1435, %v1436
  %v1438 = vrot.slane %v1437, 4
  %v1439 = vadd.f32 %v1437, %v1438
  %v1440 = vrot.slane %v1439, 2
  %v1441 = vadd.f32 %v1439, %v1440
  %v1442 = vrot.slane %v1441, 1
  %v1443 = vadd.f32 %v1441, %v1442
  %v1444 = vsel %vm1365, %v1357, 0.0
  %v1445 = vsel %vm1365, %v1358, 0.0
  %v1446 = vadd.f32 %v1444, %v1445
  %v1447 = vsel %vm1365, %v1359, 0.0
  %v1448 = vadd.f32 %v1446, %v1447
  %v1449 = vsel %vm1365, %v1360, 0.0
  %v1450 = vadd.f32 %v1448, %v1449
  %v1451 = vrot.slane %v1450, 4
  %v1452 = vadd.f32 %v1450, %v1451
  %v1453 = vrot.slane %v1452, 2
  %v1454 = vadd.f32 %v1452, %v1453
  %v1455 = vrot.slane %v1454, 1
  %v1456 = vadd.f32 %v1454, %v1455
  %v1457 = vsel %vm1365, %v1361, 0.0
  %v1458 = vsel %vm1365, %v1362, 0.0
  %v1459 = vadd.f32 %v1457, %v1458
  %v1460 = vsel %vm1365, %v1363, 0.0
  %v1461 = vadd.f32 %v1459, %v1460
  %v1462 = vsel %vm1365, %v1364, 0.0
  %v1463 = vadd.f32 %v1461, %v1462
  %v1464 = vrot.slane %v1463, 4
  %v1465 = vadd.f32 %v1463, %v1464
  %v1466 = vrot.slane %v1465, 2
  %v1467 = vadd.f32 %v1465, %v1466
  %v1468 = vrot.slane %v1467, 1
  %v1469 = vadd.f32 %v1467, %v1468
  %v1470 = vmul.f32 %v1378, %v767
  %v1471 = vmul.f32 %v1391, %v767
  %v1472 = vmul.f32 %v1404, %v767
  %v1473 = vmul.f32 %v1417, %v767
  %v1474 = vmul.f32 %v1430, %v767
  %v1475 = vmul.f32 %v1443, %v767
  %v1476 = vmul.f32 %v1456, %v767
  %v1477 = vmul.f32 %v1469, %v767
  %v1478 = vld [vmem:[%s5] sm:$0xff]
  %v1479 = vld [vmem:[%s5 + $0x8] sm:$0xff]
  %v1480 = vld [vmem:[%s5 + $0x10] sm:$0xff]
  %v1481 = vld [vmem:[%s5 + $0x18] sm:$0xff]
  %v1482 = vld [vmem:[%s5 + $0x20] sm:$0xff]
  %v1483 = vld [vmem:[%s5 + $0x28] sm:$0xff]
  %v1484 = vld [vmem:[%s5 + $0x30] sm:$0xff]
  %v1485 = vld [vmem:[%s5 + $0x38] sm:$0xff]
  %v1486 = vld [vmem:[%s5 + $0x40] sm:$0xff]
  %v1487 = vld [vmem:[%s5 + $0x48] sm:$0xff]
  %v1488 = vld [vmem:[%s5 + $0x50] sm:$0xff]
  %v1489 = vld [vmem:[%s5 + $0x58] sm:$0xff]
  %v1490 = vld [vmem:[%s5 + $0x60] sm:$0xff]
  %v1491 = vld [vmem:[%s5 + $0x68] sm:$0xff]
  %v1492 = vld [vmem:[%s5 + $0x70] sm:$0xff]
  %v1493 = vld [vmem:[%s5 + $0x78] sm:$0xff]
  %v1494 = vld [vmem:[%s5 + $0x80] sm:$0xff]
  %v1495 = vld [vmem:[%s5 + $0x88] sm:$0xff]
  %v1496 = vld [vmem:[%s5 + $0x90] sm:$0xff]
  %v1497 = vld [vmem:[%s5 + $0x98] sm:$0xff]
  %v1498 = vld [vmem:[%s5 + $0xa0] sm:$0xff]
  %v1499 = vld [vmem:[%s5 + $0xa8] sm:$0xff]
  %v1500 = vld [vmem:[%s5 + $0xb0] sm:$0xff]
  %v1501 = vld [vmem:[%s5 + $0xb8] sm:$0xff]
  %v1502 = vld [vmem:[%s5 + $0xc0] sm:$0xff]
  %v1503 = vld [vmem:[%s5 + $0xc8] sm:$0xff]
  %v1504 = vld [vmem:[%s5 + $0xd0] sm:$0xff]
  %v1505 = vld [vmem:[%s5 + $0xd8] sm:$0xff]
  %v1506 = vld [vmem:[%s5 + $0xe0] sm:$0xff]
  %v1507 = vld [vmem:[%s5 + $0xe8] sm:$0xff]
  %v1508 = vld [vmem:[%s5 + $0xf0] sm:$0xff]
  %v1509 = vld [vmem:[%s5 + $0xf8] sm:$0xff]
  %v1510 = vld [vmem:[%s2] sm:$0xff]
  %v1511 = vld [vmem:[%s2 + $0x8] sm:$0xff]
  %v1512 = vld [vmem:[%s2 + $0x10] sm:$0xff]
  %v1513 = vld [vmem:[%s2 + $0x18] sm:$0xff]
  %v1514 = vld [vmem:[%s2 + $0x20] sm:$0xff]
  %v1515 = vld [vmem:[%s2 + $0x28] sm:$0x7f]
  %v1516 = vld [vmem:[%s8] sm:$0xff]
  %v1517 = vld [vmem:[%s8 + $0x8] sm:$0xff]
  %v1518 = vld [vmem:[%s8 + $0x10] sm:$0xff]
  %v1519 = vld [vmem:[%s8 + $0x18] sm:$0xff]
  %v1520 = vld [vmem:[%s8 + $0x20] sm:$0xff]
  %v1521 = vld [vmem:[%s8 + $0x28] sm:$0xff]
  %v1522 = vld [vmem:[%s8 + $0x30] sm:$0xff]
  %v1523 = vld [vmem:[%s8 + $0x38] sm:$0xff]
  %v1524 = vld [vmem:[%s8 + $0x40] sm:$0xff]
  %v1525 = vld [vmem:[%s8 + $0x48] sm:$0xff]
  %v1526 = vld [vmem:[%s8 + $0x50] sm:$0xff]
  %v1527 = vld [vmem:[%s8 + $0x58] sm:$0xff]
  %v1528 = vld [vmem:[%s8 + $0x60] sm:$0xff]
  %v1529 = vld [vmem:[%s8 + $0x68] sm:$0xff]
  %v1530 = vld [vmem:[%s8 + $0x70] sm:$0xff]
  %v1531 = vld [vmem:[%s8 + $0x78] sm:$0xff]
  %v1532 = vld [vmem:[%s8 + $0x80] sm:$0xff]
  %v1533 = vld [vmem:[%s8 + $0x88] sm:$0xff]
  %v1534 = vld [vmem:[%s8 + $0x90] sm:$0xff]
  %v1535 = vld [vmem:[%s8 + $0x98] sm:$0xff]
  %v1536 = vld [vmem:[%s8 + $0xa0] sm:$0xff]
  %v1537 = vld [vmem:[%s8 + $0xa8] sm:$0xff]
  %v1538 = vld [vmem:[%s8 + $0xb0] sm:$0xff]
  %v1539 = vld [vmem:[%s8 + $0xb8] sm:$0xff]
  %v1540 = vld [vmem:[%s8 + $0xc0] sm:$0xff]
  %v1541 = vld [vmem:[%s8 + $0xc8] sm:$0xff]
  %v1542 = vld [vmem:[%s8 + $0xd0] sm:$0xff]
  %v1543 = vld [vmem:[%s8 + $0xd8] sm:$0xff]
  %v1544 = vld [vmem:[%s8 + $0xe0] sm:$0xff]
  %v1545 = vld [vmem:[%s8 + $0xe8] sm:$0xff]
  %v1546 = vld [vmem:[%s8 + $0xf0] sm:$0xff]
  %v1547 = vld [vmem:[%s8 + $0xf8] sm:$0xff]
  %1549 = vset.pattern.permute.xlu0 0
  %1550 = vperm.xlu0 %1549, %v1516
  %v1551 = vpop.permute.xlu0 %1550
  %1554 = vset.pattern.permute.xlu0 0
  %1555 = vperm.xlu0 %1554, %v1517
  %v1556 = vpop.permute.xlu0 %1555
  %1559 = vset.pattern.permute.xlu0 0
  %1560 = vperm.xlu0 %1559, %v1518
  %v1561 = vpop.permute.xlu0 %1560
  %1564 = vset.pattern.permute.xlu0 0
  %1565 = vperm.xlu0 %1564, %v1519
  %v1566 = vpop.permute.xlu0 %1565
  %1569 = vset.pattern.permute.xlu0 0
  %1570 = vperm.xlu0 %1569, %v1520
  %v1571 = vpop.permute.xlu0 %1570
  %1574 = vset.pattern.permute.xlu0 0
  %1575 = vperm.xlu0 %1574, %v1521
  %v1576 = vpop.permute.xlu0 %1575
  %1579 = vset.pattern.permute.xlu0 0
  %1580 = vperm.xlu0 %1579, %v1522
  %v1581 = vpop.permute.xlu0 %1580
  %1584 = vset.pattern.permute.xlu0 0
  %1585 = vperm.xlu0 %1584, %v1523
  %v1586 = vpop.permute.xlu0 %1585
  %1589 = vset.pattern.permute.xlu0 0
  %1590 = vperm.xlu0 %1589, %v1524
  %v1591 = vpop.permute.xlu0 %1590
  %1594 = vset.pattern.permute.xlu0 0
  %1595 = vperm.xlu0 %1594, %v1525
  %v1596 = vpop.permute.xlu0 %1595
  %1599 = vset.pattern.permute.xlu0 0
  %1600 = vperm.xlu0 %1599, %v1526
  %v1601 = vpop.permute.xlu0 %1600
  %1604 = vset.pattern.permute.xlu0 0
  %1605 = vperm.xlu0 %1604, %v1527
  %v1606 = vpop.permute.xlu0 %1605
  %1609 = vset.pattern.permute.xlu0 0
  %1610 = vperm.xlu0 %1609, %v1528
  %v1611 = vpop.permute.xlu0 %1610
  %1614 = vset.pattern.permute.xlu0 0
  %1615 = vperm.xlu0 %1614, %v1529
  %v1616 = vpop.permute.xlu0 %1615
  %1619 = vset.pattern.permute.xlu0 0
  %1620 = vperm.xlu0 %1619, %v1530
  %v1621 = vpop.permute.xlu0 %1620
  %1624 = vset.pattern.permute.xlu0 0
  %1625 = vperm.xlu0 %1624, %v1531
  %v1626 = vpop.permute.xlu0 %1625
  %1629 = vset.pattern.permute.xlu0 0
  %1630 = vperm.xlu0 %1629, %v1532
  %v1631 = vpop.permute.xlu0 %1630
  %1634 = vset.pattern.permute.xlu0 0
  %1635 = vperm.xlu0 %1634, %v1533
  %v1636 = vpop.permute.xlu0 %1635
  %1639 = vset.pattern.permute.xlu0 0
  %1640 = vperm.xlu0 %1639, %v1534
  %v1641 = vpop.permute.xlu0 %1640
  %1644 = vset.pattern.permute.xlu0 0
  %1645 = vperm.xlu0 %1644, %v1535
  %v1646 = vpop.permute.xlu0 %1645
  %1649 = vset.pattern.permute.xlu0 0
  %1650 = vperm.xlu0 %1649, %v1536
  %v1651 = vpop.permute.xlu0 %1650
  %1654 = vset.pattern.permute.xlu0 0
  %1655 = vperm.xlu0 %1654, %v1537
  %v1656 = vpop.permute.xlu0 %1655
  %1659 = vset.pattern.permute.xlu0 0
  %1660 = vperm.xlu0 %1659, %v1538
  %v1661 = vpop.permute.xlu0 %1660
  %1664 = vset.pattern.permute.xlu0 0
  %1665 = vperm.xlu0 %1664, %v1539
  %v1666 = vpop.permute.xlu0 %1665
  %1669 = vset.pattern.permute.xlu0 0
  %1670 = vperm.xlu0 %1669, %v1540
  %v1671 = vpop.permute.xlu0 %1670
  %1674 = vset.pattern.permute.xlu0 0
  %1675 = vperm.xlu0 %1674, %v1541
  %v1676 = vpop.permute.xlu0 %1675
  %1679 = vset.pattern.permute.xlu0 0
  %1680 = vperm.xlu0 %1679, %v1542
  %v1681 = vpop.permute.xlu0 %1680
  %1684 = vset.pattern.permute.xlu0 0
  %1685 = vperm.xlu0 %1684, %v1543
  %v1686 = vpop.permute.xlu0 %1685
  %1689 = vset.pattern.permute.xlu0 0
  %1690 = vperm.xlu0 %1689, %v1544
  %v1691 = vpop.permute.xlu0 %1690
  %1694 = vset.pattern.permute.xlu0 0
  %1695 = vperm.xlu0 %1694, %v1545
  %v1696 = vpop.permute.xlu0 %1695
  %1699 = vset.pattern.permute.xlu0 0
  %1700 = vperm.xlu0 %1699, %v1546
  %v1701 = vpop.permute.xlu0 %1700
  %1704 = vset.pattern.permute.xlu0 0
  %1705 = vperm.xlu0 %1704, %v1547
  %v1706 = vpop.permute.xlu0 %1705
  %vm1708 = vcmask 384000
  %v1710 = vsel %vm1708, %v1478, 0
  %v1713 = vsel %vm1708, %v1479, 0
  %v1716 = vsel %vm1708, %v1480, 0
  %v1719 = vsel %vm1708, %v1481, 0
  %v1722 = vsel %vm1708, %v1482, 0
  %v1725 = vsel %vm1708, %v1483, 0
  %v1728 = vsel %vm1708, %v1484, 0
  %v1731 = vsel %vm1708, %v1485, 0
  %v1734 = vsel %vm1708, %v1486, 0
  %v1737 = vsel %vm1708, %v1487, 0
  %v1740 = vsel %vm1708, %v1488, 0
  %v1743 = vsel %vm1708, %v1489, 0
  %v1746 = vsel %vm1708, %v1490, 0
  %v1749 = vsel %vm1708, %v1491, 0
  %v1752 = vsel %vm1708, %v1492, 0
  %v1755 = vsel %vm1708, %v1493, 0
  %v1758 = vsel %vm1708, %v1494, 0
  %v1761 = vsel %vm1708, %v1495, 0
  %v1764 = vsel %vm1708, %v1496, 0
  %v1767 = vsel %vm1708, %v1497, 0
  %v1770 = vsel %vm1708, %v1498, 0
  %v1773 = vsel %vm1708, %v1499, 0
  %v1776 = vsel %vm1708, %v1500, 0
  %v1779 = vsel %vm1708, %v1501, 0
  %v1782 = vsel %vm1708, %v1502, 0
  %v1785 = vsel %vm1708, %v1503, 0
  %v1788 = vsel %vm1708, %v1504, 0
  %v1791 = vsel %vm1708, %v1505, 0
  %v1794 = vsel %vm1708, %v1506, 0
  %v1797 = vsel %vm1708, %v1507, 0
  %v1800 = vsel %vm1708, %v1508, 0
  %v1803 = vsel %vm1708, %v1509, 0
  %v1806 = vsel %vm401, %v1515, 0
  %1808 = vmatprep.subr.mxu0 0.0
  %1809 = vmatpush1.msra.mxu0 0.0
  %1810 = vmatprep.subr.mxu0 0.0
  %1811 = vmatpush1.msra.mxu0 0.0
  %1812 = vmatprep.subr.mxu0 0.0
  %1813 = vmatpush1.msra.mxu0 0.0
  %1814 = vmatprep.subr.mxu0 0.0
  %1815 = vmatpush1.msra.mxu0 0.0
  %1816 = vmatprep.subr.mxu0 0.0
  %1817 = vmatpush1.msra.mxu0 0.0
  %1818 = vmatprep.subr.mxu0 0.0
  %1819 = vmatpush1.msra.mxu0 0.0
  %1820 = vmatprep.subr.mxu0 0.0
  %1821 = vmatpush1.msra.mxu0 0.0
  %1822 = vmatprep.subr.mxu0 0.0
  %1823 = vmatpush1.msra.mxu0 0.0
  %1824 = vmatprep.subr.mxu0 0.0
  %1825 = vmatpush1.msra.mxu0 0.0
  %1826 = vmatprep.subr.mxu0 0.0
  %1827 = vmatpush1.msra.mxu0 0.0
  %1828 = vmatprep.subr.mxu0 0.0
  %1829 = vmatpush1.msra.mxu0 %v1806
  %1830 = vmatprep.subr.mxu0 0.0
  %1831 = vmatpush1.msra.mxu0 %v1514
  %1832 = vmatprep.subr.mxu0 0.0
  %1833 = vmatpush1.msra.mxu0 %v1513
  %1834 = vmatprep.subr.mxu0 0.0
  %1835 = vmatpush1.msra.mxu0 %v1512
  %1836 = vmatprep.subr.mxu0 0.0
  %1837 = vmatpush1.msra.mxu0 %v1511
  %1838 = vmatprep.subr.mxu0 0.0
  %1839 = vmatpush1.msra.mxu0 %v1510
  %1840 = vmatprep.subr.mxu0 0.0
  %1841 = vmatpush2.msra.mxu0 0.0
  %1842 = vmatprep.subr.mxu0 0.0
  %1843 = vmatpush2.msra.mxu0 0.0
  %1844 = vmatprep.subr.mxu0 0.0
  %1845 = vmatpush2.msra.mxu0 0.0
  %1846 = vmatprep.subr.mxu0 0.0
  %1847 = vmatpush2.msra.mxu0 0.0
  %1848 = vmatprep.subr.mxu0 0.0
  %1849 = vmatpush2.msra.mxu0 0.0
  %1850 = vmatprep.subr.mxu0 0.0
  %1851 = vmatpush2.msra.mxu0 0.0
  %1852 = vmatprep.subr.mxu0 0.0
  %1853 = vmatpush2.msra.mxu0 0.0
  %1854 = vmatprep.subr.mxu0 0.0
  %1855 = vmatpush2.msra.mxu0 0.0
  %1856 = vmatprep.subr.mxu0 0.0
  %1857 = vmatpush2.msra.mxu0 0.0
  %1858 = vmatprep.subr.mxu0 0.0
  %1859 = vmatpush2.msra.mxu0 0.0
  %1860 = vmatprep.subr.mxu0 0.0
  %1861 = vmatpush2.msra.mxu0 0.0
  %1862 = vmatprep.subr.mxu0 0.0
  %1863 = vmatpush2.msra.mxu0 0.0
  %1864 = vmatprep.subr.mxu0 0.0
  %1865 = vmatpush2.msra.mxu0 0.0
  %1866 = vmatprep.subr.mxu0 0.0
  %1867 = vmatpush2.msra.mxu0 0.0
  %1868 = vmatprep.subr.mxu0 0.0
  %1869 = vmatpush2.msra.mxu0 0.0
  %1870 = vmatprep.subr.mxu0 0.0
  %1871 = vmatpush2.msra.mxu0 0.0
  %1872 = vmatprep.mubr.f32.mxu0 0.0
  %1873 = vmatmul.mubr.f32.gmra.mxu0 %v1710
  %v1874 = vpop.f32.mrf.mxu0
  %v1875 = vadd.f32 %v1551, %v1874
  %v1876 = vpop.f32.mrf.mxu0
  %1877 = vmatprep.mubr.f32.mxu0 0.0
  %1878 = vmatmul.mubr.f32.gmra.mxu0 %v1713
  %v1879 = vpop.f32.mrf.mxu0
  %v1880 = vadd.f32 %v1556, %v1879
  %v1881 = vpop.f32.mrf.mxu0
  %1882 = vmatprep.mubr.f32.mxu0 0.0
  %1883 = vmatmul.mubr.f32.gmra.mxu0 %v1716
  %v1884 = vpop.f32.mrf.mxu0
  %v1885 = vadd.f32 %v1561, %v1884
  %v1886 = vpop.f32.mrf.mxu0
  %1887 = vmatprep.mubr.f32.mxu0 0.0
  %1888 = vmatmul.mubr.f32.gmra.mxu0 %v1719
  %v1889 = vpop.f32.mrf.mxu0
  %v1890 = vadd.f32 %v1566, %v1889
  %v1891 = vpop.f32.mrf.mxu0
  %1892 = vmatprep.mubr.f32.mxu0 0.0
  %1893 = vmatmul.mubr.f32.gmra.mxu0 %v1722
  %v1894 = vpop.f32.mrf.mxu0
  %v1895 = vadd.f32 %v1571, %v1894
  %v1896 = vpop.f32.mrf.mxu0
  %1897 = vmatprep.mubr.f32.mxu0 0.0
  %1898 = vmatmul.mubr.f32.gmra.mxu0 %v1725
  %v1899 = vpop.f32.mrf.mxu0
  %v1900 = vadd.f32 %v1576, %v1899
  %v1901 = vpop.f32.mrf.mxu0
  %1902 = vmatprep.mubr.f32.mxu0 0.0
  %1903 = vmatmul.mubr.f32.gmra.mxu0 %v1728
  %v1904 = vpop.f32.mrf.mxu0
  %v1905 = vadd.f32 %v1581, %v1904
  %v1906 = vpop.f32.mrf.mxu0
  %1907 = vmatprep.mubr.f32.mxu0 0.0
  %1908 = vmatmul.mubr.f32.gmra.mxu0 %v1731
  %v1909 = vpop.f32.mrf.mxu0
  %v1910 = vadd.f32 %v1586, %v1909
  %v1911 = vpop.f32.mrf.mxu0
  %1912 = vmatprep.mubr.f32.mxu0 0.0
  %1913 = vmatmul.mubr.f32.gmra.mxu0 %v1734
  %v1914 = vpop.f32.mrf.mxu0
  %v1915 = vadd.f32 %v1591, %v1914
  %v1916 = vpop.f32.mrf.mxu0
  %1917 = vmatprep.mubr.f32.mxu0 0.0
  %1918 = vmatmul.mubr.f32.gmra.mxu0 %v1737
  %v1919 = vpop.f32.mrf.mxu0
  %v1920 = vadd.f32 %v1596, %v1919
  %v1921 = vpop.f32.mrf.mxu0
  %1922 = vmatprep.mubr.f32.mxu0 0.0
  %1923 = vmatmul.mubr.f32.gmra.mxu0 %v1740
  %v1924 = vpop.f32.mrf.mxu0
  %v1925 = vadd.f32 %v1601, %v1924
  %v1926 = vpop.f32.mrf.mxu0
  %1927 = vmatprep.mubr.f32.mxu0 0.0
  %1928 = vmatmul.mubr.f32.gmra.mxu0 %v1743
  %v1929 = vpop.f32.mrf.mxu0
  %v1930 = vadd.f32 %v1606, %v1929
  %v1931 = vpop.f32.mrf.mxu0
  %1932 = vmatprep.mubr.f32.mxu0 0.0
  %1933 = vmatmul.mubr.f32.gmra.mxu0 %v1746
  %v1934 = vpop.f32.mrf.mxu0
  %v1935 = vadd.f32 %v1611, %v1934
  %v1936 = vpop.f32.mrf.mxu0
  %1937 = vmatprep.mubr.f32.mxu0 0.0
  %1938 = vmatmul.mubr.f32.gmra.mxu0 %v1749
  %v1939 = vpop.f32.mrf.mxu0
  %v1940 = vadd.f32 %v1616, %v1939
  %v1941 = vpop.f32.mrf.mxu0
  %1942 = vmatprep.mubr.f32.mxu0 0.0
  %1943 = vmatmul.mubr.f32.gmra.mxu0 %v1752
  %v1944 = vpop.f32.mrf.mxu0
  %v1945 = vadd.f32 %v1621, %v1944
  %v1946 = vpop.f32.mrf.mxu0
  %1947 = vmatprep.mubr.f32.mxu0 0.0
  %1948 = vmatmul.mubr.f32.gmra.mxu0 %v1755
  %v1949 = vpop.f32.mrf.mxu0
  %v1950 = vadd.f32 %v1626, %v1949
  %v1951 = vpop.f32.mrf.mxu0
  %1952 = vmatprep.mubr.f32.mxu0 0.0
  %1953 = vmatmul.mubr.f32.gmra.mxu0 %v1758
  %v1954 = vpop.f32.mrf.mxu0
  %v1955 = vadd.f32 %v1631, %v1954
  %v1956 = vpop.f32.mrf.mxu0
  %1957 = vmatprep.mubr.f32.mxu0 0.0
  %1958 = vmatmul.mubr.f32.gmra.mxu0 %v1761
  %v1959 = vpop.f32.mrf.mxu0
  %v1960 = vadd.f32 %v1636, %v1959
  %v1961 = vpop.f32.mrf.mxu0
  %1962 = vmatprep.mubr.f32.mxu0 0.0
  %1963 = vmatmul.mubr.f32.gmra.mxu0 %v1764
  %v1964 = vpop.f32.mrf.mxu0
  %v1965 = vadd.f32 %v1641, %v1964
  %v1966 = vpop.f32.mrf.mxu0
  %1967 = vmatprep.mubr.f32.mxu0 0.0
  %1968 = vmatmul.mubr.f32.gmra.mxu0 %v1767
  %v1969 = vpop.f32.mrf.mxu0
  %v1970 = vadd.f32 %v1646, %v1969
  %v1971 = vpop.f32.mrf.mxu0
  %1972 = vmatprep.mubr.f32.mxu0 0.0
  %1973 = vmatmul.mubr.f32.gmra.mxu0 %v1770
  %v1974 = vpop.f32.mrf.mxu0
  %v1975 = vadd.f32 %v1651, %v1974
  %v1976 = vpop.f32.mrf.mxu0
  %1977 = vmatprep.mubr.f32.mxu0 0.0
  %1978 = vmatmul.mubr.f32.gmra.mxu0 %v1773
  %v1979 = vpop.f32.mrf.mxu0
  %v1980 = vadd.f32 %v1656, %v1979
  %v1981 = vpop.f32.mrf.mxu0
  %1982 = vmatprep.mubr.f32.mxu0 0.0
  %1983 = vmatmul.mubr.f32.gmra.mxu0 %v1776
  %v1984 = vpop.f32.mrf.mxu0
  %v1985 = vadd.f32 %v1661, %v1984
  %v1986 = vpop.f32.mrf.mxu0
  %1987 = vmatprep.mubr.f32.mxu0 0.0
  %1988 = vmatmul.mubr.f32.gmra.mxu0 %v1779
  %v1989 = vpop.f32.mrf.mxu0
  %v1990 = vadd.f32 %v1666, %v1989
  %v1991 = vpop.f32.mrf.mxu0
  %1992 = vmatprep.mubr.f32.mxu0 0.0
  %1993 = vmatmul.mubr.f32.gmra.mxu0 %v1782
  %v1994 = vpop.f32.mrf.mxu0
  %v1995 = vadd.f32 %v1671, %v1994
  %v1996 = vpop.f32.mrf.mxu0
  %1997 = vmatprep.mubr.f32.mxu0 0.0
  %1998 = vmatmul.mubr.f32.gmra.mxu0 %v1785
  %v1999 = vpop.f32.mrf.mxu0
  %v2000 = vadd.f32 %v1676, %v1999
  %v2001 = vpop.f32.mrf.mxu0
  %2002 = vmatprep.mubr.f32.mxu0 0.0
  %2003 = vmatmul.mubr.f32.gmra.mxu0 %v1788
  %v2004 = vpop.f32.mrf.mxu0
  %v2005 = vadd.f32 %v1681, %v2004
  %v2006 = vpop.f32.mrf.mxu0
  %2007 = vmatprep.mubr.f32.mxu0 0.0
  %2008 = vmatmul.mubr.f32.gmra.mxu0 %v1791
  %v2009 = vpop.f32.mrf.mxu0
  %v2010 = vadd.f32 %v1686, %v2009
  %v2011 = vpop.f32.mrf.mxu0
  %2012 = vmatprep.mubr.f32.mxu0 0.0
  %2013 = vmatmul.mubr.f32.gmra.mxu0 %v1794
  %v2014 = vpop.f32.mrf.mxu0
  %v2015 = vadd.f32 %v1691, %v2014
  %v2016 = vpop.f32.mrf.mxu0
  %2017 = vmatprep.mubr.f32.mxu0 0.0
  %2018 = vmatmul.mubr.f32.gmra.mxu0 %v1797
  %v2019 = vpop.f32.mrf.mxu0
  %v2020 = vadd.f32 %v1696, %v2019
  %v2021 = vpop.f32.mrf.mxu0
  %2022 = vmatprep.mubr.f32.mxu0 0.0
  %2023 = vmatmul.mubr.f32.gmra.mxu0 %v1800
  %v2024 = vpop.f32.mrf.mxu0
  %v2025 = vadd.f32 %v1701, %v2024
  %v2026 = vpop.f32.mrf.mxu0
  %2027 = vmatprep.mubr.f32.mxu0 0.0
  %2028 = vmatmul.mubr.f32.gmra.mxu0 %v1803
  %v2029 = vpop.f32.mrf.mxu0
  %v2030 = vadd.f32 %v1706, %v2029
  %v2031 = vpop.f32.mrf.mxu0
  %2032 = vdwg.mxu0
  %v2033 = vmax.f32 %v1875, 0.0
  %v2034 = vmax.f32 %v1880, 0.0
  %v2035 = vmax.f32 %v1885, 0.0
  %v2036 = vmax.f32 %v1890, 0.0
  %v2037 = vmax.f32 %v1895, 0.0
  %v2038 = vmax.f32 %v1900, 0.0
  %v2039 = vmax.f32 %v1905, 0.0
  %v2040 = vmax.f32 %v1910, 0.0
  %v2041 = vmax.f32 %v1915, 0.0
  %v2042 = vmax.f32 %v1920, 0.0
  %v2043 = vmax.f32 %v1925, 0.0
  %v2044 = vmax.f32 %v1930, 0.0
  %v2045 = vmax.f32 %v1935, 0.0
  %v2046 = vmax.f32 %v1940, 0.0
  %v2047 = vmax.f32 %v1945, 0.0
  %v2048 = vmax.f32 %v1950, 0.0
  %v2049 = vmax.f32 %v1955, 0.0
  %v2050 = vmax.f32 %v1960, 0.0
  %v2051 = vmax.f32 %v1965, 0.0
  %v2052 = vmax.f32 %v1970, 0.0
  %v2053 = vmax.f32 %v1975, 0.0
  %v2054 = vmax.f32 %v1980, 0.0
  %v2055 = vmax.f32 %v1985, 0.0
  %v2056 = vmax.f32 %v1990, 0.0
  %v2057 = vmax.f32 %v1995, 0.0
  %v2058 = vmax.f32 %v2000, 0.0
  %v2059 = vmax.f32 %v2005, 0.0
  %v2060 = vmax.f32 %v2010, 0.0
  %v2061 = vmax.f32 %v2015, 0.0
  %v2062 = vmax.f32 %v2020, 0.0
  %v2063 = vmax.f32 %v2025, 0.0
  %v2064 = vmax.f32 %v2030, 0.0
  %v2065 = vsel %vm1365, %v2033, 0.0
  %v2066 = vsel %vm1365, %v2034, 0.0
  %v2067 = vadd.f32 %v2065, %v2066
  %v2068 = vsel %vm1365, %v2035, 0.0
  %v2069 = vadd.f32 %v2067, %v2068
  %v2070 = vsel %vm1365, %v2036, 0.0
  %v2071 = vadd.f32 %v2069, %v2070
  %v2072 = vrot.slane %v2071, 4
  %v2073 = vadd.f32 %v2071, %v2072
  %v2074 = vrot.slane %v2073, 2
  %v2075 = vadd.f32 %v2073, %v2074
  %v2076 = vrot.slane %v2075, 1
  %v2077 = vadd.f32 %v2075, %v2076
  %v2078 = vsel %vm1365, %v2037, 0.0
  %v2079 = vsel %vm1365, %v2038, 0.0
  %v2080 = vadd.f32 %v2078, %v2079
  %v2081 = vsel %vm1365, %v2039, 0.0
  %v2082 = vadd.f32 %v2080, %v2081
  %v2083 = vsel %vm1365, %v2040, 0.0
  %v2084 = vadd.f32 %v2082, %v2083
  %v2085 = vrot.slane %v2084, 4
  %v2086 = vadd.f32 %v2084, %v2085
  %v2087 = vrot.slane %v2086, 2
  %v2088 = vadd.f32 %v2086, %v2087
  %v2089 = vrot.slane %v2088, 1
  %v2090 = vadd.f32 %v2088, %v2089
  %v2091 = vsel %vm1365, %v2041, 0.0
  %v2092 = vsel %vm1365, %v2042, 0.0
  %v2093 = vadd.f32 %v2091, %v2092
  %v2094 = vsel %vm1365, %v2043, 0.0
  %v2095 = vadd.f32 %v2093, %v2094
  %v2096 = vsel %vm1365, %v2044, 0.0
  %v2097 = vadd.f32 %v2095, %v2096
  %v2098 = vrot.slane %v2097, 4
  %v2099 = vadd.f32 %v2097, %v2098
  %v2100 = vrot.slane %v2099, 2
  %v2101 = vadd.f32 %v2099, %v2100
  %v2102 = vrot.slane %v2101, 1
  %v2103 = vadd.f32 %v2101, %v2102
  %v2104 = vsel %vm1365, %v2045, 0.0
  %v2105 = vsel %vm1365, %v2046, 0.0
  %v2106 = vadd.f32 %v2104, %v2105
  %v2107 = vsel %vm1365, %v2047, 0.0
  %v2108 = vadd.f32 %v2106, %v2107
  %v2109 = vsel %vm1365, %v2048, 0.0
  %v2110 = vadd.f32 %v2108, %v2109
  %v2111 = vrot.slane %v2110, 4
  %v2112 = vadd.f32 %v2110, %v2111
  %v2113 = vrot.slane %v2112, 2
  %v2114 = vadd.f32 %v2112, %v2113
  %v2115 = vrot.slane %v2114, 1
  %v2116 = vadd.f32 %v2114, %v2115
  %v2117 = vsel %vm1365, %v2049, 0.0
  %v2118 = vsel %vm1365, %v2050, 0.0
  %v2119 = vadd.f32 %v2117, %v2118
  %v2120 = vsel %vm1365, %v2051, 0.0
  %v2121 = vadd.f32 %v2119, %v2120
  %v2122 = vsel %vm1365, %v2052, 0.0
  %v2123 = vadd.f32 %v2121, %v2122
  %v2124 = vrot.slane %v2123, 4
  %v2125 = vadd.f32 %v2123, %v2124
  %v2126 = vrot.slane %v2125, 2
  %v2127 = vadd.f32 %v2125, %v2126
  %v2128 = vrot.slane %v2127, 1
  %v2129 = vadd.f32 %v2127, %v2128
  %v2130 = vsel %vm1365, %v2053, 0.0
  %v2131 = vsel %vm1365, %v2054, 0.0
  %v2132 = vadd.f32 %v2130, %v2131
  %v2133 = vsel %vm1365, %v2055, 0.0
  %v2134 = vadd.f32 %v2132, %v2133
  %v2135 = vsel %vm1365, %v2056, 0.0
  %v2136 = vadd.f32 %v2134, %v2135
  %v2137 = vrot.slane %v2136, 4
  %v2138 = vadd.f32 %v2136, %v2137
  %v2139 = vrot.slane %v2138, 2
  %v2140 = vadd.f32 %v2138, %v2139
  %v2141 = vrot.slane %v2140, 1
  %v2142 = vadd.f32 %v2140, %v2141
  %v2143 = vsel %vm1365, %v2057, 0.0
  %v2144 = vsel %vm1365, %v2058, 0.0
  %v2145 = vadd.f32 %v2143, %v2144
  %v2146 = vsel %vm1365, %v2059, 0.0
  %v2147 = vadd.f32 %v2145, %v2146
  %v2148 = vsel %vm1365, %v2060, 0.0
  %v2149 = vadd.f32 %v2147, %v2148
  %v2150 = vrot.slane %v2149, 4
  %v2151 = vadd.f32 %v2149, %v2150
  %v2152 = vrot.slane %v2151, 2
  %v2153 = vadd.f32 %v2151, %v2152
  %v2154 = vrot.slane %v2153, 1
  %v2155 = vadd.f32 %v2153, %v2154
  %v2156 = vsel %vm1365, %v2061, 0.0
  %v2157 = vsel %vm1365, %v2062, 0.0
  %v2158 = vadd.f32 %v2156, %v2157
  %v2159 = vsel %vm1365, %v2063, 0.0
  %v2160 = vadd.f32 %v2158, %v2159
  %v2161 = vsel %vm1365, %v2064, 0.0
  %v2162 = vadd.f32 %v2160, %v2161
  %v2163 = vrot.slane %v2162, 4
  %v2164 = vadd.f32 %v2162, %v2163
  %v2165 = vrot.slane %v2164, 2
  %v2166 = vadd.f32 %v2164, %v2165
  %v2167 = vrot.slane %v2166, 1
  %v2168 = vadd.f32 %v2166, %v2167
  %v2169 = vmul.f32 %v2077, %v767
  %v2170 = vmul.f32 %v2090, %v767
  %v2171 = vmul.f32 %v2103, %v767
  %v2172 = vmul.f32 %v2116, %v767
  %v2173 = vmul.f32 %v2129, %v767
  %v2174 = vmul.f32 %v2142, %v767
  %v2175 = vmul.f32 %v2155, %v767
  %v2176 = vmul.f32 %v2168, %v767
  %vm2185 = vcmask 1041409
  %v2186 = vsel %vm2185, %v769, %v768
  %vm2187 = vcmask 1042434
  %v2188 = vsel %vm2187, %v770, %v2186
  %vm2189 = vcmask 1043459
  %v2190 = vsel %vm2189, %v771, %v2188
  %vm2191 = vcmask 1044484
  %v2192 = vsel %vm2191, %v772, %v2190
  %vm2193 = vcmask 1045509
  %v2194 = vsel %vm2193, %v773, %v2192
  %vm2195 = vcmask 1046534
  %v2196 = vsel %vm2195, %v774, %v2194
  %vm2197 = vcmask 1047559
  %v2198 = vsel %vm2197, %v775, %v2196
  %v2200 = vsel %vm662, %v2198, 0.0
  %2201 = vadd.xlane.f32.xlu0 %v2200
  %v2202 = vpop.xlane.xlu0 %2201
  %v2211 = vsel %vm2185, %v1471, %v1470
  %v2212 = vsel %vm2187, %v1472, %v2211
  %v2213 = vsel %vm2189, %v1473, %v2212
  %v2214 = vsel %vm2191, %v1474, %v2213
  %v2215 = vsel %vm2193, %v1475, %v2214
  %v2216 = vsel %vm2195, %v1476, %v2215
  %v2217 = vsel %vm2197, %v1477, %v2216
  %v2219 = vsel %vm1365, %v2217, 0.0
  %2220 = vadd.xlane.f32.xlu0 %v2219
  %v2221 = vpop.xlane.xlu0 %2220
  %v2222 = vadd.f32 %v2202, %v2221
  %v2231 = vsel %vm2185, %v2170, %v2169
  %v2232 = vsel %vm2187, %v2171, %v2231
  %v2233 = vsel %vm2189, %v2172, %v2232
  %v2234 = vsel %vm2191, %v2173, %v2233
  %v2235 = vsel %vm2193, %v2174, %v2234
  %v2236 = vsel %vm2195, %v2175, %v2235
  %v2237 = vsel %vm2197, %v2176, %v2236
  %v2239 = vsel %vm1365, %v2237, 0.0
  %2240 = vadd.xlane.f32.xlu0 %v2239
  %v2241 = vpop.xlane.xlu0 %2240
  %v2242 = vadd.f32 %v2222, %v2241
  %v2243 = vrcp.pop 160.0
  %v2244 = vmul.f32 %v2242, %v2243
  %v2246 = vrot.slane %v2244, 1
  %v2247 = vrot.slane %v2244, 2
  %v2248 = vrot.slane %v2244, 3
  %v2249 = vrot.slane %v2244, 4
  %v2250 = vrot.slane %v2244, 5
  %v2251 = vrot.slane %v2244, 6
  %v2252 = vrot.slane %v2244, 7
  %v2261 = vsub.f32 %v768, %v2244
  %v2262 = vsub.f32 %v769, %v2246
  %v2263 = vsub.f32 %v770, %v2247
  %v2264 = vsub.f32 %v771, %v2248
  %v2265 = vsub.f32 %v772, %v2249
  %v2266 = vsub.f32 %v773, %v2250
  %v2267 = vsub.f32 %v774, %v2251
  %v2268 = vsub.f32 %v775, %v2252
  %v2269 = vsub.f32 %v1470, %v2244
  %v2270 = vsub.f32 %v1471, %v2246
  %v2271 = vsub.f32 %v1472, %v2247
  %v2272 = vsub.f32 %v1473, %v2248
  %v2273 = vsub.f32 %v1474, %v2249
  %v2274 = vsub.f32 %v1475, %v2250
  %v2275 = vsub.f32 %v1476, %v2251
  %v2276 = vsub.f32 %v1477, %v2252
  %v2277 = vsub.f32 %v2169, %v2244
  %v2278 = vsub.f32 %v2170, %v2246
  %v2279 = vsub.f32 %v2171, %v2247
  %v2280 = vsub.f32 %v2172, %v2248
  %v2281 = vsub.f32 %v2173, %v2249
  %v2282 = vsub.f32 %v2174, %v2250
  %v2283 = vsub.f32 %v2175, %v2251
  %v2284 = vsub.f32 %v2176, %v2252
  %v2285 = vmul.f32 %v2261, %v2261
  %v2286 = vmul.f32 %v2262, %v2262
  %v2287 = vmul.f32 %v2263, %v2263
  %v2288 = vmul.f32 %v2264, %v2264
  %v2289 = vmul.f32 %v2265, %v2265
  %v2290 = vmul.f32 %v2266, %v2266
  %v2291 = vmul.f32 %v2267, %v2267
  %v2292 = vmul.f32 %v2268, %v2268
  %v2301 = vrot.slane %v2286, 7
  %v2302 = vsel %vm2185, %v2301, %v2285
  %v2303 = vrot.slane %v2287, 6
  %v2304 = vsel %vm2187, %v2303, %v2302
  %v2305 = vrot.slane %v2288, 5
  %v2306 = vsel %vm2189, %v2305, %v2304
  %v2307 = vrot.slane %v2289, 4
  %v2308 = vsel %vm2191, %v2307, %v2306
  %v2309 = vrot.slane %v2290, 3
  %v2310 = vsel %vm2193, %v2309, %v2308
  %v2311 = vrot.slane %v2291, 2
  %v2312 = vsel %vm2195, %v2311, %v2310
  %v2313 = vrot.slane %v2292, 1
  %v2314 = vsel %vm2197, %v2313, %v2312
  %v2316 = vsel %vm662, %v2314, 0.0
  %2317 = vadd.xlane.f32.xlu0 %v2316
  %v2318 = vpop.xlane.xlu0 %2317
  %v2319 = vmul.f32 %v2269, %v2269
  %v2320 = vmul.f32 %v2270, %v2270
  %v2321 = vmul.f32 %v2271, %v2271
  %v2322 = vmul.f32 %v2272, %v2272
  %v2323 = vmul.f32 %v2273, %v2273
  %v2324 = vmul.f32 %v2274, %v2274
  %v2325 = vmul.f32 %v2275, %v2275
  %v2326 = vmul.f32 %v2276, %v2276
  %v2335 = vrot.slane %v2320, 7
  %v2336 = vsel %vm2185, %v2335, %v2319
  %v2337 = vrot.slane %v2321, 6
  %v2338 = vsel %vm2187, %v2337, %v2336
  %v2339 = vrot.slane %v2322, 5
  %v2340 = vsel %vm2189, %v2339, %v2338
  %v2341 = vrot.slane %v2323, 4
  %v2342 = vsel %vm2191, %v2341, %v2340
  %v2343 = vrot.slane %v2324, 3
  %v2344 = vsel %vm2193, %v2343, %v2342
  %v2345 = vrot.slane %v2325, 2
  %v2346 = vsel %vm2195, %v2345, %v2344
  %v2347 = vrot.slane %v2326, 1
  %v2348 = vsel %vm2197, %v2347, %v2346
  %v2350 = vsel %vm1365, %v2348, 0.0
  %2351 = vadd.xlane.f32.xlu0 %v2350
  %v2352 = vpop.xlane.xlu0 %2351
  %v2353 = vadd.f32 %v2318, %v2352
  %v2354 = vmul.f32 %v2277, %v2277
  %v2355 = vmul.f32 %v2278, %v2278
  %v2356 = vmul.f32 %v2279, %v2279
  %v2357 = vmul.f32 %v2280, %v2280
  %v2358 = vmul.f32 %v2281, %v2281
  %v2359 = vmul.f32 %v2282, %v2282
  %v2360 = vmul.f32 %v2283, %v2283
  %v2361 = vmul.f32 %v2284, %v2284
  %v2370 = vrot.slane %v2355, 7
  %v2371 = vsel %vm2185, %v2370, %v2354
  %v2372 = vrot.slane %v2356, 6
  %v2373 = vsel %vm2187, %v2372, %v2371
  %v2374 = vrot.slane %v2357, 5
  %v2375 = vsel %vm2189, %v2374, %v2373
  %v2376 = vrot.slane %v2358, 4
  %v2377 = vsel %vm2191, %v2376, %v2375
  %v2378 = vrot.slane %v2359, 3
  %v2379 = vsel %vm2193, %v2378, %v2377
  %v2380 = vrot.slane %v2360, 2
  %v2381 = vsel %vm2195, %v2380, %v2379
  %v2382 = vrot.slane %v2361, 1
  %v2383 = vsel %vm2197, %v2382, %v2381
  %v2385 = vsel %vm1365, %v2383, 0.0
  %2386 = vadd.xlane.f32.xlu0 %v2385
  %v2387 = vpop.xlane.xlu0 %2386
  %v2388 = vadd.f32 %v2353, %v2387
  %v2389 = vmul.f32 %v2388, %v2243
  %v2390 = vadd.f32 %v2389, 1e-05
  %v2391 = vrsqrt.pop %v2390
  %v2392 = vld [vmem:[%s9] sm:$0xff]
  %v2393 = vmul.f32 %v2391, %v2392
  %2395 = vset.pattern.permute.xlu0 0
  %2396 = vperm.xlu0 %2395, %v2393
  %v2397 = vpop.permute.xlu0 %2396
  %v2398 = vrot.slane %v2397, 1
  %v2399 = vrot.slane %v2397, 2
  %v2400 = vrot.slane %v2397, 3
  %v2401 = vrot.slane %v2397, 4
  %v2402 = vrot.slane %v2397, 5
  %v2403 = vrot.slane %v2397, 6
  %v2404 = vrot.slane %v2397, 7
  %v2413 = vmul.f32 %v2261, %v2397
  %v2414 = vmul.f32 %v2262, %v2398
  %v2415 = vmul.f32 %v2263, %v2399
  %v2416 = vmul.f32 %v2264, %v2400
  %v2417 = vmul.f32 %v2265, %v2401
  %v2418 = vmul.f32 %v2266, %v2402
  %v2419 = vmul.f32 %v2267, %v2403
  %v2420 = vmul.f32 %v2268, %v2404
  %v2421 = vld [vmem:[%s10] sm:$0xff]
  %2423 = vset.pattern.permute.xlu0 0
  %2424 = vperm.xlu0 %2423, %v2421
  %v2425 = vpop.permute.xlu0 %2424
  %v2426 = vrot.slane %v2425, 1
  %v2427 = vrot.slane %v2425, 2
  %v2428 = vrot.slane %v2425, 3
  %v2429 = vrot.slane %v2425, 4
  %v2430 = vrot.slane %v2425, 5
  %v2431 = vrot.slane %v2425, 6
  %v2432 = vrot.slane %v2425, 7
  %v2441 = vadd.f32 %v2413, %v2425
  %v2442 = vadd.f32 %v2414, %v2426
  %v2443 = vadd.f32 %v2415, %v2427
  %v2444 = vadd.f32 %v2416, %v2428
  %v2445 = vadd.f32 %v2417, %v2429
  %v2446 = vadd.f32 %v2418, %v2430
  %v2447 = vadd.f32 %v2419, %v2431
  %v2448 = vadd.f32 %v2420, %v2432
  %v2449 = vmul.f32 %v2269, %v2397
  %v2450 = vmul.f32 %v2270, %v2398
  %v2451 = vmul.f32 %v2271, %v2399
  %v2452 = vmul.f32 %v2272, %v2400
  %v2453 = vmul.f32 %v2273, %v2401
  %v2454 = vmul.f32 %v2274, %v2402
  %v2455 = vmul.f32 %v2275, %v2403
  %v2456 = vmul.f32 %v2276, %v2404
  %v2457 = vadd.f32 %v2449, %v2425
  %v2458 = vadd.f32 %v2450, %v2426
  %v2459 = vadd.f32 %v2451, %v2427
  %v2460 = vadd.f32 %v2452, %v2428
  %v2461 = vadd.f32 %v2453, %v2429
  %v2462 = vadd.f32 %v2454, %v2430
  %v2463 = vadd.f32 %v2455, %v2431
  %v2464 = vadd.f32 %v2456, %v2432
  %v2465 = vmul.f32 %v2277, %v2397
  %v2466 = vmul.f32 %v2278, %v2398
  %v2467 = vmul.f32 %v2279, %v2399
  %v2468 = vmul.f32 %v2280, %v2400
  %v2469 = vmul.f32 %v2281, %v2401
  %v2470 = vmul.f32 %v2282, %v2402
  %v2471 = vmul.f32 %v2283, %v2403
  %v2472 = vmul.f32 %v2284, %v2404
  %v2473 = vadd.f32 %v2465, %v2425
  %v2474 = vadd.f32 %v2466, %v2426
  %v2475 = vadd.f32 %v2467, %v2427
  %v2476 = vadd.f32 %v2468, %v2428
  %v2477 = vadd.f32 %v2469, %v2429
  %v2478 = vadd.f32 %v2470, %v2430
  %v2479 = vadd.f32 %v2471, %v2431
  %v2480 = vadd.f32 %v2472, %v2432
  %v2489 = vrot.slane %v2442, 7
  %v2490 = vsel %vm2185, %v2489, %v2441
  %v2491 = vrot.slane %v2443, 6
  %v2492 = vsel %vm2187, %v2491, %v2490
  %v2493 = vrot.slane %v2444, 5
  %v2494 = vsel %vm2189, %v2493, %v2492
  %v2495 = vrot.slane %v2445, 4
  %v2496 = vsel %vm2191, %v2495, %v2494
  %v2497 = vrot.slane %v2446, 3
  %v2498 = vsel %vm2193, %v2497, %v2496
  %v2499 = vrot.slane %v2447, 2
  %v2500 = vsel %vm2195, %v2499, %v2498
  %v2501 = vrot.slane %v2448, 1
  %v2502 = vsel %vm2197, %v2501, %v2500
  %v2512 = vrot.slane %v2458, 7
  %v2513 = vsel %vm2185, %v2512, %v2457
  %v2514 = vrot.slane %v2459, 6
  %v2515 = vsel %vm2187, %v2514, %v2513
  %v2516 = vrot.slane %v2460, 5
  %v2517 = vsel %vm2189, %v2516, %v2515
  %v2518 = vrot.slane %v2461, 4
  %v2519 = vsel %vm2191, %v2518, %v2517
  %v2520 = vrot.slane %v2462, 3
  %v2521 = vsel %vm2193, %v2520, %v2519
  %v2522 = vrot.slane %v2463, 2
  %v2523 = vsel %vm2195, %v2522, %v2521
  %v2524 = vrot.slane %v2464, 1
  %v2525 = vsel %vm2197, %v2524, %v2523
  %2526 = vrot.lane.b32.xlu0 %v2525, 6
  %v2527 = vpop.permute.xlu0 %2526
  %v2537 = vrot.slane %v2474, 7
  %v2538 = vsel %vm2185, %v2537, %v2473
  %v2539 = vrot.slane %v2475, 6
  %v2540 = vsel %vm2187, %v2539, %v2538
  %v2541 = vrot.slane %v2476, 5
  %v2542 = vsel %vm2189, %v2541, %v2540
  %v2543 = vrot.slane %v2477, 4
  %v2544 = vsel %vm2191, %v2543, %v2542
  %v2545 = vrot.slane %v2478, 3
  %v2546 = vsel %vm2193, %v2545, %v2544
  %v2547 = vrot.slane %v2479, 2
  %v2548 = vsel %vm2195, %v2547, %v2546
  %v2549 = vrot.slane %v2480, 1
  %v2550 = vsel %vm2197, %v2549, %v2548
  %2551 = vrot.lane.b32.xlu0 %v2550, 13
  %v2552 = vpop.permute.xlu0 %2551
  %2554 = vrot.lane.b32.xlu0 %v2502, 124
  %v2555 = vpop.permute.xlu0 %2554
  %2557 = vrot.lane.b32.xlu0 %v2525, 126
  %v2558 = vpop.permute.xlu0 %2557
  %2560 = vrot.lane.b32.xlu0 %v2550, 5
  %v2561 = vpop.permute.xlu0 %2560
  %vm2563 = vcmask 48128
  %v2564 = vsel %vm2563, %v2502, %v2527
  %vm2565 = vcmask 105472
  %v2566 = vsel %vm2565, %v2564, %v2552
  %vm2567 = vcmask 162816
  %v2568 = vsel %vm2567, %v2566, %v2555
  %vm2569 = vcmask 211968
  %v2570 = vsel %vm2569, %v2568, %v2558
  %vm2571 = vcmask 269312
  %v2572 = vsel %vm2571, %v2570, %v2561
  %2573 = vrot.lane.b32.xlu0 %v2502, 122
  %v2574 = vpop.permute.xlu0 %2573
  %2576 = vrot.lane.b32.xlu0 %v2525, 127
  %v2577 = vpop.permute.xlu0 %2576
  %2579 = vrot.lane.b32.xlu0 %v2550, 6
  %v2580 = vpop.permute.xlu0 %2579
  %2582 = vrot.lane.b32.xlu0 %v2502, 118
  %v2583 = vpop.permute.xlu0 %2582
  %2585 = vrot.lane.b32.xlu0 %v2525, 119
  %v2586 = vpop.permute.xlu0 %2585
  %2588 = vrot.lane.b32.xlu0 %v2550, 126
  %v2589 = vpop.permute.xlu0 %2588
  %v2591 = vsel %vm2563, %v2574, %v2577
  %v2592 = vsel %vm2565, %v2591, %v2580
  %v2593 = vsel %vm2567, %v2592, %v2583
  %v2594 = vsel %vm2569, %v2593, %v2586
  %v2595 = vsel %vm2571, %v2594, %v2589
  %2596 = vrot.lane.b32.xlu0 %v2502, 116
  %v2597 = vpop.permute.xlu0 %2596
  %2599 = vrot.lane.b32.xlu0 %v2525, 120
  %v2600 = vpop.permute.xlu0 %2599
  %2602 = vrot.lane.b32.xlu0 %v2550, 127
  %v2603 = vpop.permute.xlu0 %2602
  %2605 = vrot.lane.b32.xlu0 %v2502, 112
  %v2606 = vpop.permute.xlu0 %2605
  %2608 = vrot.lane.b32.xlu0 %v2525, 112
  %v2609 = vpop.permute.xlu0 %2608
  %2611 = vrot.lane.b32.xlu0 %v2550, 119
  %v2612 = vpop.permute.xlu0 %2611
  %v2614 = vsel %vm2563, %v2597, %v2600
  %v2615 = vsel %vm2565, %v2614, %v2603
  %v2616 = vsel %vm2567, %v2615, %v2606
  %v2617 = vsel %vm2569, %v2616, %v2609
  %v2618 = vsel %vm2571, %v2617, %v2612
  %2619 = vrot.lane.b32.xlu0 %v2502, 110
  %v2620 = vpop.permute.xlu0 %2619
  %2622 = vrot.lane.b32.xlu0 %v2525, 113
  %v2623 = vpop.permute.xlu0 %2622
  %2625 = vrot.lane.b32.xlu0 %v2550, 120
  %v2626 = vpop.permute.xlu0 %2625
  %2628 = vrot.lane.b32.xlu0 %v2502, 106
  %v2629 = vpop.permute.xlu0 %2628
  %2631 = vrot.lane.b32.xlu0 %v2525, 105
  %v2632 = vpop.permute.xlu0 %2631
  %2634 = vrot.lane.b32.xlu0 %v2550, 112
  %v2635 = vpop.permute.xlu0 %2634
  %v2637 = vsel %vm2563, %v2620, %v2623
  %v2638 = vsel %vm2565, %v2637, %v2626
  %v2639 = vsel %vm2567, %v2638, %v2629
  %v2640 = vsel %vm2569, %v2639, %v2632
  %v2641 = vsel %vm2571, %v2640, %v2635
  %v2642 = vld [vmem:[%s11] sm:$0xff]
  %v2643 = vld [vmem:[%s13] sm:$0xff]
  %2645 = vset.pattern.permute.xlu0 0
  %2646 = vperm.xlu0 %2645, %v2643
  %v2647 = vpop.permute.xlu0 %2646
  %vm2649 = vcmask 261120
  %v2651 = vsel %vm2649, %v2642, 0
  %2653 = vmatprep.subr.mxu0 0.0
  %2654 = vmatpush1.msra.mxu0 0.0
  %2655 = vmatprep.subr.mxu0 0.0
  %2656 = vmatpush1.msra.mxu0 0.0
  %2657 = vmatprep.subr.mxu0 0.0
  %2658 = vmatpush1.msra.mxu0 0.0
  %2659 = vmatprep.subr.mxu0 0.0
  %2660 = vmatpush1.msra.mxu0 0.0
  %2661 = vmatprep.subr.mxu0 0.0
  %2662 = vmatpush1.msra.mxu0 0.0
  %2663 = vmatprep.subr.mxu0 0.0
  %2664 = vmatpush1.msra.mxu0 0.0
  %2665 = vmatprep.subr.mxu0 0.0
  %2666 = vmatpush1.msra.mxu0 0.0
  %2667 = vmatprep.subr.mxu0 0.0
  %2668 = vmatpush1.msra.mxu0 0.0
  %2669 = vmatprep.subr.mxu0 0.0
  %2670 = vmatpush1.msra.mxu0 0.0
  %2671 = vmatprep.subr.mxu0 0.0
  %2672 = vmatpush1.msra.mxu0 0.0
  %2673 = vmatprep.subr.mxu0 0.0
  %2674 = vmatpush1.msra.mxu0 0.0
  %2675 = vmatprep.subr.mxu0 0.0
  %2676 = vmatpush1.msra.mxu0 0.0
  %2677 = vmatprep.subr.mxu0 0.0
  %2678 = vmatpush1.msra.mxu0 %v2641
  %2679 = vmatprep.subr.mxu0 0.0
  %2680 = vmatpush1.msra.mxu0 %v2618
  %2681 = vmatprep.subr.mxu0 0.0
  %2682 = vmatpush1.msra.mxu0 %v2595
  %2683 = vmatprep.subr.mxu0 0.0
  %2684 = vmatpush1.msra.mxu0 %v2572
  %2685 = vmatprep.subr.mxu0 0.0
  %2686 = vmatpush2.msra.mxu0 0.0
  %2687 = vmatprep.subr.mxu0 0.0
  %2688 = vmatpush2.msra.mxu0 0.0
  %2689 = vmatprep.subr.mxu0 0.0
  %2690 = vmatpush2.msra.mxu0 0.0
  %2691 = vmatprep.subr.mxu0 0.0
  %2692 = vmatpush2.msra.mxu0 0.0
  %2693 = vmatprep.subr.mxu0 0.0
  %2694 = vmatpush2.msra.mxu0 0.0
  %2695 = vmatprep.subr.mxu0 0.0
  %2696 = vmatpush2.msra.mxu0 0.0
  %2697 = vmatprep.subr.mxu0 0.0
  %2698 = vmatpush2.msra.mxu0 0.0
  %2699 = vmatprep.subr.mxu0 0.0
  %2700 = vmatpush2.msra.mxu0 0.0
  %2701 = vmatprep.subr.mxu0 0.0
  %2702 = vmatpush2.msra.mxu0 0.0
  %2703 = vmatprep.subr.mxu0 0.0
  %2704 = vmatpush2.msra.mxu0 0.0
  %2705 = vmatprep.subr.mxu0 0.0
  %2706 = vmatpush2.msra.mxu0 0.0
  %2707 = vmatprep.subr.mxu0 0.0
  %2708 = vmatpush2.msra.mxu0 0.0
  %2709 = vmatprep.subr.mxu0 0.0
  %2710 = vmatpush2.msra.mxu0 0.0
  %2711 = vmatprep.subr.mxu0 0.0
  %2712 = vmatpush2.msra.mxu0 0.0
  %2713 = vmatprep.subr.mxu0 0.0
  %2714 = vmatpush2.msra.mxu0 0.0
  %2715 = vmatprep.subr.mxu0 0.0
  %2716 = vmatpush2.msra.mxu0 0.0
  %2717 = vmatprep.mubr.f32.mxu0 0.0
  %2718 = vmatmul.mubr.f32.gmra.mxu0 %v2651
  %v2719 = vpop.f32.mrf.mxu0
  %v2720 = vadd.f32 %v2647, %v2719
  %v2721 = vpop.f32.mrf.mxu0
  %2722 = vdwg.mxu0
  %v2723 = vmax.f32 %v2720, 0.0
  %vm2724 = vcmask 130048
  %v2725 = vsel %vm2724, %v2723, 0.0
  %2726 = vadd.xlane.f32.xlu0 %v2725
  %v2727 = vpop.xlane.xlu0 %2726
  %v2728 = vrcp.pop 16.0
  %v2729 = vmul.f32 %v2727, %v2728
  %2731 = vrot.lane.b32.xlu0 %v2723, 108
  %v2732 = vpop.permute.xlu0 %2731
  %v2734 = vsel %vm2724, %v2732, 0.0
  %2735 = vadd.xlane.f32.xlu0 %v2734
  %v2736 = vpop.xlane.xlu0 %2735
  %v2737 = vmul.f32 %v2736, %v2728
  %vm2738 = vcmask 7168
  %v2739 = vsel %vm2738, %v2729, %v2737
  %v2740 = vld [vmem:[%s12] sm:$0xff]
  %v2741 = vld [vmem:[%s14] sm:$0xff]
  %2743 = vset.pattern.permute.xlu0 0
  %2744 = vperm.xlu0 %2743, %v2741
  %v2745 = vpop.permute.xlu0 %2744
  %v2748 = vsel %vm2724, %v2740, 0
  %2750 = vmatprep.subr.mxu0 0.0
  %2751 = vmatpush1.msra.mxu0 0.0
  %2752 = vmatprep.subr.mxu0 0.0
  %2753 = vmatpush1.msra.mxu0 0.0
  %2754 = vmatprep.subr.mxu0 0.0
  %2755 = vmatpush1.msra.mxu0 0.0
  %2756 = vmatprep.subr.mxu0 0.0
  %2757 = vmatpush1.msra.mxu0 0.0
  %2758 = vmatprep.subr.mxu0 0.0
  %2759 = vmatpush1.msra.mxu0 0.0
  %2760 = vmatprep.subr.mxu0 0.0
  %2761 = vmatpush1.msra.mxu0 0.0
  %2762 = vmatprep.subr.mxu0 0.0
  %2763 = vmatpush1.msra.mxu0 0.0
  %2764 = vmatprep.subr.mxu0 0.0
  %2765 = vmatpush1.msra.mxu0 0.0
  %2766 = vmatprep.subr.mxu0 0.0
  %2767 = vmatpush1.msra.mxu0 0.0
  %2768 = vmatprep.subr.mxu0 0.0
  %2769 = vmatpush1.msra.mxu0 0.0
  %2770 = vmatprep.subr.mxu0 0.0
  %2771 = vmatpush1.msra.mxu0 0.0
  %2772 = vmatprep.subr.mxu0 0.0
  %2773 = vmatpush1.msra.mxu0 0.0
  %2774 = vmatprep.subr.mxu0 0.0
  %2775 = vmatpush1.msra.mxu0 0.0
  %2776 = vmatprep.subr.mxu0 0.0
  %2777 = vmatpush1.msra.mxu0 0.0
  %2778 = vmatprep.subr.mxu0 0.0
  %2779 = vmatpush1.msra.mxu0 %v2595
  %2780 = vmatprep.subr.mxu0 0.0
  %2781 = vmatpush1.msra.mxu0 %v2572
  %2782 = vmatprep.subr.mxu0 0.0
  %2783 = vmatpush2.msra.mxu0 0.0
  %2784 = vmatprep.subr.mxu0 0.0
  %2785 = vmatpush2.msra.mxu0 0.0
  %2786 = vmatprep.subr.mxu0 0.0
  %2787 = vmatpush2.msra.mxu0 0.0
  %2788 = vmatprep.subr.mxu0 0.0
  %2789 = vmatpush2.msra.mxu0 0.0
  %2790 = vmatprep.subr.mxu0 0.0
  %2791 = vmatpush2.msra.mxu0 0.0
  %2792 = vmatprep.subr.mxu0 0.0
  %2793 = vmatpush2.msra.mxu0 0.0
  %2794 = vmatprep.subr.mxu0 0.0
  %2795 = vmatpush2.msra.mxu0 0.0
  %2796 = vmatprep.subr.mxu0 0.0
  %2797 = vmatpush2.msra.mxu0 0.0
  %2798 = vmatprep.subr.mxu0 0.0
  %2799 = vmatpush2.msra.mxu0 0.0
  %2800 = vmatprep.subr.mxu0 0.0
  %2801 = vmatpush2.msra.mxu0 0.0
  %2802 = vmatprep.subr.mxu0 0.0
  %2803 = vmatpush2.msra.mxu0 0.0
  %2804 = vmatprep.subr.mxu0 0.0
  %2805 = vmatpush2.msra.mxu0 0.0
  %2806 = vmatprep.subr.mxu0 0.0
  %2807 = vmatpush2.msra.mxu0 0.0
  %2808 = vmatprep.subr.mxu0 0.0
  %2809 = vmatpush2.msra.mxu0 0.0
  %2810 = vmatprep.subr.mxu0 0.0
  %2811 = vmatpush2.msra.mxu0 0.0
  %2812 = vmatprep.subr.mxu0 0.0
  %2813 = vmatpush2.msra.mxu0 0.0
  %2814 = vmatprep.mubr.f32.mxu0 0.0
  %2815 = vmatmul.mubr.f32.gmra.mxu0 %v2748
  %v2816 = vpop.f32.mrf.mxu0
  %v2817 = vadd.f32 %v2745, %v2816
  %v2818 = vpop.f32.mrf.mxu0
  %2819 = vdwg.mxu0
  %v2820 = vmax.f32 %v2817, 0.0
  %v2821 = vsel %vm2724, %v2820, 0.0
  %2822 = vadd.xlane.f32.xlu0 %v2821
  %v2823 = vpop.xlane.xlu0 %2822
  %v2824 = vmul.f32 %v2823, %v2728
  %2826 = vrot.lane.b32.xlu0 %v2820, 108
  %v2827 = vpop.permute.xlu0 %2826
  %v2829 = vsel %vm2724, %v2827, 0.0
  %2830 = vadd.xlane.f32.xlu0 %v2829
  %v2831 = vpop.xlane.xlu0 %2830
  %v2832 = vmul.f32 %v2831, %v2728
  %v2833 = vsel %vm2738, %v2824, %v2832
  %2834 = vmatprep.subr.mxu0 0.0
  %2835 = vmatpush1.msra.mxu0 0.0
  %2836 = vmatprep.subr.mxu0 0.0
  %2837 = vmatpush1.msra.mxu0 0.0
  %2838 = vmatprep.subr.mxu0 0.0
  %2839 = vmatpush1.msra.mxu0 0.0
  %2840 = vmatprep.subr.mxu0 0.0
  %2841 = vmatpush1.msra.mxu0 0.0
  %2842 = vmatprep.subr.mxu0 0.0
  %2843 = vmatpush1.msra.mxu0 0.0
  %2844 = vmatprep.subr.mxu0 0.0
  %2845 = vmatpush1.msra.mxu0 0.0
  %2846 = vmatprep.subr.mxu0 0.0
  %2847 = vmatpush1.msra.mxu0 0.0
  %2848 = vmatprep.subr.mxu0 0.0
  %2849 = vmatpush1.msra.mxu0 0.0
  %2850 = vmatprep.subr.mxu0 0.0
  %2851 = vmatpush1.msra.mxu0 0.0
  %2852 = vmatprep.subr.mxu0 0.0
  %2853 = vmatpush1.msra.mxu0 0.0
  %2854 = vmatprep.subr.mxu0 0.0
  %2855 = vmatpush1.msra.mxu0 0.0
  %2856 = vmatprep.subr.mxu0 0.0
  %2857 = vmatpush1.msra.mxu0 0.0
  %2858 = vmatprep.subr.mxu0 0.0
  %2859 = vmatpush1.msra.mxu0 0.0
  %2860 = vmatprep.subr.mxu0 0.0
  %2861 = vmatpush1.msra.mxu0 0.0
  %2862 = vmatprep.subr.mxu0 0.0
  %2863 = vmatpush1.msra.mxu0 %v2641
  %2864 = vmatprep.subr.mxu0 0.0
  %2865 = vmatpush1.msra.mxu0 %v2618
  %2866 = vmatprep.subr.mxu0 0.0
  %2867 = vmatpush2.msra.mxu0 0.0
  %2868 = vmatprep.subr.mxu0 0.0
  %2869 = vmatpush2.msra.mxu0 0.0
  %2870 = vmatprep.subr.mxu0 0.0
  %2871 = vmatpush2.msra.mxu0 0.0
  %2872 = vmatprep.subr.mxu0 0.0
  %2873 = vmatpush2.msra.mxu0 0.0
  %2874 = vmatprep.subr.mxu0 0.0
  %2875 = vmatpush2.msra.mxu0 0.0
  %2876 = vmatprep.subr.mxu0 0.0
  %2877 = vmatpush2.msra.mxu0 0.0
  %2878 = vmatprep.subr.mxu0 0.0
  %2879 = vmatpush2.msra.mxu0 0.0
  %2880 = vmatprep.subr.mxu0 0.0
  %2881 = vmatpush2.msra.mxu0 0.0
  %2882 = vmatprep.subr.mxu0 0.0
  %2883 = vmatpush2.msra.mxu0 0.0
  %2884 = vmatprep.subr.mxu0 0.0
  %2885 = vmatpush2.msra.mxu0 0.0
  %2886 = vmatprep.subr.mxu0 0.0
  %2887 = vmatpush2.msra.mxu0 0.0
  %2888 = vmatprep.subr.mxu0 0.0
  %2889 = vmatpush2.msra.mxu0 0.0
  %2890 = vmatprep.subr.mxu0 0.0
  %2891 = vmatpush2.msra.mxu0 0.0
  %2892 = vmatprep.subr.mxu0 0.0
  %2893 = vmatpush2.msra.mxu0 0.0
  %2894 = vmatprep.subr.mxu0 0.0
  %2895 = vmatpush2.msra.mxu0 0.0
  %2896 = vmatprep.subr.mxu0 0.0
  %2897 = vmatpush2.msra.mxu0 0.0
  %2898 = vmatprep.mubr.f32.mxu0 0.0
  %2899 = vmatmul.mubr.f32.gmra.mxu0 %v2748
  %v2900 = vpop.f32.mrf.mxu0
  %v2901 = vadd.f32 %v2745, %v2900
  %v2902 = vpop.f32.mrf.mxu0
  %2903 = vdwg.mxu0
  %v2904 = vmax.f32 %v2901, 0.0
  %v2905 = vsel %vm2724, %v2904, 0.0
  %2906 = vadd.xlane.f32.xlu0 %v2905
  %v2907 = vpop.xlane.xlu0 %2906
  %v2908 = vmul.f32 %v2907, %v2728
  %2910 = vrot.lane.b32.xlu0 %v2904, 108
  %v2911 = vpop.permute.xlu0 %2910
  %v2913 = vsel %vm2724, %v2911, 0.0
  %2914 = vadd.xlane.f32.xlu0 %v2913
  %v2915 = vpop.xlane.xlu0 %2914
  %v2916 = vmul.f32 %v2915, %v2728
  %v2917 = vsel %vm2738, %v2908, %v2916
  %vm2918 = vcmask 15360
  %v2919 = vsel %vm2918, %v2739, 0.0
  %2920 = vadd.xlane.f32.xlu0 %v2919
  %v2921 = vpop.xlane.xlu0 %2920
  %v2922 = vadd.f32 %v2921, 0.0
  %v2923 = vsel %vm2918, %v2833, 0.0
  %2924 = vadd.xlane.f32.xlu0 %v2923
  %v2925 = vpop.xlane.xlu0 %2924
  %v2926 = vadd.f32 %v2922, %v2925
  %v2927 = vsel %vm2918, %v2917, 0.0
  %2928 = vadd.xlane.f32.xlu0 %v2927
  %v2929 = vpop.xlane.xlu0 %2928
  %v2930 = vadd.f32 %v2926, %v2929
  %v2931 = vrcp.pop 6.0
  %v2932 = vmul.f32 %v2930, %v2931
  %v2933 = vsub.f32 %v2739, %v2932
  %v2934 = vsub.f32 %v2833, %v2932
  %v2935 = vsub.f32 %v2917, %v2932
  %v2936 = vmul.f32 %v2933, %v2933
  %v2937 = vsel %vm2918, %v2936, 0.0
  %2938 = vadd.xlane.f32.xlu0 %v2937
  %v2939 = vpop.xlane.xlu0 %2938
  %v2940 = vadd.f32 %v2939, 0.0
  %v2941 = vmul.f32 %v2934, %v2934
  %v2942 = vsel %vm2918, %v2941, 0.0
  %2943 = vadd.xlane.f32.xlu0 %v2942
  %v2944 = vpop.xlane.xlu0 %2943
  %v2945 = vadd.f32 %v2940, %v2944
  %v2946 = vmul.f32 %v2935, %v2935
  %v2947 = vsel %vm2918, %v2946, 0.0
  %2948 = vadd.xlane.f32.xlu0 %v2947
  %v2949 = vpop.xlane.xlu0 %2948
  %v2950 = vadd.f32 %v2945, %v2949
  %v2951 = vmul.f32 %v2950, %v2931
  %v2952 = vadd.f32 %v2951, 1e-05
  %v2953 = vrsqrt.pop %v2952
  %v2954 = vld [vmem:[%s15] sm:$0xff]
  %v2955 = vmul.f32 %v2953, %v2954
  %2957 = vset.pattern.permute.xlu0 0
  %2958 = vperm.xlu0 %2957, %v2955
  %v2959 = vpop.permute.xlu0 %2958
  %v2961 = vmul.f32 %v2933, %v2959
  %v2962 = vld [vmem:[%s16] sm:$0xff]
  %2964 = vset.pattern.permute.xlu0 0
  %2965 = vperm.xlu0 %2964, %v2962
  %v2966 = vpop.permute.xlu0 %2965
  %v2968 = vadd.f32 %v2961, %v2966
  %v2969 = vmul.f32 %v2934, %v2959
  %v2970 = vadd.f32 %v2969, %v2966
  %v2971 = vmul.f32 %v2935, %v2959
  %v2972 = vadd.f32 %v2971, %v2966
  %v2973 = vld [vmem:[%s17] sm:$0xff]
  %v2974 = vld [vmem:[%s17 + $0x8] sm:$0xff]
  %v2975 = vld [vmem:[%s17 + $0x10] sm:$0xff]
  %v2976 = vld [vmem:[%s17 + $0x18] sm:$0xff]
  %v2977 = vld [vmem:[%s18] sm:$0xff]
  %v2978 = vld [vmem:[%s18 + $0x8] sm:$0xff]
  %v2979 = vld [vmem:[%s18 + $0x10] sm:$0xff]
  %v2980 = vld [vmem:[%s18 + $0x18] sm:$0xff]
  %2982 = vset.pattern.permute.xlu0 0
  %2983 = vperm.xlu0 %2982, %v2977
  %v2984 = vpop.permute.xlu0 %2983
  %2987 = vset.pattern.permute.xlu0 0
  %2988 = vperm.xlu0 %2987, %v2978
  %v2989 = vpop.permute.xlu0 %2988
  %2992 = vset.pattern.permute.xlu0 0
  %2993 = vperm.xlu0 %2992, %v2979
  %v2994 = vpop.permute.xlu0 %2993
  %2997 = vset.pattern.permute.xlu0 0
  %2998 = vperm.xlu0 %2997, %v2980
  %v2999 = vpop.permute.xlu0 %2998
  %vm3001 = vcmask 195584
  %v3003 = vsel %vm3001, %v2973, 0
  %v3006 = vsel %vm3001, %v2974, 0
  %v3009 = vsel %vm3001, %v2975, 0
  %v3012 = vsel %vm3001, %v2976, 0
  %3014 = vmatprep.subr.mxu0 0.0
  %3015 = vmatpush1.msra.mxu0 0.0
  %3016 = vmatprep.subr.mxu0 0.0
  %3017 = vmatpush1.msra.mxu0 0.0
  %3018 = vmatprep.subr.mxu0 0.0
  %3019 = vmatpush1.msra.mxu0 0.0
  %3020 = vmatprep.subr.mxu0 0.0
  %3021 = vmatpush1.msra.mxu0 0.0
  %3022 = vmatprep.subr.mxu0 0.0
  %3023 = vmatpush1.msra.mxu0 0.0
  %3024 = vmatprep.subr.mxu0 0.0
  %3025 = vmatpush1.msra.mxu0 0.0
  %3026 = vmatprep.subr.mxu0 0.0
  %3027 = vmatpush1.msra.mxu0 0.0
  %3028 = vmatprep.subr.mxu0 0.0
  %3029 = vmatpush1.msra.mxu0 0.0
  %3030 = vmatprep.subr.mxu0 0.0
  %3031 = vmatpush1.msra.mxu0 0.0
  %3032 = vmatprep.subr.mxu0 0.0
  %3033 = vmatpush1.msra.mxu0 0.0
  %3034 = vmatprep.subr.mxu0 0.0
  %3035 = vmatpush1.msra.mxu0 0.0
  %3036 = vmatprep.subr.mxu0 0.0
  %3037 = vmatpush1.msra.mxu0 0.0
  %3038 = vmatprep.subr.mxu0 0.0
  %3039 = vmatpush1.msra.mxu0 0.0
  %3040 = vmatprep.subr.mxu0 0.0
  %3041 = vmatpush1.msra.mxu0 %v2972
  %3042 = vmatprep.subr.mxu0 0.0
  %3043 = vmatpush1.msra.mxu0 %v2970
  %3044 = vmatprep.subr.mxu0 0.0
  %3045 = vmatpush1.msra.mxu0 %v2968
  %3046 = vmatprep.subr.mxu0 0.0
  %3047 = vmatpush2.msra.mxu0 0.0
  %3048 = vmatprep.subr.mxu0 0.0
  %3049 = vmatpush2.msra.mxu0 0.0
  %3050 = vmatprep.subr.mxu0 0.0
  %3051 = vmatpush2.msra.mxu0 0.0
  %3052 = vmatprep.subr.mxu0 0.0
  %3053 = vmatpush2.msra.mxu0 0.0
  %3054 = vmatprep.subr.mxu0 0.0
  %3055 = vmatpush2.msra.mxu0 0.0
  %3056 = vmatprep.subr.mxu0 0.0
  %3057 = vmatpush2.msra.mxu0 0.0
  %3058 = vmatprep.subr.mxu0 0.0
  %3059 = vmatpush2.msra.mxu0 0.0
  %3060 = vmatprep.subr.mxu0 0.0
  %3061 = vmatpush2.msra.mxu0 0.0
  %3062 = vmatprep.subr.mxu0 0.0
  %3063 = vmatpush2.msra.mxu0 0.0
  %3064 = vmatprep.subr.mxu0 0.0
  %3065 = vmatpush2.msra.mxu0 0.0
  %3066 = vmatprep.subr.mxu0 0.0
  %3067 = vmatpush2.msra.mxu0 0.0
  %3068 = vmatprep.subr.mxu0 0.0
  %3069 = vmatpush2.msra.mxu0 0.0
  %3070 = vmatprep.subr.mxu0 0.0
  %3071 = vmatpush2.msra.mxu0 0.0
  %3072 = vmatprep.subr.mxu0 0.0
  %3073 = vmatpush2.msra.mxu0 0.0
  %3074 = vmatprep.subr.mxu0 0.0
  %3075 = vmatpush2.msra.mxu0 0.0
  %3076 = vmatprep.subr.mxu0 0.0
  %3077 = vmatpush2.msra.mxu0 0.0
  %3078 = vmatprep.mubr.f32.mxu0 0.0
  %3079 = vmatmul.mubr.f32.gmra.mxu0 %v3003
  %v3080 = vpop.f32.mrf.mxu0
  %v3081 = vadd.f32 %v2984, %v3080
  %v3082 = vpop.f32.mrf.mxu0
  %3083 = vmatprep.mubr.f32.mxu0 0.0
  %3084 = vmatmul.mubr.f32.gmra.mxu0 %v3006
  %v3085 = vpop.f32.mrf.mxu0
  %v3086 = vadd.f32 %v2989, %v3085
  %v3087 = vpop.f32.mrf.mxu0
  %3088 = vmatprep.mubr.f32.mxu0 0.0
  %3089 = vmatmul.mubr.f32.gmra.mxu0 %v3009
  %v3090 = vpop.f32.mrf.mxu0
  %v3091 = vadd.f32 %v2994, %v3090
  %v3092 = vpop.f32.mrf.mxu0
  %3093 = vmatprep.mubr.f32.mxu0 0.0
  %3094 = vmatmul.mubr.f32.gmra.mxu0 %v3012
  %v3095 = vpop.f32.mrf.mxu0
  %v3096 = vadd.f32 %v2999, %v3095
  %v3097 = vpop.f32.mrf.mxu0
  %3098 = vdwg.mxu0
  %v3099 = vmax.f32 %v3081, 0.0
  %v3100 = vmax.f32 %v3086, 0.0
  %v3101 = vmax.f32 %v3091, 0.0
  %v3102 = vmax.f32 %v3096, 0.0
  %v3103 = vld [vmem:[%s19] sm:$0x7]
  %v3104 = vld [vmem:[%s20] sm:$0x7]
  %3106 = vset.pattern.permute.xlu0 0
  %3107 = vperm.xlu0 %3106, %v3104
  %v3108 = vpop.permute.xlu0 %3107
  %v3111 = vsel %vm2649, %v3103, 0
  %3113 = vmatprep.subr.mxu0 0.0
  %3114 = vmatpush1.msra.mxu0 0.0
  %3115 = vmatprep.subr.mxu0 0.0
  %3116 = vmatpush1.msra.mxu0 0.0
  %3117 = vmatprep.subr.mxu0 0.0
  %3118 = vmatpush1.msra.mxu0 0.0
  %3119 = vmatprep.subr.mxu0 0.0
  %3120 = vmatpush1.msra.mxu0 0.0
  %3121 = vmatprep.subr.mxu0 0.0
  %3122 = vmatpush1.msra.mxu0 0.0
  %3123 = vmatprep.subr.mxu0 0.0
  %3124 = vmatpush1.msra.mxu0 0.0
  %3125 = vmatprep.subr.mxu0 0.0
  %3126 = vmatpush1.msra.mxu0 0.0
  %3127 = vmatprep.subr.mxu0 0.0
  %3128 = vmatpush1.msra.mxu0 0.0
  %3129 = vmatprep.subr.mxu0 0.0
  %3130 = vmatpush1.msra.mxu0 0.0
  %3131 = vmatprep.subr.mxu0 0.0
  %3132 = vmatpush1.msra.mxu0 0.0
  %3133 = vmatprep.subr.mxu0 0.0
  %3134 = vmatpush1.msra.mxu0 0.0
  %3135 = vmatprep.subr.mxu0 0.0
  %3136 = vmatpush1.msra.mxu0 0.0
  %3137 = vmatprep.subr.mxu0 0.0
  %3138 = vmatpush1.msra.mxu0 %v3102
  %3139 = vmatprep.subr.mxu0 0.0
  %3140 = vmatpush1.msra.mxu0 %v3101
  %3141 = vmatprep.subr.mxu0 0.0
  %3142 = vmatpush1.msra.mxu0 %v3100
  %3143 = vmatprep.subr.mxu0 0.0
  %3144 = vmatpush1.msra.mxu0 %v3099
  %3145 = vmatprep.subr.mxu0 0.0
  %3146 = vmatpush2.msra.mxu0 0.0
  %3147 = vmatprep.subr.mxu0 0.0
  %3148 = vmatpush2.msra.mxu0 0.0
  %3149 = vmatprep.subr.mxu0 0.0
  %3150 = vmatpush2.msra.mxu0 0.0
  %3151 = vmatprep.subr.mxu0 0.0
  %3152 = vmatpush2.msra.mxu0 0.0
  %3153 = vmatprep.subr.mxu0 0.0
  %3154 = vmatpush2.msra.mxu0 0.0
  %3155 = vmatprep.subr.mxu0 0.0
  %3156 = vmatpush2.msra.mxu0 0.0
  %3157 = vmatprep.subr.mxu0 0.0
  %3158 = vmatpush2.msra.mxu0 0.0
  %3159 = vmatprep.subr.mxu0 0.0
  %3160 = vmatpush2.msra.mxu0 0.0
  %3161 = vmatprep.subr.mxu0 0.0
  %3162 = vmatpush2.msra.mxu0 0.0
  %3163 = vmatprep.subr.mxu0 0.0
  %3164 = vmatpush2.msra.mxu0 0.0
  %3165 = vmatprep.subr.mxu0 0.0
  %3166 = vmatpush2.msra.mxu0 0.0
  %3167 = vmatprep.subr.mxu0 0.0
  %3168 = vmatpush2.msra.mxu0 0.0
  %3169 = vmatprep.subr.mxu0 0.0
  %3170 = vmatpush2.msra.mxu0 0.0
  %3171 = vmatprep.subr.mxu0 0.0
  %3172 = vmatpush2.msra.mxu0 0.0
  %3173 = vmatprep.subr.mxu0 0.0
  %3174 = vmatpush2.msra.mxu0 0.0
  %3175 = vmatprep.subr.mxu0 0.0
  %3176 = vmatpush2.msra.mxu0 0.0
  %3177 = vmatprep.mubr.f32.mxu0 0.0
  %3178 = vmatmul.mubr.f32.gmra.mxu0 %v3111
  %v3179 = vpop.f32.mrf.mxu0
  %v3180 = vadd.f32 %v3108, %v3179
  %v3181 = vpop.f32.mrf.mxu0
  %3182 = vdwg.mxu0
  %vm3183 = vcmask 10240
  %v3184 = vsel %vm3183, %v3180, -inf
  %v3185 = vrot.slane %v3184, 4
  %v3186 = vmax.f32 %v3184, %v3185
  %v3187 = vrot.slane %v3186, 2
  %v3188 = vmax.f32 %v3186, %v3187
  %v3189 = vrot.slane %v3188, 1
  %v3190 = vmax.f32 %v3188, %v3189
  %v3191 = vsub.f32 %v3180, %v3190
  %v3192 = vmul.f32 %v3191, 1.442695
  %v3193 = vpow.pop %v3192
  %v3194 = vsel %vm3183, %v3193, 0.0
  %v3195 = vrot.slane %v3194, 4
  %v3196 = vadd.f32 %v3194, %v3195
  %v3197 = vrot.slane %v3196, 2
  %v3198 = vadd.f32 %v3196, %v3197
  %v3199 = vrot.slane %v3198, 1
  %v3200 = vadd.f32 %v3198, %v3199
  %v3201 = vlog2.pop %v3200
  %v3202 = vmul.f32 %v3201, 0.6931472
  %v3203 = vsub.f32 %v3191, %v3202
  %3204 = vst.msk [vmem:[%s21] sm:$0x7] %vm3183, %v3203
  // Predicated region
  $region86: #{tpu_custom_call.1} parent=0 // pred_check
    _
  $region87: #{tpu_custom_call.1} parent=0 // pred_check_branch
    %3206 = sbr.rel (0) target = $region89
  $region88: #{tpu_custom_call.1} parent=0 // pred_region
    _
  $region89: #{tpu_custom_call.1} parent=0 // pred_fallthru
    _
  // Predicated region
  $region90: #{tpu_custom_call.1} parent=0 // pred_check
    _
  $region91: #{tpu_custom_call.1} parent=0 // pred_check_branch
    %3208 = sbr.rel (0) target = $region93
  $region92: #{tpu_custom_call.1} parent=0 // pred_region
    _
  $region93: #{tpu_custom_call.1} parent=0 // pred_fallthru
    _

</llo_original>
